<compile_context>
chip_gen: v7x
topology: tpu7x:2x2x1
jax: 0.10.0
libtpu: 0.0.40
codegen_flags: <defaults>
</compile_context>

<pallas_src>
import jax
import jax.numpy as jnp
from jax import lax
from jax.experimental import pallas as pl
from jax.experimental.pallas import tpu as pltpu

EPS = 96.0  # torch.nn.BatchNorm2d(64, 96) -> eps = 96


def _vmem_spec():
    # whole-array block resident in VMEM (everything here is small)
    return pl.BlockSpec(memory_space=pltpu.MemorySpace.VMEM)


# ---------------- fused Pallas kernel: conv1..conv7 + broadcast add ----------


def fused_kernel(v7_ref, p1_ref, w1f_ref, wab_ref, b1_ref, bcol_ref, o_ref):
    f32 = jnp.float32

    # conv1: kernel (1,96) stride (1,96) -> single im2col matmul, K = Cin*96.
    # bf16 operands, f32 accumulation on the MXU.
    h = jnp.dot(p1_ref[...], w1f_ref[...], preferred_element_type=f32)
    h = h + b1_ref[...]                               # (2, 64)  [row h, col cout]

    # conv2..conv7 (all taps on non-padding data) were composed offline into
    # wab[0] (for spatial row 0) and wab[1] (row 1), stored as [cout, cin], and
    # one folded bias column.  Contracting dim 1 of both operands makes the MXU
    # emit the (64, 1) per-channel column directly (no transpose / reduce).
    dn = (((1,), (1,)), ((), ()))
    h_col = (lax.dot_general(wab_ref[0], h[0:1, :], dn, preferred_element_type=f32)
             + lax.dot_general(wab_ref[1], h[1:2, :], dn, preferred_element_type=f32)
             + bcol_ref[...])                         # (64, 1)

    # torch.add(v3, v7): (64,1,1) broadcast against (64,2,96) == lane broadcast
    # on the (64, 192) slab.  Lane-dense store (192 >= 128).
    o_ref[...] = v7_ref[...] + h_col


# ---------------- host-side parameter prep (done once) ----------------------


def prepare_params(params):
    """Flatten, tap-prune and COMPOSE all conv weights into kernel layout once."""
    C = params["w1"].shape[0]

    # conv1 weight flattened for im2col: K index = cin*96 + w, N index = cout.
    w1f = params["w1"].reshape(C, -1).T.astype(jnp.bfloat16)        # (6144, 64)

    def cio(w, kh, kw):          # torch (O, I, KH, KW) tap -> [cin, cout]
        return w[:, :, kh, kw].T

    # conv2 (3x3 s2 p1) on a (2,1) map keeps only taps (1,1)/(2,1); conv3..7 on
    # a (1,1) map keep only their center taps.  Compose the whole tail offline.
    tail = (cio(params["w3"], 0, 0) @ cio(params["w4"], 2, 2)
            @ cio(params["w5"], 1, 1) @ cio(params["w6"], 1, 1)
            @ cio(params["w7"], 1, 1))
    wa = cio(params["w2"], 1, 1) @ tail                             # [cin, cout]
    wb = cio(params["w2"], 2, 1) @ tail

    # Fold biases b2..b7 through the tail: b2@W3..W7 + b3@W4..W7 + ... + b7.
    b = params["c2b"].reshape(1, C)
    for i, (kh, kw) in zip(range(3, 8), [(0, 0), (2, 2), (1, 1), (1, 1), (1, 1)]):
        b = b @ cio(params["w%d" % i], kh, kw) + params["c%db" % i].reshape(1, C)

    return {
        "w1f": w1f,
        "wab": jnp.stack([wa.T, wb.T]).astype(jnp.float32),   # (2, 64, 64) [cout,cin]
        "b1row": params["c1b"].reshape(1, C).astype(jnp.float32),
        "bcol": b.reshape(C, 1).astype(jnp.float32),
        "bn": params["bn"],
    }


# ---------------- forward ----------------------------------------------------


@jax.jit
def model_forward(x, prep):
    N, C, H, W = x.shape
    assert (N, C, H, W) == (1, 64, 2, 96)

    # --- collapsed triple BatchNorm (training-mode batch stats, eps=96) ---
    # After BN1 the per-channel mean is exactly its bias, so BN2/BN3 reduce to
    # pure per-channel rescalings; compose everything into one affine.
    x_cs = x.reshape(C, N * H * W)                  # (64, 192), channels->sublanes
    g1, be1, g2, be2, g3, be3 = prep["bn"]
    mu = jnp.mean(x_cs, axis=1, keepdims=True)
    var = jnp.mean(jnp.square(x_cs - mu), axis=1, keepdims=True)
    s1 = g1.reshape(C, 1) * lax.rsqrt(var + EPS)
    v1 = var * s1 * s1
    s2 = g2.reshape(C, 1) * lax.rsqrt(v1 + EPS)
    v2 = v1 * s2 * s2
    s3 = g3.reshape(C, 1) * lax.rsqrt(v2 + EPS)
    v7_cs = (x_cs - mu) * (s1 * s2 * s3) + be3.reshape(C, 1)        # (64, 192) f32

    # conv1 im2col patches: row h, column cin*96 + w (matches w1f's K order).
    # bf16 activations to pair with the bf16 weights (f32 MXU accumulation).
    p1 = (v7_cs.reshape(C, H, W).transpose(1, 0, 2)
          .reshape(H, C * W).astype(jnp.bfloat16))                  # (2, 6144)

    out = pl.pallas_call(
        fused_kernel,
        out_shape=jax.ShapeDtypeStruct((C, H * W), jnp.float32),
        in_specs=[_vmem_spec() for _ in range(6)],
        out_specs=_vmem_spec(),
    )(v7_cs, p1, prep["w1f"], prep["wab"], prep["b1row"], prep["bcol"])

    return out.reshape(N, C, H, W)


# ---------------- pure-JAX reference (for sanity check) ----------------------


def ref_forward(x, params):
    def bn(h, g, b):
        mu = h.mean(axis=(0, 2, 3), keepdims=True)
        var = ((h - mu) ** 2).mean(axis=(0, 2, 3), keepdims=True)
        return (h - mu) / jnp.sqrt(var + EPS) * g.reshape(1, -1, 1, 1) \
            + b.reshape(1, -1, 1, 1)

    def conv(h, w, b, stride, padding):
        y = lax.conv_general_dilated(
            h, w, window_strides=stride,
            padding=[(padding[0], padding[0]), (padding[1], padding[1])],
            dimension_numbers=("NCHW", "OIHW", "NCHW"))
        return y + b.reshape(1, -1, 1, 1)

    g1, b1, g2, b2, g3, b3 = params["bn"]
    v7 = bn(bn(bn(x, g1, b1), g2, b2), g3, b3)
    h = conv(v7, params["w1"], params["c1b"], (1, 96), (0, 0))
    h = conv(h, params["w2"], params["c2b"], (2, 2), (1, 1))
    h = conv(h, params["w3"], params["c3b"], (1, 1), (0, 0))
    h = conv(h, params["w4"], params["c4b"], (1, 1), (2, 2))
    h = conv(h, params["w5"], params["c5b"], (1, 1), (1, 1))
    h = conv(h, params["w6"], params["c6b"], (1, 1), (1, 1))
    h = conv(h, params["w7"], params["c7b"], (1, 1), (1, 1))
    return h + v7


# ---------------- parameter init ---------------------------------------------


def init_params(key):
    C = 64
    shapes = {
        "w1": (C, C, 1, 96), "w2": (C, C, 3, 3), "w3": (C, C, 1, 1),
        "w4": (C, C, 5, 5), "w5": (C, C, 3, 3), "w6": (C, C, 3, 3),
        "w7": (C, C, 3, 3),
    }
    params = {}
    keys = jax.random.split(key, 2 * len(shapes))
    for n, (name, shp) in enumerate(shapes.items()):
        fan_in = shp[1] * shp[2] * shp[3]
        bound = 1.0 / (fan_in ** 0.5)
        params[name] = jax.random.uniform(
            keys[2 * n], shp, jnp.float32, -bound, bound)
        params["c%db" % (n + 1)] = jax.random.uniform(
            keys[2 * n + 1], (C,), jnp.float32, -bound, bound)
    # BatchNorm affine params: PyTorch default init (weight=1, bias=0)
    ones = jnp.ones((C,), jnp.float32)
    zeros = jnp.zeros((C,), jnp.float32)
    params["bn"] = (ones, zeros, ones, zeros, ones, zeros)
    return params


if __name__ == "__main__":
    key = jax.random.PRNGKey(0)
    k_x, k_p = jax.random.split(key)
    # small shape consistent with the module (C=64 fixed, W=96 required by
    # conv1, H=2 so the final broadcasted add is well defined)
    x1 = jax.random.normal(k_x, (1, 64, 2, 96), jnp.float32)
    params = init_params(k_p)
    prep = prepare_params(params)

    out = jax.block_until_ready(model_forward(x1, prep))
    ref = jax.block_until_ready(ref_forward(x1, params))

    assert out.shape == ref.shape == (1, 64, 2, 96)
    err = float(jnp.max(jnp.abs(out - ref)))
    assert jnp.allclose(out, ref, atol=1e-4, rtol=1e-3), err

    print("KERNEL_OK")
</pallas_src>

<mosaic_0001>
module attributes {stable_mosaic.version = 11 : i64} {
  func.func @fused_kernel(%arg0: memref<64x192xf32, #tpu.memory_space<vmem>>, %arg1: memref<2x6144xbf16, #tpu.memory_space<vmem>>, %arg2: memref<6144x64xbf16, #tpu.memory_space<vmem>>, %arg3: memref<2x64x64xf32, #tpu.memory_space<vmem>>, %arg4: memref<1x64xf32, #tpu.memory_space<vmem>>, %arg5: memref<64x1xf32, #tpu.memory_space<vmem>>, %arg6: memref<64x192xf32, #tpu.memory_space<vmem>>) attributes {dimension_semantics = [], scalar_prefetch = 0 : i64, scratch_operands = 0 : i64, tpu.core_type = #tpu.core_type<tc>} {
    %c0 = arith.constant 0 : index
    %c0_0 = arith.constant 0 : index
    %0 = vector.load %arg1[%c0, %c0_0] : memref<2x6144xbf16, #tpu.memory_space<vmem>>, vector<2x6144xbf16>
    %c0_1 = arith.constant 0 : index
    %c0_2 = arith.constant 0 : index
    %1 = vector.load %arg2[%c0_1, %c0_2] : memref<6144x64xbf16, #tpu.memory_space<vmem>>, vector<6144x64xbf16>
    %cst = arith.constant dense<0.000000e+00> : vector<2x64xf32>
    %2 = tpu.matmul %0, %1, %cst {dimension_numbers = #tpu.dot_dimension_numbers<[1], [0], [0], [1], [0, 0, 1, 1], [], []>} : vector<2x6144xbf16>, vector<6144x64xbf16>, vector<2x64xf32> -> vector<2x64xf32>
    %c0_3 = arith.constant 0 : index
    %c0_4 = arith.constant 0 : index
    %3 = vector.load %arg4[%c0_3, %c0_4] : memref<1x64xf32, #tpu.memory_space<vmem>>, vector<1x64xf32>
    %4 = vector.broadcast %3 : vector<1x64xf32> to vector<2x64xf32>
    %5 = arith.addf %2, %4 : vector<2x64xf32>
    %c0_5 = arith.constant 0 : index
    %c0_6 = arith.constant 0 : index
    %c0_7 = arith.constant 0 : index
    %6 = vector.load %arg3[%c0_5, %c0_6, %c0_7] : memref<2x64x64xf32, #tpu.memory_space<vmem>>, vector<1x64x64xf32>
    %7 = vector.shape_cast %6 : vector<1x64x64xf32> to vector<64x64xf32>
    %8 = vector.extract_strided_slice %5 {offsets = [0, 0], sizes = [1, 64], strides = [1, 1]} : vector<2x64xf32> to vector<1x64xf32>
    %cst_8 = arith.constant dense<0.000000e+00> : vector<64x1xf32>
    %9 = tpu.matmul %7, %8, %cst_8 {dimension_numbers = #tpu.dot_dimension_numbers<[1], [1], [0], [0], [0, 0, 1, 0], [], []>} : vector<64x64xf32>, vector<1x64xf32>, vector<64x1xf32> -> vector<64x1xf32>
    %c1 = arith.constant 1 : index
    %c0_9 = arith.constant 0 : index
    %c0_10 = arith.constant 0 : index
    %10 = vector.load %arg3[%c1, %c0_9, %c0_10] : memref<2x64x64xf32, #tpu.memory_space<vmem>>, vector<1x64x64xf32>
    %11 = vector.shape_cast %10 : vector<1x64x64xf32> to vector<64x64xf32>
    %12 = vector.extract_strided_slice %5 {offsets = [1, 0], sizes = [1, 64], strides = [1, 1]} : vector<2x64xf32> to vector<1x64xf32>
    %cst_11 = arith.constant dense<0.000000e+00> : vector<64x1xf32>
    %13 = tpu.matmul %11, %12, %cst_11 {dimension_numbers = #tpu.dot_dimension_numbers<[1], [1], [0], [0], [0, 0, 1, 0], [], []>} : vector<64x64xf32>, vector<1x64xf32>, vector<64x1xf32> -> vector<64x1xf32>
    %14 = arith.addf %9, %13 : vector<64x1xf32>
    %c0_12 = arith.constant 0 : index
    %c0_13 = arith.constant 0 : index
    %15 = vector.load %arg5[%c0_12, %c0_13] : memref<64x1xf32, #tpu.memory_space<vmem>>, vector<64x1xf32>
    %16 = arith.addf %14, %15 : vector<64x1xf32>
    %c0_14 = arith.constant 0 : index
    %c0_15 = arith.constant 0 : index
    %17 = vector.load %arg0[%c0_14, %c0_15] : memref<64x192xf32, #tpu.memory_space<vmem>>, vector<64x192xf32>
    %18 = vector.broadcast %16 : vector<64x1xf32> to vector<64x192xf32>
    %19 = arith.addf %17, %18 : vector<64x192xf32>
    %c0_16 = arith.constant 0 : index
    %c0_17 = arith.constant 0 : index
    %20 = vector.load %arg6[%c0_16, %c0_17] : memref<64x192xf32, #tpu.memory_space<vmem>>, vector<64x192xf32>
    tpu.vector_store %arg6[%c0_16, %c0_17], %19 {strides = array<i32>} : memref<64x192xf32, #tpu.memory_space<vmem>>, vector<64x192xf32>,
    return
  }
}

</mosaic_0001>

<llo_original>
// kernel: model_forward.1
$region0: #{model_forward.1}
  #allocation0 [shape = 'u32[]', space=smem, size = 0x4, offset = 0x4, fixed_abs, tag = 'smem constant byte address 0x4 - core index']
  #allocation1 [shape = 'u32[144,128]{1,0:T(1,128)}', space=vmem, size = 0x12000, scoped, tag = 'internal scratch']
  %s0 = inlined_call_operand.vmem [shape: f32[64,192], index: 0, kind: input, shape index: {}]
  %s1 = inlined_call_operand.vmem [shape: bf16[2,6144], index: 1, kind: input, shape index: {}]
  %s2 = inlined_call_operand.vmem [shape: bf16[6144,64], index: 2, kind: input, shape index: {}]
  %s3 = inlined_call_operand.vmem [shape: f32[2,64,64], index: 3, kind: input, shape index: {}]
  %s4 = inlined_call_operand.vmem [shape: f32[1,64], index: 4, kind: input, shape index: {}]
  %s5 = inlined_call_operand.vmem [shape: f32[64,1], index: 5, kind: input, shape index: {}]
  %s6 = inlined_call_operand.vmem [shape: f32[64,192], index: 6, kind: output, shape index: {}]
  %s7 = sld [smem:[#allocation0]]
  $region34: #{model_forward.1} parent=0
    _
  %s9 = ssub.s32 1, %s7
  %s10 = scalar_select 0, %s9, %s7
  // Predicated region
  $region2: #{model_forward.1} parent=0 // pred_check
    _
  $region3: #{model_forward.1} parent=0 // pred_check_branch
    %12 = sbr.rel (0) target = $region5
  $region4: #{model_forward.1} parent=0 // pred_region
    _
  $region5: #{model_forward.1} parent=0 // pred_fallthru
    _
  // Predicated region
  $region6: #{model_forward.1} parent=0 // pred_check
    _
  $region7: #{model_forward.1} parent=0 // pred_check_branch
    %14 = sbr.rel (0) target = $region9
  $region8: #{model_forward.1} parent=0 // pred_region
    _
  $region9: #{model_forward.1} parent=0 // pred_fallthru
    _
  // Predicated region
  $region10: #{model_forward.1} parent=0 // pred_check
    _
  $region11: #{model_forward.1} parent=0 // pred_check_branch
    %16 = sbr.rel (0) target = $region13
  $region12: #{model_forward.1} parent=0 // pred_region
    _
  $region13: #{model_forward.1} parent=0 // pred_fallthru
    _
  // Predicated region
  $region14: #{model_forward.1} parent=0 // pred_check
    _
  $region15: #{model_forward.1} parent=0 // pred_check_branch
    %18 = sbr.rel (0) target = $region17
  $region16: #{model_forward.1} parent=0 // pred_region
    _
  $region17: #{model_forward.1} parent=0 // pred_fallthru
    _
  // Predicated region
  $region18: #{model_forward.1} parent=0 // pred_check
    _
  $region19: #{model_forward.1} parent=0 // pred_check_branch
    %20 = sbr.rel (0) target = $region21
  $region20: #{model_forward.1} parent=0 // pred_region
    _
  $region21: #{model_forward.1} parent=0 // pred_fallthru
    _
  // Predicated region
  $region22: #{model_forward.1} parent=0 // pred_check
    _
  $region23: #{model_forward.1} parent=0 // pred_check_branch
    %22 = sbr.rel (0) target = $region25
  $region24: #{model_forward.1} parent=0 // pred_region
    _
  $region25: #{model_forward.1} parent=0 // pred_fallthru
    _
  %v24 = vld [vmem:[%s1] sm:$0xff]
  %v25 = vld [vmem:[%s1 + $0x8] sm:$0xff]
  %v26 = vld [vmem:[%s1 + $0x10] sm:$0xff]
  %v27 = vld [vmem:[%s1 + $0x18] sm:$0xff]
  %v28 = vld [vmem:[%s1 + $0x20] sm:$0xff]
  %v29 = vld [vmem:[%s1 + $0x28] sm:$0xff]
  %v30 = vld [vmem:[%s2] sm:$0xf]
  %v31 = vld [vmem:[%s2 + $0x4] sm:$0xf]
  %v32 = vld [vmem:[%s2 + $0x8] sm:$0xf]
  %v33 = vld [vmem:[%s2 + $0xc] sm:$0xf]
  %v34 = vld [vmem:[%s2 + $0x10] sm:$0xf]
  %v35 = vld [vmem:[%s2 + $0x14] sm:$0xf]
  %v36 = vld [vmem:[%s2 + $0x18] sm:$0xf]
  %v37 = vld [vmem:[%s2 + $0x1c] sm:$0xf]
  %v38 = vld [vmem:[%s2 + $0x20] sm:$0xf]
  %v39 = vld [vmem:[%s2 + $0x24] sm:$0xf]
  %v40 = vld [vmem:[%s2 + $0x28] sm:$0xf]
  %v41 = vld [vmem:[%s2 + $0x2c] sm:$0xf]
  %v42 = vld [vmem:[%s2 + $0x30] sm:$0xf]
  %v43 = vld [vmem:[%s2 + $0x34] sm:$0xf]
  %v44 = vld [vmem:[%s2 + $0x38] sm:$0xf]
  %v45 = vld [vmem:[%s2 + $0x3c] sm:$0xf]
  %v46 = vld [vmem:[%s2 + $0x40] sm:$0xf]
  %v47 = vld [vmem:[%s2 + $0x44] sm:$0xf]
  %v48 = vld [vmem:[%s2 + $0x48] sm:$0xf]
  %v49 = vld [vmem:[%s2 + $0x4c] sm:$0xf]
  %v50 = vld [vmem:[%s2 + $0x50] sm:$0xf]
  %v51 = vld [vmem:[%s2 + $0x54] sm:$0xf]
  %v52 = vld [vmem:[%s2 + $0x58] sm:$0xf]
  %v53 = vld [vmem:[%s2 + $0x5c] sm:$0xf]
  %v54 = vld [vmem:[%s2 + $0x60] sm:$0xf]
  %v55 = vld [vmem:[%s2 + $0x64] sm:$0xf]
  %v56 = vld [vmem:[%s2 + $0x68] sm:$0xf]
  %v57 = vld [vmem:[%s2 + $0x6c] sm:$0xf]
  %v58 = vld [vmem:[%s2 + $0x70] sm:$0xf]
  %v59 = vld [vmem:[%s2 + $0x74] sm:$0xf]
  %v60 = vld [vmem:[%s2 + $0x78] sm:$0xf]
  %v61 = vld [vmem:[%s2 + $0x7c] sm:$0xf]
  %v62 = vld [vmem:[%s2 + $0x80] sm:$0xf]
  %v63 = vld [vmem:[%s2 + $0x84] sm:$0xf]
  %v64 = vld [vmem:[%s2 + $0x88] sm:$0xf]
  %v65 = vld [vmem:[%s2 + $0x8c] sm:$0xf]
  %v66 = vld [vmem:[%s2 + $0x90] sm:$0xf]
  %v67 = vld [vmem:[%s2 + $0x94] sm:$0xf]
  %v68 = vld [vmem:[%s2 + $0x98] sm:$0xf]
  %v69 = vld [vmem:[%s2 + $0x9c] sm:$0xf]
  %v70 = vld [vmem:[%s2 + $0xa0] sm:$0xf]
  %v71 = vld [vmem:[%s2 + $0xa4] sm:$0xf]
  %v72 = vld [vmem:[%s2 + $0xa8] sm:$0xf]
  %v73 = vld [vmem:[%s2 + $0xac] sm:$0xf]
  %v74 = vld [vmem:[%s2 + $0xb0] sm:$0xf]
  %v75 = vld [vmem:[%s2 + $0xb4] sm:$0xf]
  %v76 = vld [vmem:[%s2 + $0xb8] sm:$0xf]
  %v77 = vld [vmem:[%s2 + $0xbc] sm:$0xf]
  %v78 = vld [vmem:[%s2 + $0xc0] sm:$0xf]
  %v79 = vld [vmem:[%s2 + $0xc4] sm:$0xf]
  %v80 = vld [vmem:[%s2 + $0xc8] sm:$0xf]
  %v81 = vld [vmem:[%s2 + $0xcc] sm:$0xf]
  %v82 = vld [vmem:[%s2 + $0xd0] sm:$0xf]
  %v83 = vld [vmem:[%s2 + $0xd4] sm:$0xf]
  %v84 = vld [vmem:[%s2 + $0xd8] sm:$0xf]
  %v85 = vld [vmem:[%s2 + $0xdc] sm:$0xf]
  %v86 = vld [vmem:[%s2 + $0xe0] sm:$0xf]
  %v87 = vld [vmem:[%s2 + $0xe4] sm:$0xf]
  %v88 = vld [vmem:[%s2 + $0xe8] sm:$0xf]
  %v89 = vld [vmem:[%s2 + $0xec] sm:$0xf]
  %v90 = vld [vmem:[%s2 + $0xf0] sm:$0xf]
  %v91 = vld [vmem:[%s2 + $0xf4] sm:$0xf]
  %v92 = vld [vmem:[%s2 + $0xf8] sm:$0xf]
  %v93 = vld [vmem:[%s2 + $0xfc] sm:$0xf]
  %v94 = vld [vmem:[%s2 + $0x100] sm:$0xf]
  %v95 = vld [vmem:[%s2 + $0x104] sm:$0xf]
  %v96 = vld [vmem:[%s2 + $0x108] sm:$0xf]
  %v97 = vld [vmem:[%s2 + $0x10c] sm:$0xf]
  %v98 = vld [vmem:[%s2 + $0x110] sm:$0xf]
  %v99 = vld [vmem:[%s2 + $0x114] sm:$0xf]
  %v100 = vld [vmem:[%s2 + $0x118] sm:$0xf]
  %v101 = vld [vmem:[%s2 + $0x11c] sm:$0xf]
  %v102 = vld [vmem:[%s2 + $0x120] sm:$0xf]
  %v103 = vld [vmem:[%s2 + $0x124] sm:$0xf]
  %v104 = vld [vmem:[%s2 + $0x128] sm:$0xf]
  %v105 = vld [vmem:[%s2 + $0x12c] sm:$0xf]
  %v106 = vld [vmem:[%s2 + $0x130] sm:$0xf]
  %v107 = vld [vmem:[%s2 + $0x134] sm:$0xf]
  %v108 = vld [vmem:[%s2 + $0x138] sm:$0xf]
  %v109 = vld [vmem:[%s2 + $0x13c] sm:$0xf]
  %v110 = vld [vmem:[%s2 + $0x140] sm:$0xf]
  %v111 = vld [vmem:[%s2 + $0x144] sm:$0xf]
  %v112 = vld [vmem:[%s2 + $0x148] sm:$0xf]
  %v113 = vld [vmem:[%s2 + $0x14c] sm:$0xf]
  %v114 = vld [vmem:[%s2 + $0x150] sm:$0xf]
  %v115 = vld [vmem:[%s2 + $0x154] sm:$0xf]
  %v116 = vld [vmem:[%s2 + $0x158] sm:$0xf]
  %v117 = vld [vmem:[%s2 + $0x15c] sm:$0xf]
  %v118 = vld [vmem:[%s2 + $0x160] sm:$0xf]
  %v119 = vld [vmem:[%s2 + $0x164] sm:$0xf]
  %v120 = vld [vmem:[%s2 + $0x168] sm:$0xf]
  %v121 = vld [vmem:[%s2 + $0x16c] sm:$0xf]
  %v122 = vld [vmem:[%s2 + $0x170] sm:$0xf]
  %v123 = vld [vmem:[%s2 + $0x174] sm:$0xf]
  %v124 = vld [vmem:[%s2 + $0x178] sm:$0xf]
  %v125 = vld [vmem:[%s2 + $0x17c] sm:$0xf]
  %v126 = vld [vmem:[%s2 + $0x180] sm:$0xf]
  %v127 = vld [vmem:[%s2 + $0x184] sm:$0xf]
  %v128 = vld [vmem:[%s2 + $0x188] sm:$0xf]
  %v129 = vld [vmem:[%s2 + $0x18c] sm:$0xf]
  %v130 = vld [vmem:[%s2 + $0x190] sm:$0xf]
  %v131 = vld [vmem:[%s2 + $0x194] sm:$0xf]
  %v132 = vld [vmem:[%s2 + $0x198] sm:$0xf]
  %v133 = vld [vmem:[%s2 + $0x19c] sm:$0xf]
  %v134 = vld [vmem:[%s2 + $0x1a0] sm:$0xf]
  %v135 = vld [vmem:[%s2 + $0x1a4] sm:$0xf]
  %v136 = vld [vmem:[%s2 + $0x1a8] sm:$0xf]
  %v137 = vld [vmem:[%s2 + $0x1ac] sm:$0xf]
  %v138 = vld [vmem:[%s2 + $0x1b0] sm:$0xf]
  %v139 = vld [vmem:[%s2 + $0x1b4] sm:$0xf]
  %v140 = vld [vmem:[%s2 + $0x1b8] sm:$0xf]
  %v141 = vld [vmem:[%s2 + $0x1bc] sm:$0xf]
  %v142 = vld [vmem:[%s2 + $0x1c0] sm:$0xf]
  %v143 = vld [vmem:[%s2 + $0x1c4] sm:$0xf]
  %v144 = vld [vmem:[%s2 + $0x1c8] sm:$0xf]
  %v145 = vld [vmem:[%s2 + $0x1cc] sm:$0xf]
  %v146 = vld [vmem:[%s2 + $0x1d0] sm:$0xf]
  %v147 = vld [vmem:[%s2 + $0x1d4] sm:$0xf]
  %v148 = vld [vmem:[%s2 + $0x1d8] sm:$0xf]
  %v149 = vld [vmem:[%s2 + $0x1dc] sm:$0xf]
  %v150 = vld [vmem:[%s2 + $0x1e0] sm:$0xf]
  %v151 = vld [vmem:[%s2 + $0x1e4] sm:$0xf]
  %v152 = vld [vmem:[%s2 + $0x1e8] sm:$0xf]
  %v153 = vld [vmem:[%s2 + $0x1ec] sm:$0xf]
  %v154 = vld [vmem:[%s2 + $0x1f0] sm:$0xf]
  %v155 = vld [vmem:[%s2 + $0x1f4] sm:$0xf]
  %v156 = vld [vmem:[%s2 + $0x1f8] sm:$0xf]
  %v157 = vld [vmem:[%s2 + $0x1fc] sm:$0xf]
  %v158 = vld [vmem:[%s2 + $0x200] sm:$0xf]
  %v159 = vld [vmem:[%s2 + $0x204] sm:$0xf]
  %v160 = vld [vmem:[%s2 + $0x208] sm:$0xf]
  %v161 = vld [vmem:[%s2 + $0x20c] sm:$0xf]
  %v162 = vld [vmem:[%s2 + $0x210] sm:$0xf]
  %v163 = vld [vmem:[%s2 + $0x214] sm:$0xf]
  %v164 = vld [vmem:[%s2 + $0x218] sm:$0xf]
  %v165 = vld [vmem:[%s2 + $0x21c] sm:$0xf]
  %v166 = vld [vmem:[%s2 + $0x220] sm:$0xf]
  %v167 = vld [vmem:[%s2 + $0x224] sm:$0xf]
  %v168 = vld [vmem:[%s2 + $0x228] sm:$0xf]
  %v169 = vld [vmem:[%s2 + $0x22c] sm:$0xf]
  %v170 = vld [vmem:[%s2 + $0x230] sm:$0xf]
  %v171 = vld [vmem:[%s2 + $0x234] sm:$0xf]
  %v172 = vld [vmem:[%s2 + $0x238] sm:$0xf]
  %v173 = vld [vmem:[%s2 + $0x23c] sm:$0xf]
  %v174 = vld [vmem:[%s2 + $0x240] sm:$0xf]
  %v175 = vld [vmem:[%s2 + $0x244] sm:$0xf]
  %v176 = vld [vmem:[%s2 + $0x248] sm:$0xf]
  %v177 = vld [vmem:[%s2 + $0x24c] sm:$0xf]
  %v178 = vld [vmem:[%s2 + $0x250] sm:$0xf]
  %v179 = vld [vmem:[%s2 + $0x254] sm:$0xf]
  %v180 = vld [vmem:[%s2 + $0x258] sm:$0xf]
  %v181 = vld [vmem:[%s2 + $0x25c] sm:$0xf]
  %v182 = vld [vmem:[%s2 + $0x260] sm:$0xf]
  %v183 = vld [vmem:[%s2 + $0x264] sm:$0xf]
  %v184 = vld [vmem:[%s2 + $0x268] sm:$0xf]
  %v185 = vld [vmem:[%s2 + $0x26c] sm:$0xf]
  %v186 = vld [vmem:[%s2 + $0x270] sm:$0xf]
  %v187 = vld [vmem:[%s2 + $0x274] sm:$0xf]
  %v188 = vld [vmem:[%s2 + $0x278] sm:$0xf]
  %v189 = vld [vmem:[%s2 + $0x27c] sm:$0xf]
  %v190 = vld [vmem:[%s2 + $0x280] sm:$0xf]
  %v191 = vld [vmem:[%s2 + $0x284] sm:$0xf]
  %v192 = vld [vmem:[%s2 + $0x288] sm:$0xf]
  %v193 = vld [vmem:[%s2 + $0x28c] sm:$0xf]
  %v194 = vld [vmem:[%s2 + $0x290] sm:$0xf]
  %v195 = vld [vmem:[%s2 + $0x294] sm:$0xf]
  %v196 = vld [vmem:[%s2 + $0x298] sm:$0xf]
  %v197 = vld [vmem:[%s2 + $0x29c] sm:$0xf]
  %v198 = vld [vmem:[%s2 + $0x2a0] sm:$0xf]
  %v199 = vld [vmem:[%s2 + $0x2a4] sm:$0xf]
  %v200 = vld [vmem:[%s2 + $0x2a8] sm:$0xf]
  %v201 = vld [vmem:[%s2 + $0x2ac] sm:$0xf]
  %v202 = vld [vmem:[%s2 + $0x2b0] sm:$0xf]
  %v203 = vld [vmem:[%s2 + $0x2b4] sm:$0xf]
  %v204 = vld [vmem:[%s2 + $0x2b8] sm:$0xf]
  %v205 = vld [vmem:[%s2 + $0x2bc] sm:$0xf]
  %v206 = vld [vmem:[%s2 + $0x2c0] sm:$0xf]
  %v207 = vld [vmem:[%s2 + $0x2c4] sm:$0xf]
  %v208 = vld [vmem:[%s2 + $0x2c8] sm:$0xf]
  %v209 = vld [vmem:[%s2 + $0x2cc] sm:$0xf]
  %v210 = vld [vmem:[%s2 + $0x2d0] sm:$0xf]
  %v211 = vld [vmem:[%s2 + $0x2d4] sm:$0xf]
  %v212 = vld [vmem:[%s2 + $0x2d8] sm:$0xf]
  %v213 = vld [vmem:[%s2 + $0x2dc] sm:$0xf]
  %v214 = vld [vmem:[%s2 + $0x2e0] sm:$0xf]
  %v215 = vld [vmem:[%s2 + $0x2e4] sm:$0xf]
  %v216 = vld [vmem:[%s2 + $0x2e8] sm:$0xf]
  %v217 = vld [vmem:[%s2 + $0x2ec] sm:$0xf]
  %v218 = vld [vmem:[%s2 + $0x2f0] sm:$0xf]
  %v219 = vld [vmem:[%s2 + $0x2f4] sm:$0xf]
  %v220 = vld [vmem:[%s2 + $0x2f8] sm:$0xf]
  %v221 = vld [vmem:[%s2 + $0x2fc] sm:$0xf]
  %v222 = vld [vmem:[%s2 + $0x300] sm:$0xf]
  %v223 = vld [vmem:[%s2 + $0x304] sm:$0xf]
  %v224 = vld [vmem:[%s2 + $0x308] sm:$0xf]
  %v225 = vld [vmem:[%s2 + $0x30c] sm:$0xf]
  %v226 = vld [vmem:[%s2 + $0x310] sm:$0xf]
  %v227 = vld [vmem:[%s2 + $0x314] sm:$0xf]
  %v228 = vld [vmem:[%s2 + $0x318] sm:$0xf]
  %v229 = vld [vmem:[%s2 + $0x31c] sm:$0xf]
  %v230 = vld [vmem:[%s2 + $0x320] sm:$0xf]
  %v231 = vld [vmem:[%s2 + $0x324] sm:$0xf]
  %v232 = vld [vmem:[%s2 + $0x328] sm:$0xf]
  %v233 = vld [vmem:[%s2 + $0x32c] sm:$0xf]
  %v234 = vld [vmem:[%s2 + $0x330] sm:$0xf]
  %v235 = vld [vmem:[%s2 + $0x334] sm:$0xf]
  %v236 = vld [vmem:[%s2 + $0x338] sm:$0xf]
  %v237 = vld [vmem:[%s2 + $0x33c] sm:$0xf]
  %v238 = vld [vmem:[%s2 + $0x340] sm:$0xf]
  %v239 = vld [vmem:[%s2 + $0x344] sm:$0xf]
  %v240 = vld [vmem:[%s2 + $0x348] sm:$0xf]
  %v241 = vld [vmem:[%s2 + $0x34c] sm:$0xf]
  %v242 = vld [vmem:[%s2 + $0x350] sm:$0xf]
  %v243 = vld [vmem:[%s2 + $0x354] sm:$0xf]
  %v244 = vld [vmem:[%s2 + $0x358] sm:$0xf]
  %v245 = vld [vmem:[%s2 + $0x35c] sm:$0xf]
  %v246 = vld [vmem:[%s2 + $0x360] sm:$0xf]
  %v247 = vld [vmem:[%s2 + $0x364] sm:$0xf]
  %v248 = vld [vmem:[%s2 + $0x368] sm:$0xf]
  %v249 = vld [vmem:[%s2 + $0x36c] sm:$0xf]
  %v250 = vld [vmem:[%s2 + $0x370] sm:$0xf]
  %v251 = vld [vmem:[%s2 + $0x374] sm:$0xf]
  %v252 = vld [vmem:[%s2 + $0x378] sm:$0xf]
  %v253 = vld [vmem:[%s2 + $0x37c] sm:$0xf]
  %v254 = vld [vmem:[%s2 + $0x380] sm:$0xf]
  %v255 = vld [vmem:[%s2 + $0x384] sm:$0xf]
  %v256 = vld [vmem:[%s2 + $0x388] sm:$0xf]
  %v257 = vld [vmem:[%s2 + $0x38c] sm:$0xf]
  %v258 = vld [vmem:[%s2 + $0x390] sm:$0xf]
  %v259 = vld [vmem:[%s2 + $0x394] sm:$0xf]
  %v260 = vld [vmem:[%s2 + $0x398] sm:$0xf]
  %v261 = vld [vmem:[%s2 + $0x39c] sm:$0xf]
  %v262 = vld [vmem:[%s2 + $0x3a0] sm:$0xf]
  %v263 = vld [vmem:[%s2 + $0x3a4] sm:$0xf]
  %v264 = vld [vmem:[%s2 + $0x3a8] sm:$0xf]
  %v265 = vld [vmem:[%s2 + $0x3ac] sm:$0xf]
  %v266 = vld [vmem:[%s2 + $0x3b0] sm:$0xf]
  %v267 = vld [vmem:[%s2 + $0x3b4] sm:$0xf]
  %v268 = vld [vmem:[%s2 + $0x3b8] sm:$0xf]
  %v269 = vld [vmem:[%s2 + $0x3bc] sm:$0xf]
  %v270 = vld [vmem:[%s2 + $0x3c0] sm:$0xf]
  %v271 = vld [vmem:[%s2 + $0x3c4] sm:$0xf]
  %v272 = vld [vmem:[%s2 + $0x3c8] sm:$0xf]
  %v273 = vld [vmem:[%s2 + $0x3cc] sm:$0xf]
  %v274 = vld [vmem:[%s2 + $0x3d0] sm:$0xf]
  %v275 = vld [vmem:[%s2 + $0x3d4] sm:$0xf]
  %v276 = vld [vmem:[%s2 + $0x3d8] sm:$0xf]
  %v277 = vld [vmem:[%s2 + $0x3dc] sm:$0xf]
  %v278 = vld [vmem:[%s2 + $0x3e0] sm:$0xf]
  %v279 = vld [vmem:[%s2 + $0x3e4] sm:$0xf]
  %v280 = vld [vmem:[%s2 + $0x3e8] sm:$0xf]
  %v281 = vld [vmem:[%s2 + $0x3ec] sm:$0xf]
  %v282 = vld [vmem:[%s2 + $0x3f0] sm:$0xf]
  %v283 = vld [vmem:[%s2 + $0x3f4] sm:$0xf]
  %v284 = vld [vmem:[%s2 + $0x3f8] sm:$0xf]
  %v285 = vld [vmem:[%s2 + $0x3fc] sm:$0xf]
  %v286 = vld [vmem:[%s2 + $0x400] sm:$0xf]
  %v287 = vld [vmem:[%s2 + $0x404] sm:$0xf]
  %v288 = vld [vmem:[%s2 + $0x408] sm:$0xf]
  %v289 = vld [vmem:[%s2 + $0x40c] sm:$0xf]
  %v290 = vld [vmem:[%s2 + $0x410] sm:$0xf]
  %v291 = vld [vmem:[%s2 + $0x414] sm:$0xf]
  %v292 = vld [vmem:[%s2 + $0x418] sm:$0xf]
  %v293 = vld [vmem:[%s2 + $0x41c] sm:$0xf]
  %v294 = vld [vmem:[%s2 + $0x420] sm:$0xf]
  %v295 = vld [vmem:[%s2 + $0x424] sm:$0xf]
  %v296 = vld [vmem:[%s2 + $0x428] sm:$0xf]
  %v297 = vld [vmem:[%s2 + $0x42c] sm:$0xf]
  %v298 = vld [vmem:[%s2 + $0x430] sm:$0xf]
  %v299 = vld [vmem:[%s2 + $0x434] sm:$0xf]
  %v300 = vld [vmem:[%s2 + $0x438] sm:$0xf]
  %v301 = vld [vmem:[%s2 + $0x43c] sm:$0xf]
  %v302 = vld [vmem:[%s2 + $0x440] sm:$0xf]
  %v303 = vld [vmem:[%s2 + $0x444] sm:$0xf]
  %v304 = vld [vmem:[%s2 + $0x448] sm:$0xf]
  %v305 = vld [vmem:[%s2 + $0x44c] sm:$0xf]
  %v306 = vld [vmem:[%s2 + $0x450] sm:$0xf]
  %v307 = vld [vmem:[%s2 + $0x454] sm:$0xf]
  %v308 = vld [vmem:[%s2 + $0x458] sm:$0xf]
  %v309 = vld [vmem:[%s2 + $0x45c] sm:$0xf]
  %v310 = vld [vmem:[%s2 + $0x460] sm:$0xf]
  %v311 = vld [vmem:[%s2 + $0x464] sm:$0xf]
  %v312 = vld [vmem:[%s2 + $0x468] sm:$0xf]
  %v313 = vld [vmem:[%s2 + $0x46c] sm:$0xf]
  %v314 = vld [vmem:[%s2 + $0x470] sm:$0xf]
  %v315 = vld [vmem:[%s2 + $0x474] sm:$0xf]
  %v316 = vld [vmem:[%s2 + $0x478] sm:$0xf]
  %v317 = vld [vmem:[%s2 + $0x47c] sm:$0xf]
  %v318 = vld [vmem:[%s2 + $0x480] sm:$0xf]
  %v319 = vld [vmem:[%s2 + $0x484] sm:$0xf]
  %v320 = vld [vmem:[%s2 + $0x488] sm:$0xf]
  %v321 = vld [vmem:[%s2 + $0x48c] sm:$0xf]
  %v322 = vld [vmem:[%s2 + $0x490] sm:$0xf]
  %v323 = vld [vmem:[%s2 + $0x494] sm:$0xf]
  %v324 = vld [vmem:[%s2 + $0x498] sm:$0xf]
  %v325 = vld [vmem:[%s2 + $0x49c] sm:$0xf]
  %v326 = vld [vmem:[%s2 + $0x4a0] sm:$0xf]
  %v327 = vld [vmem:[%s2 + $0x4a4] sm:$0xf]
  %v328 = vld [vmem:[%s2 + $0x4a8] sm:$0xf]
  %v329 = vld [vmem:[%s2 + $0x4ac] sm:$0xf]
  %v330 = vld [vmem:[%s2 + $0x4b0] sm:$0xf]
  %v331 = vld [vmem:[%s2 + $0x4b4] sm:$0xf]
  %v332 = vld [vmem:[%s2 + $0x4b8] sm:$0xf]
  %v333 = vld [vmem:[%s2 + $0x4bc] sm:$0xf]
  %v334 = vld [vmem:[%s2 + $0x4c0] sm:$0xf]
  %v335 = vld [vmem:[%s2 + $0x4c4] sm:$0xf]
  %v336 = vld [vmem:[%s2 + $0x4c8] sm:$0xf]
  %v337 = vld [vmem:[%s2 + $0x4cc] sm:$0xf]
  %v338 = vld [vmem:[%s2 + $0x4d0] sm:$0xf]
  %v339 = vld [vmem:[%s2 + $0x4d4] sm:$0xf]
  %v340 = vld [vmem:[%s2 + $0x4d8] sm:$0xf]
  %v341 = vld [vmem:[%s2 + $0x4dc] sm:$0xf]
  %v342 = vld [vmem:[%s2 + $0x4e0] sm:$0xf]
  %v343 = vld [vmem:[%s2 + $0x4e4] sm:$0xf]
  %v344 = vld [vmem:[%s2 + $0x4e8] sm:$0xf]
  %v345 = vld [vmem:[%s2 + $0x4ec] sm:$0xf]
  %v346 = vld [vmem:[%s2 + $0x4f0] sm:$0xf]
  %v347 = vld [vmem:[%s2 + $0x4f4] sm:$0xf]
  %v348 = vld [vmem:[%s2 + $0x4f8] sm:$0xf]
  %v349 = vld [vmem:[%s2 + $0x4fc] sm:$0xf]
  %v350 = vld [vmem:[%s2 + $0x500] sm:$0xf]
  %v351 = vld [vmem:[%s2 + $0x504] sm:$0xf]
  %v352 = vld [vmem:[%s2 + $0x508] sm:$0xf]
  %v353 = vld [vmem:[%s2 + $0x50c] sm:$0xf]
  %v354 = vld [vmem:[%s2 + $0x510] sm:$0xf]
  %v355 = vld [vmem:[%s2 + $0x514] sm:$0xf]
  %v356 = vld [vmem:[%s2 + $0x518] sm:$0xf]
  %v357 = vld [vmem:[%s2 + $0x51c] sm:$0xf]
  %v358 = vld [vmem:[%s2 + $0x520] sm:$0xf]
  %v359 = vld [vmem:[%s2 + $0x524] sm:$0xf]
  %v360 = vld [vmem:[%s2 + $0x528] sm:$0xf]
  %v361 = vld [vmem:[%s2 + $0x52c] sm:$0xf]
  %v362 = vld [vmem:[%s2 + $0x530] sm:$0xf]
  %v363 = vld [vmem:[%s2 + $0x534] sm:$0xf]
  %v364 = vld [vmem:[%s2 + $0x538] sm:$0xf]
  %v365 = vld [vmem:[%s2 + $0x53c] sm:$0xf]
  %v366 = vld [vmem:[%s2 + $0x540] sm:$0xf]
  %v367 = vld [vmem:[%s2 + $0x544] sm:$0xf]
  %v368 = vld [vmem:[%s2 + $0x548] sm:$0xf]
  %v369 = vld [vmem:[%s2 + $0x54c] sm:$0xf]
  %v370 = vld [vmem:[%s2 + $0x550] sm:$0xf]
  %v371 = vld [vmem:[%s2 + $0x554] sm:$0xf]
  %v372 = vld [vmem:[%s2 + $0x558] sm:$0xf]
  %v373 = vld [vmem:[%s2 + $0x55c] sm:$0xf]
  %v374 = vld [vmem:[%s2 + $0x560] sm:$0xf]
  %v375 = vld [vmem:[%s2 + $0x564] sm:$0xf]
  %v376 = vld [vmem:[%s2 + $0x568] sm:$0xf]
  %v377 = vld [vmem:[%s2 + $0x56c] sm:$0xf]
  %v378 = vld [vmem:[%s2 + $0x570] sm:$0xf]
  %v379 = vld [vmem:[%s2 + $0x574] sm:$0xf]
  %v380 = vld [vmem:[%s2 + $0x578] sm:$0xf]
  %v381 = vld [vmem:[%s2 + $0x57c] sm:$0xf]
  %v382 = vld [vmem:[%s2 + $0x580] sm:$0xf]
  %v383 = vld [vmem:[%s2 + $0x584] sm:$0xf]
  %v384 = vld [vmem:[%s2 + $0x588] sm:$0xf]
  %v385 = vld [vmem:[%s2 + $0x58c] sm:$0xf]
  %v386 = vld [vmem:[%s2 + $0x590] sm:$0xf]
  %v387 = vld [vmem:[%s2 + $0x594] sm:$0xf]
  %v388 = vld [vmem:[%s2 + $0x598] sm:$0xf]
  %v389 = vld [vmem:[%s2 + $0x59c] sm:$0xf]
  %v390 = vld [vmem:[%s2 + $0x5a0] sm:$0xf]
  %v391 = vld [vmem:[%s2 + $0x5a4] sm:$0xf]
  %v392 = vld [vmem:[%s2 + $0x5a8] sm:$0xf]
  %v393 = vld [vmem:[%s2 + $0x5ac] sm:$0xf]
  %v394 = vld [vmem:[%s2 + $0x5b0] sm:$0xf]
  %v395 = vld [vmem:[%s2 + $0x5b4] sm:$0xf]
  %v396 = vld [vmem:[%s2 + $0x5b8] sm:$0xf]
  %v397 = vld [vmem:[%s2 + $0x5bc] sm:$0xf]
  %v398 = vld [vmem:[%s2 + $0x5c0] sm:$0xf]
  %v399 = vld [vmem:[%s2 + $0x5c4] sm:$0xf]
  %v400 = vld [vmem:[%s2 + $0x5c8] sm:$0xf]
  %v401 = vld [vmem:[%s2 + $0x5cc] sm:$0xf]
  %v402 = vld [vmem:[%s2 + $0x5d0] sm:$0xf]
  %v403 = vld [vmem:[%s2 + $0x5d4] sm:$0xf]
  %v404 = vld [vmem:[%s2 + $0x5d8] sm:$0xf]
  %v405 = vld [vmem:[%s2 + $0x5dc] sm:$0xf]
  %v406 = vld [vmem:[%s2 + $0x5e0] sm:$0xf]
  %v407 = vld [vmem:[%s2 + $0x5e4] sm:$0xf]
  %v408 = vld [vmem:[%s2 + $0x5e8] sm:$0xf]
  %v409 = vld [vmem:[%s2 + $0x5ec] sm:$0xf]
  %v410 = vld [vmem:[%s2 + $0x5f0] sm:$0xf]
  %v411 = vld [vmem:[%s2 + $0x5f4] sm:$0xf]
  %v412 = vld [vmem:[%s2 + $0x5f8] sm:$0xf]
  %v413 = vld [vmem:[%s2 + $0x5fc] sm:$0xf]
  %v414 = vld [vmem:[%s2 + $0x600] sm:$0xf]
  %v415 = vld [vmem:[%s2 + $0x604] sm:$0xf]
  %v416 = vld [vmem:[%s2 + $0x608] sm:$0xf]
  %v417 = vld [vmem:[%s2 + $0x60c] sm:$0xf]
  %v418 = vld [vmem:[%s2 + $0x610] sm:$0xf]
  %v419 = vld [vmem:[%s2 + $0x614] sm:$0xf]
  %v420 = vld [vmem:[%s2 + $0x618] sm:$0xf]
  %v421 = vld [vmem:[%s2 + $0x61c] sm:$0xf]
  %v422 = vld [vmem:[%s2 + $0x620] sm:$0xf]
  %v423 = vld [vmem:[%s2 + $0x624] sm:$0xf]
  %v424 = vld [vmem:[%s2 + $0x628] sm:$0xf]
  %v425 = vld [vmem:[%s2 + $0x62c] sm:$0xf]
  %v426 = vld [vmem:[%s2 + $0x630] sm:$0xf]
  %v427 = vld [vmem:[%s2 + $0x634] sm:$0xf]
  %v428 = vld [vmem:[%s2 + $0x638] sm:$0xf]
  %v429 = vld [vmem:[%s2 + $0x63c] sm:$0xf]
  %v430 = vld [vmem:[%s2 + $0x640] sm:$0xf]
  %v431 = vld [vmem:[%s2 + $0x644] sm:$0xf]
  %v432 = vld [vmem:[%s2 + $0x648] sm:$0xf]
  %v433 = vld [vmem:[%s2 + $0x64c] sm:$0xf]
  %v434 = vld [vmem:[%s2 + $0x650] sm:$0xf]
  %v435 = vld [vmem:[%s2 + $0x654] sm:$0xf]
  %v436 = vld [vmem:[%s2 + $0x658] sm:$0xf]
  %v437 = vld [vmem:[%s2 + $0x65c] sm:$0xf]
  %v438 = vld [vmem:[%s2 + $0x660] sm:$0xf]
  %v439 = vld [vmem:[%s2 + $0x664] sm:$0xf]
  %v440 = vld [vmem:[%s2 + $0x668] sm:$0xf]
  %v441 = vld [vmem:[%s2 + $0x66c] sm:$0xf]
  %v442 = vld [vmem:[%s2 + $0x670] sm:$0xf]
  %v443 = vld [vmem:[%s2 + $0x674] sm:$0xf]
  %v444 = vld [vmem:[%s2 + $0x678] sm:$0xf]
  %v445 = vld [vmem:[%s2 + $0x67c] sm:$0xf]
  %v446 = vld [vmem:[%s2 + $0x680] sm:$0xf]
  %v447 = vld [vmem:[%s2 + $0x684] sm:$0xf]
  %v448 = vld [vmem:[%s2 + $0x688] sm:$0xf]
  %v449 = vld [vmem:[%s2 + $0x68c] sm:$0xf]
  %v450 = vld [vmem:[%s2 + $0x690] sm:$0xf]
  %v451 = vld [vmem:[%s2 + $0x694] sm:$0xf]
  %v452 = vld [vmem:[%s2 + $0x698] sm:$0xf]
  %v453 = vld [vmem:[%s2 + $0x69c] sm:$0xf]
  %v454 = vld [vmem:[%s2 + $0x6a0] sm:$0xf]
  %v455 = vld [vmem:[%s2 + $0x6a4] sm:$0xf]
  %v456 = vld [vmem:[%s2 + $0x6a8] sm:$0xf]
  %v457 = vld [vmem:[%s2 + $0x6ac] sm:$0xf]
  %v458 = vld [vmem:[%s2 + $0x6b0] sm:$0xf]
  %v459 = vld [vmem:[%s2 + $0x6b4] sm:$0xf]
  %v460 = vld [vmem:[%s2 + $0x6b8] sm:$0xf]
  %v461 = vld [vmem:[%s2 + $0x6bc] sm:$0xf]
  %v462 = vld [vmem:[%s2 + $0x6c0] sm:$0xf]
  %v463 = vld [vmem:[%s2 + $0x6c4] sm:$0xf]
  %v464 = vld [vmem:[%s2 + $0x6c8] sm:$0xf]
  %v465 = vld [vmem:[%s2 + $0x6cc] sm:$0xf]
  %v466 = vld [vmem:[%s2 + $0x6d0] sm:$0xf]
  %v467 = vld [vmem:[%s2 + $0x6d4] sm:$0xf]
  %v468 = vld [vmem:[%s2 + $0x6d8] sm:$0xf]
  %v469 = vld [vmem:[%s2 + $0x6dc] sm:$0xf]
  %v470 = vld [vmem:[%s2 + $0x6e0] sm:$0xf]
  %v471 = vld [vmem:[%s2 + $0x6e4] sm:$0xf]
  %v472 = vld [vmem:[%s2 + $0x6e8] sm:$0xf]
  %v473 = vld [vmem:[%s2 + $0x6ec] sm:$0xf]
  %v474 = vld [vmem:[%s2 + $0x6f0] sm:$0xf]
  %v475 = vld [vmem:[%s2 + $0x6f4] sm:$0xf]
  %v476 = vld [vmem:[%s2 + $0x6f8] sm:$0xf]
  %v477 = vld [vmem:[%s2 + $0x6fc] sm:$0xf]
  %v478 = vld [vmem:[%s2 + $0x700] sm:$0xf]
  %v479 = vld [vmem:[%s2 + $0x704] sm:$0xf]
  %v480 = vld [vmem:[%s2 + $0x708] sm:$0xf]
  %v481 = vld [vmem:[%s2 + $0x70c] sm:$0xf]
  %v482 = vld [vmem:[%s2 + $0x710] sm:$0xf]
  %v483 = vld [vmem:[%s2 + $0x714] sm:$0xf]
  %v484 = vld [vmem:[%s2 + $0x718] sm:$0xf]
  %v485 = vld [vmem:[%s2 + $0x71c] sm:$0xf]
  %v486 = vld [vmem:[%s2 + $0x720] sm:$0xf]
  %v487 = vld [vmem:[%s2 + $0x724] sm:$0xf]
  %v488 = vld [vmem:[%s2 + $0x728] sm:$0xf]
  %v489 = vld [vmem:[%s2 + $0x72c] sm:$0xf]
  %v490 = vld [vmem:[%s2 + $0x730] sm:$0xf]
  %v491 = vld [vmem:[%s2 + $0x734] sm:$0xf]
  %v492 = vld [vmem:[%s2 + $0x738] sm:$0xf]
  %v493 = vld [vmem:[%s2 + $0x73c] sm:$0xf]
  %v494 = vld [vmem:[%s2 + $0x740] sm:$0xf]
  %v495 = vld [vmem:[%s2 + $0x744] sm:$0xf]
  %v496 = vld [vmem:[%s2 + $0x748] sm:$0xf]
  %v497 = vld [vmem:[%s2 + $0x74c] sm:$0xf]
  %v498 = vld [vmem:[%s2 + $0x750] sm:$0xf]
  %v499 = vld [vmem:[%s2 + $0x754] sm:$0xf]
  %v500 = vld [vmem:[%s2 + $0x758] sm:$0xf]
  %v501 = vld [vmem:[%s2 + $0x75c] sm:$0xf]
  %v502 = vld [vmem:[%s2 + $0x760] sm:$0xf]
  %v503 = vld [vmem:[%s2 + $0x764] sm:$0xf]
  %v504 = vld [vmem:[%s2 + $0x768] sm:$0xf]
  %v505 = vld [vmem:[%s2 + $0x76c] sm:$0xf]
  %v506 = vld [vmem:[%s2 + $0x770] sm:$0xf]
  %v507 = vld [vmem:[%s2 + $0x774] sm:$0xf]
  %v508 = vld [vmem:[%s2 + $0x778] sm:$0xf]
  %v509 = vld [vmem:[%s2 + $0x77c] sm:$0xf]
  %v510 = vld [vmem:[%s2 + $0x780] sm:$0xf]
  %v511 = vld [vmem:[%s2 + $0x784] sm:$0xf]
  %v512 = vld [vmem:[%s2 + $0x788] sm:$0xf]
  %v513 = vld [vmem:[%s2 + $0x78c] sm:$0xf]
  %v514 = vld [vmem:[%s2 + $0x790] sm:$0xf]
  %v515 = vld [vmem:[%s2 + $0x794] sm:$0xf]
  %v516 = vld [vmem:[%s2 + $0x798] sm:$0xf]
  %v517 = vld [vmem:[%s2 + $0x79c] sm:$0xf]
  %v518 = vld [vmem:[%s2 + $0x7a0] sm:$0xf]
  %v519 = vld [vmem:[%s2 + $0x7a4] sm:$0xf]
  %v520 = vld [vmem:[%s2 + $0x7a8] sm:$0xf]
  %v521 = vld [vmem:[%s2 + $0x7ac] sm:$0xf]
  %v522 = vld [vmem:[%s2 + $0x7b0] sm:$0xf]
  %v523 = vld [vmem:[%s2 + $0x7b4] sm:$0xf]
  %v524 = vld [vmem:[%s2 + $0x7b8] sm:$0xf]
  %v525 = vld [vmem:[%s2 + $0x7bc] sm:$0xf]
  %v526 = vld [vmem:[%s2 + $0x7c0] sm:$0xf]
  %v527 = vld [vmem:[%s2 + $0x7c4] sm:$0xf]
  %v528 = vld [vmem:[%s2 + $0x7c8] sm:$0xf]
  %v529 = vld [vmem:[%s2 + $0x7cc] sm:$0xf]
  %v530 = vld [vmem:[%s2 + $0x7d0] sm:$0xf]
  %v531 = vld [vmem:[%s2 + $0x7d4] sm:$0xf]
  %v532 = vld [vmem:[%s2 + $0x7d8] sm:$0xf]
  %v533 = vld [vmem:[%s2 + $0x7dc] sm:$0xf]
  %v534 = vld [vmem:[%s2 + $0x7e0] sm:$0xf]
  %v535 = vld [vmem:[%s2 + $0x7e4] sm:$0xf]
  %v536 = vld [vmem:[%s2 + $0x7e8] sm:$0xf]
  %v537 = vld [vmem:[%s2 + $0x7ec] sm:$0xf]
  %v538 = vld [vmem:[%s2 + $0x7f0] sm:$0xf]
  %v539 = vld [vmem:[%s2 + $0x7f4] sm:$0xf]
  %v540 = vld [vmem:[%s2 + $0x7f8] sm:$0xf]
  %v541 = vld [vmem:[%s2 + $0x7fc] sm:$0xf]
  %v542 = vld [vmem:[%s2 + $0x800] sm:$0xf]
  %v543 = vld [vmem:[%s2 + $0x804] sm:$0xf]
  %v544 = vld [vmem:[%s2 + $0x808] sm:$0xf]
  %v545 = vld [vmem:[%s2 + $0x80c] sm:$0xf]
  %v546 = vld [vmem:[%s2 + $0x810] sm:$0xf]
  %v547 = vld [vmem:[%s2 + $0x814] sm:$0xf]
  %v548 = vld [vmem:[%s2 + $0x818] sm:$0xf]
  %v549 = vld [vmem:[%s2 + $0x81c] sm:$0xf]
  %v550 = vld [vmem:[%s2 + $0x820] sm:$0xf]
  %v551 = vld [vmem:[%s2 + $0x824] sm:$0xf]
  %v552 = vld [vmem:[%s2 + $0x828] sm:$0xf]
  %v553 = vld [vmem:[%s2 + $0x82c] sm:$0xf]
  %v554 = vld [vmem:[%s2 + $0x830] sm:$0xf]
  %v555 = vld [vmem:[%s2 + $0x834] sm:$0xf]
  %v556 = vld [vmem:[%s2 + $0x838] sm:$0xf]
  %v557 = vld [vmem:[%s2 + $0x83c] sm:$0xf]
  %v558 = vld [vmem:[%s2 + $0x840] sm:$0xf]
  %v559 = vld [vmem:[%s2 + $0x844] sm:$0xf]
  %v560 = vld [vmem:[%s2 + $0x848] sm:$0xf]
  %v561 = vld [vmem:[%s2 + $0x84c] sm:$0xf]
  %v562 = vld [vmem:[%s2 + $0x850] sm:$0xf]
  %v563 = vld [vmem:[%s2 + $0x854] sm:$0xf]
  %v564 = vld [vmem:[%s2 + $0x858] sm:$0xf]
  %v565 = vld [vmem:[%s2 + $0x85c] sm:$0xf]
  %v566 = vld [vmem:[%s2 + $0x860] sm:$0xf]
  %v567 = vld [vmem:[%s2 + $0x864] sm:$0xf]
  %v568 = vld [vmem:[%s2 + $0x868] sm:$0xf]
  %v569 = vld [vmem:[%s2 + $0x86c] sm:$0xf]
  %v570 = vld [vmem:[%s2 + $0x870] sm:$0xf]
  %v571 = vld [vmem:[%s2 + $0x874] sm:$0xf]
  %v572 = vld [vmem:[%s2 + $0x878] sm:$0xf]
  %v573 = vld [vmem:[%s2 + $0x87c] sm:$0xf]
  %v574 = vld [vmem:[%s2 + $0x880] sm:$0xf]
  %v575 = vld [vmem:[%s2 + $0x884] sm:$0xf]
  %v576 = vld [vmem:[%s2 + $0x888] sm:$0xf]
  %v577 = vld [vmem:[%s2 + $0x88c] sm:$0xf]
  %v578 = vld [vmem:[%s2 + $0x890] sm:$0xf]
  %v579 = vld [vmem:[%s2 + $0x894] sm:$0xf]
  %v580 = vld [vmem:[%s2 + $0x898] sm:$0xf]
  %v581 = vld [vmem:[%s2 + $0x89c] sm:$0xf]
  %v582 = vld [vmem:[%s2 + $0x8a0] sm:$0xf]
  %v583 = vld [vmem:[%s2 + $0x8a4] sm:$0xf]
  %v584 = vld [vmem:[%s2 + $0x8a8] sm:$0xf]
  %v585 = vld [vmem:[%s2 + $0x8ac] sm:$0xf]
  %v586 = vld [vmem:[%s2 + $0x8b0] sm:$0xf]
  %v587 = vld [vmem:[%s2 + $0x8b4] sm:$0xf]
  %v588 = vld [vmem:[%s2 + $0x8b8] sm:$0xf]
  %v589 = vld [vmem:[%s2 + $0x8bc] sm:$0xf]
  %v590 = vld [vmem:[%s2 + $0x8c0] sm:$0xf]
  %v591 = vld [vmem:[%s2 + $0x8c4] sm:$0xf]
  %v592 = vld [vmem:[%s2 + $0x8c8] sm:$0xf]
  %v593 = vld [vmem:[%s2 + $0x8cc] sm:$0xf]
  %v594 = vld [vmem:[%s2 + $0x8d0] sm:$0xf]
  %v595 = vld [vmem:[%s2 + $0x8d4] sm:$0xf]
  %v596 = vld [vmem:[%s2 + $0x8d8] sm:$0xf]
  %v597 = vld [vmem:[%s2 + $0x8dc] sm:$0xf]
  %v598 = vld [vmem:[%s2 + $0x8e0] sm:$0xf]
  %v599 = vld [vmem:[%s2 + $0x8e4] sm:$0xf]
  %v600 = vld [vmem:[%s2 + $0x8e8] sm:$0xf]
  %v601 = vld [vmem:[%s2 + $0x8ec] sm:$0xf]
  %v602 = vld [vmem:[%s2 + $0x8f0] sm:$0xf]
  %v603 = vld [vmem:[%s2 + $0x8f4] sm:$0xf]
  %v604 = vld [vmem:[%s2 + $0x8f8] sm:$0xf]
  %v605 = vld [vmem:[%s2 + $0x8fc] sm:$0xf]
  %v606 = vld [vmem:[%s2 + $0x900] sm:$0xf]
  %v607 = vld [vmem:[%s2 + $0x904] sm:$0xf]
  %v608 = vld [vmem:[%s2 + $0x908] sm:$0xf]
  %v609 = vld [vmem:[%s2 + $0x90c] sm:$0xf]
  %v610 = vld [vmem:[%s2 + $0x910] sm:$0xf]
  %v611 = vld [vmem:[%s2 + $0x914] sm:$0xf]
  %v612 = vld [vmem:[%s2 + $0x918] sm:$0xf]
  %v613 = vld [vmem:[%s2 + $0x91c] sm:$0xf]
  %v614 = vld [vmem:[%s2 + $0x920] sm:$0xf]
  %v615 = vld [vmem:[%s2 + $0x924] sm:$0xf]
  %v616 = vld [vmem:[%s2 + $0x928] sm:$0xf]
  %v617 = vld [vmem:[%s2 + $0x92c] sm:$0xf]
  %v618 = vld [vmem:[%s2 + $0x930] sm:$0xf]
  %v619 = vld [vmem:[%s2 + $0x934] sm:$0xf]
  %v620 = vld [vmem:[%s2 + $0x938] sm:$0xf]
  %v621 = vld [vmem:[%s2 + $0x93c] sm:$0xf]
  %v622 = vld [vmem:[%s2 + $0x940] sm:$0xf]
  %v623 = vld [vmem:[%s2 + $0x944] sm:$0xf]
  %v624 = vld [vmem:[%s2 + $0x948] sm:$0xf]
  %v625 = vld [vmem:[%s2 + $0x94c] sm:$0xf]
  %v626 = vld [vmem:[%s2 + $0x950] sm:$0xf]
  %v627 = vld [vmem:[%s2 + $0x954] sm:$0xf]
  %v628 = vld [vmem:[%s2 + $0x958] sm:$0xf]
  %v629 = vld [vmem:[%s2 + $0x95c] sm:$0xf]
  %v630 = vld [vmem:[%s2 + $0x960] sm:$0xf]
  %v631 = vld [vmem:[%s2 + $0x964] sm:$0xf]
  %v632 = vld [vmem:[%s2 + $0x968] sm:$0xf]
  %v633 = vld [vmem:[%s2 + $0x96c] sm:$0xf]
  %v634 = vld [vmem:[%s2 + $0x970] sm:$0xf]
  %v635 = vld [vmem:[%s2 + $0x974] sm:$0xf]
  %v636 = vld [vmem:[%s2 + $0x978] sm:$0xf]
  %v637 = vld [vmem:[%s2 + $0x97c] sm:$0xf]
  %v638 = vld [vmem:[%s2 + $0x980] sm:$0xf]
  %v639 = vld [vmem:[%s2 + $0x984] sm:$0xf]
  %v640 = vld [vmem:[%s2 + $0x988] sm:$0xf]
  %v641 = vld [vmem:[%s2 + $0x98c] sm:$0xf]
  %v642 = vld [vmem:[%s2 + $0x990] sm:$0xf]
  %v643 = vld [vmem:[%s2 + $0x994] sm:$0xf]
  %v644 = vld [vmem:[%s2 + $0x998] sm:$0xf]
  %v645 = vld [vmem:[%s2 + $0x99c] sm:$0xf]
  %v646 = vld [vmem:[%s2 + $0x9a0] sm:$0xf]
  %v647 = vld [vmem:[%s2 + $0x9a4] sm:$0xf]
  %v648 = vld [vmem:[%s2 + $0x9a8] sm:$0xf]
  %v649 = vld [vmem:[%s2 + $0x9ac] sm:$0xf]
  %v650 = vld [vmem:[%s2 + $0x9b0] sm:$0xf]
  %v651 = vld [vmem:[%s2 + $0x9b4] sm:$0xf]
  %v652 = vld [vmem:[%s2 + $0x9b8] sm:$0xf]
  %v653 = vld [vmem:[%s2 + $0x9bc] sm:$0xf]
  %v654 = vld [vmem:[%s2 + $0x9c0] sm:$0xf]
  %v655 = vld [vmem:[%s2 + $0x9c4] sm:$0xf]
  %v656 = vld [vmem:[%s2 + $0x9c8] sm:$0xf]
  %v657 = vld [vmem:[%s2 + $0x9cc] sm:$0xf]
  %v658 = vld [vmem:[%s2 + $0x9d0] sm:$0xf]
  %v659 = vld [vmem:[%s2 + $0x9d4] sm:$0xf]
  %v660 = vld [vmem:[%s2 + $0x9d8] sm:$0xf]
  %v661 = vld [vmem:[%s2 + $0x9dc] sm:$0xf]
  %v662 = vld [vmem:[%s2 + $0x9e0] sm:$0xf]
  %v663 = vld [vmem:[%s2 + $0x9e4] sm:$0xf]
  %v664 = vld [vmem:[%s2 + $0x9e8] sm:$0xf]
  %v665 = vld [vmem:[%s2 + $0x9ec] sm:$0xf]
  %v666 = vld [vmem:[%s2 + $0x9f0] sm:$0xf]
  %v667 = vld [vmem:[%s2 + $0x9f4] sm:$0xf]
  %v668 = vld [vmem:[%s2 + $0x9f8] sm:$0xf]
  %v669 = vld [vmem:[%s2 + $0x9fc] sm:$0xf]
  %v670 = vld [vmem:[%s2 + $0xa00] sm:$0xf]
  %v671 = vld [vmem:[%s2 + $0xa04] sm:$0xf]
  %v672 = vld [vmem:[%s2 + $0xa08] sm:$0xf]
  %v673 = vld [vmem:[%s2 + $0xa0c] sm:$0xf]
  %v674 = vld [vmem:[%s2 + $0xa10] sm:$0xf]
  %v675 = vld [vmem:[%s2 + $0xa14] sm:$0xf]
  %v676 = vld [vmem:[%s2 + $0xa18] sm:$0xf]
  %v677 = vld [vmem:[%s2 + $0xa1c] sm:$0xf]
  %v678 = vld [vmem:[%s2 + $0xa20] sm:$0xf]
  %v679 = vld [vmem:[%s2 + $0xa24] sm:$0xf]
  %v680 = vld [vmem:[%s2 + $0xa28] sm:$0xf]
  %v681 = vld [vmem:[%s2 + $0xa2c] sm:$0xf]
  %v682 = vld [vmem:[%s2 + $0xa30] sm:$0xf]
  %v683 = vld [vmem:[%s2 + $0xa34] sm:$0xf]
  %v684 = vld [vmem:[%s2 + $0xa38] sm:$0xf]
  %v685 = vld [vmem:[%s2 + $0xa3c] sm:$0xf]
  %v686 = vld [vmem:[%s2 + $0xa40] sm:$0xf]
  %v687 = vld [vmem:[%s2 + $0xa44] sm:$0xf]
  %v688 = vld [vmem:[%s2 + $0xa48] sm:$0xf]
  %v689 = vld [vmem:[%s2 + $0xa4c] sm:$0xf]
  %v690 = vld [vmem:[%s2 + $0xa50] sm:$0xf]
  %v691 = vld [vmem:[%s2 + $0xa54] sm:$0xf]
  %v692 = vld [vmem:[%s2 + $0xa58] sm:$0xf]
  %v693 = vld [vmem:[%s2 + $0xa5c] sm:$0xf]
  %v694 = vld [vmem:[%s2 + $0xa60] sm:$0xf]
  %v695 = vld [vmem:[%s2 + $0xa64] sm:$0xf]
  %v696 = vld [vmem:[%s2 + $0xa68] sm:$0xf]
  %v697 = vld [vmem:[%s2 + $0xa6c] sm:$0xf]
  %v698 = vld [vmem:[%s2 + $0xa70] sm:$0xf]
  %v699 = vld [vmem:[%s2 + $0xa74] sm:$0xf]
  %v700 = vld [vmem:[%s2 + $0xa78] sm:$0xf]
  %v701 = vld [vmem:[%s2 + $0xa7c] sm:$0xf]
  %v702 = vld [vmem:[%s2 + $0xa80] sm:$0xf]
  %v703 = vld [vmem:[%s2 + $0xa84] sm:$0xf]
  %v704 = vld [vmem:[%s2 + $0xa88] sm:$0xf]
  %v705 = vld [vmem:[%s2 + $0xa8c] sm:$0xf]
  %v706 = vld [vmem:[%s2 + $0xa90] sm:$0xf]
  %v707 = vld [vmem:[%s2 + $0xa94] sm:$0xf]
  %v708 = vld [vmem:[%s2 + $0xa98] sm:$0xf]
  %v709 = vld [vmem:[%s2 + $0xa9c] sm:$0xf]
  %v710 = vld [vmem:[%s2 + $0xaa0] sm:$0xf]
  %v711 = vld [vmem:[%s2 + $0xaa4] sm:$0xf]
  %v712 = vld [vmem:[%s2 + $0xaa8] sm:$0xf]
  %v713 = vld [vmem:[%s2 + $0xaac] sm:$0xf]
  %v714 = vld [vmem:[%s2 + $0xab0] sm:$0xf]
  %v715 = vld [vmem:[%s2 + $0xab4] sm:$0xf]
  %v716 = vld [vmem:[%s2 + $0xab8] sm:$0xf]
  %v717 = vld [vmem:[%s2 + $0xabc] sm:$0xf]
  %v718 = vld [vmem:[%s2 + $0xac0] sm:$0xf]
  %v719 = vld [vmem:[%s2 + $0xac4] sm:$0xf]
  %v720 = vld [vmem:[%s2 + $0xac8] sm:$0xf]
  %v721 = vld [vmem:[%s2 + $0xacc] sm:$0xf]
  %v722 = vld [vmem:[%s2 + $0xad0] sm:$0xf]
  %v723 = vld [vmem:[%s2 + $0xad4] sm:$0xf]
  %v724 = vld [vmem:[%s2 + $0xad8] sm:$0xf]
  %v725 = vld [vmem:[%s2 + $0xadc] sm:$0xf]
  %v726 = vld [vmem:[%s2 + $0xae0] sm:$0xf]
  %v727 = vld [vmem:[%s2 + $0xae4] sm:$0xf]
  %v728 = vld [vmem:[%s2 + $0xae8] sm:$0xf]
  %v729 = vld [vmem:[%s2 + $0xaec] sm:$0xf]
  %v730 = vld [vmem:[%s2 + $0xaf0] sm:$0xf]
  %v731 = vld [vmem:[%s2 + $0xaf4] sm:$0xf]
  %v732 = vld [vmem:[%s2 + $0xaf8] sm:$0xf]
  %v733 = vld [vmem:[%s2 + $0xafc] sm:$0xf]
  %v734 = vld [vmem:[%s2 + $0xb00] sm:$0xf]
  %v735 = vld [vmem:[%s2 + $0xb04] sm:$0xf]
  %v736 = vld [vmem:[%s2 + $0xb08] sm:$0xf]
  %v737 = vld [vmem:[%s2 + $0xb0c] sm:$0xf]
  %v738 = vld [vmem:[%s2 + $0xb10] sm:$0xf]
  %v739 = vld [vmem:[%s2 + $0xb14] sm:$0xf]
  %v740 = vld [vmem:[%s2 + $0xb18] sm:$0xf]
  %v741 = vld [vmem:[%s2 + $0xb1c] sm:$0xf]
  %v742 = vld [vmem:[%s2 + $0xb20] sm:$0xf]
  %v743 = vld [vmem:[%s2 + $0xb24] sm:$0xf]
  %v744 = vld [vmem:[%s2 + $0xb28] sm:$0xf]
  %v745 = vld [vmem:[%s2 + $0xb2c] sm:$0xf]
  %v746 = vld [vmem:[%s2 + $0xb30] sm:$0xf]
  %v747 = vld [vmem:[%s2 + $0xb34] sm:$0xf]
  %v748 = vld [vmem:[%s2 + $0xb38] sm:$0xf]
  %v749 = vld [vmem:[%s2 + $0xb3c] sm:$0xf]
  %v750 = vld [vmem:[%s2 + $0xb40] sm:$0xf]
  %v751 = vld [vmem:[%s2 + $0xb44] sm:$0xf]
  %v752 = vld [vmem:[%s2 + $0xb48] sm:$0xf]
  %v753 = vld [vmem:[%s2 + $0xb4c] sm:$0xf]
  %v754 = vld [vmem:[%s2 + $0xb50] sm:$0xf]
  %v755 = vld [vmem:[%s2 + $0xb54] sm:$0xf]
  %v756 = vld [vmem:[%s2 + $0xb58] sm:$0xf]
  %v757 = vld [vmem:[%s2 + $0xb5c] sm:$0xf]
  %v758 = vld [vmem:[%s2 + $0xb60] sm:$0xf]
  %v759 = vld [vmem:[%s2 + $0xb64] sm:$0xf]
  %v760 = vld [vmem:[%s2 + $0xb68] sm:$0xf]
  %v761 = vld [vmem:[%s2 + $0xb6c] sm:$0xf]
  %v762 = vld [vmem:[%s2 + $0xb70] sm:$0xf]
  %v763 = vld [vmem:[%s2 + $0xb74] sm:$0xf]
  %v764 = vld [vmem:[%s2 + $0xb78] sm:$0xf]
  %v765 = vld [vmem:[%s2 + $0xb7c] sm:$0xf]
  %v766 = vld [vmem:[%s2 + $0xb80] sm:$0xf]
  %v767 = vld [vmem:[%s2 + $0xb84] sm:$0xf]
  %v768 = vld [vmem:[%s2 + $0xb88] sm:$0xf]
  %v769 = vld [vmem:[%s2 + $0xb8c] sm:$0xf]
  %v770 = vld [vmem:[%s2 + $0xb90] sm:$0xf]
  %v771 = vld [vmem:[%s2 + $0xb94] sm:$0xf]
  %v772 = vld [vmem:[%s2 + $0xb98] sm:$0xf]
  %v773 = vld [vmem:[%s2 + $0xb9c] sm:$0xf]
  %v774 = vld [vmem:[%s2 + $0xba0] sm:$0xf]
  %v775 = vld [vmem:[%s2 + $0xba4] sm:$0xf]
  %v776 = vld [vmem:[%s2 + $0xba8] sm:$0xf]
  %v777 = vld [vmem:[%s2 + $0xbac] sm:$0xf]
  %v778 = vld [vmem:[%s2 + $0xbb0] sm:$0xf]
  %v779 = vld [vmem:[%s2 + $0xbb4] sm:$0xf]
  %v780 = vld [vmem:[%s2 + $0xbb8] sm:$0xf]
  %v781 = vld [vmem:[%s2 + $0xbbc] sm:$0xf]
  %v782 = vld [vmem:[%s2 + $0xbc0] sm:$0xf]
  %v783 = vld [vmem:[%s2 + $0xbc4] sm:$0xf]
  %v784 = vld [vmem:[%s2 + $0xbc8] sm:$0xf]
  %v785 = vld [vmem:[%s2 + $0xbcc] sm:$0xf]
  %v786 = vld [vmem:[%s2 + $0xbd0] sm:$0xf]
  %v787 = vld [vmem:[%s2 + $0xbd4] sm:$0xf]
  %v788 = vld [vmem:[%s2 + $0xbd8] sm:$0xf]
  %v789 = vld [vmem:[%s2 + $0xbdc] sm:$0xf]
  %v790 = vld [vmem:[%s2 + $0xbe0] sm:$0xf]
  %v791 = vld [vmem:[%s2 + $0xbe4] sm:$0xf]
  %v792 = vld [vmem:[%s2 + $0xbe8] sm:$0xf]
  %v793 = vld [vmem:[%s2 + $0xbec] sm:$0xf]
  %v794 = vld [vmem:[%s2 + $0xbf0] sm:$0xf]
  %v795 = vld [vmem:[%s2 + $0xbf4] sm:$0xf]
  %v796 = vld [vmem:[%s2 + $0xbf8] sm:$0xf]
  %v797 = vld [vmem:[%s2 + $0xbfc] sm:$0xf]
  %v798 = vld [vmem:[%s4] sm:$0x1]
  %v800 = vlaneseq
  %v801 = vshrl.u32 %v800, 7
  %v802 = vsub.s32 0, %v801
  %v803 = vrot.slane %v798, %v802
  %v811 = vcombine.high %v24, %v24
  %v813 = vunpack.c.l.s4 1966171168
  %v814 = vunpack.c.0.s8 %v813
  %v815 = vlaneseq
  %v816 = vshrl.u32 %v815, 7
  %v817 = vsub.s32 %v814, %v816
  %v818 = vrot.slane %v24, %v817
  %v820 = vunpack.c.l.s4 1966171168
  %v821 = vunpack.c.0.s8 %v820
  %v822 = vlaneseq
  %v823 = vshrl.u32 %v822, 7
  %v824 = vsub.s32 %v821, %v823
  %v825 = vrot.slane %v811, %v824
  %v826 = vcombine.high %v818, %v818
  %v827 = vcombine.high %v825, %v825
  %v829 = vunpack.c.l.s4 1966171168
  %v830 = vunpack.c.0.s8 %v829
  %v831 = vlaneseq
  %v832 = vshrl.u32 %v831, 7
  %v833 = vsub.s32 %v830, %v832
  %v834 = vrot.slane %v818, %v833
  %v836 = vunpack.c.l.s4 1966171168
  %v837 = vunpack.c.0.s8 %v836
  %v838 = vlaneseq
  %v839 = vshrl.u32 %v838, 7
  %v840 = vsub.s32 %v837, %v839
  %v841 = vrot.slane %v825, %v840
  %v843 = vunpack.c.l.s4 1966171168
  %v844 = vunpack.c.0.s8 %v843
  %v845 = vlaneseq
  %v846 = vshrl.u32 %v845, 7
  %v847 = vsub.s32 %v844, %v846
  %v848 = vrot.slane %v826, %v847
  %v850 = vunpack.c.l.s4 1966171168
  %v851 = vunpack.c.0.s8 %v850
  %v852 = vlaneseq
  %v853 = vshrl.u32 %v852, 7
  %v854 = vsub.s32 %v851, %v853
  %v855 = vrot.slane %v827, %v854
  %v856 = vcombine.high %v834, %v834
  %v857 = vcombine.high %v841, %v841
  %v858 = vcombine.high %v848, %v848
  %v859 = vcombine.high %v855, %v855
  %v860 = vcombine.high %v25, %v25
  %v862 = vunpack.c.l.s4 1966171168
  %v863 = vunpack.c.0.s8 %v862
  %v864 = vlaneseq
  %v865 = vshrl.u32 %v864, 7
  %v866 = vsub.s32 %v863, %v865
  %v867 = vrot.slane %v25, %v866
  %v869 = vunpack.c.l.s4 1966171168
  %v870 = vunpack.c.0.s8 %v869
  %v871 = vlaneseq
  %v872 = vshrl.u32 %v871, 7
  %v873 = vsub.s32 %v870, %v872
  %v874 = vrot.slane %v860, %v873
  %v875 = vcombine.high %v867, %v867
  %v876 = vcombine.high %v874, %v874
  %v878 = vunpack.c.l.s4 1966171168
  %v879 = vunpack.c.0.s8 %v878
  %v880 = vlaneseq
  %v881 = vshrl.u32 %v880, 7
  %v882 = vsub.s32 %v879, %v881
  %v883 = vrot.slane %v867, %v882
  %v885 = vunpack.c.l.s4 1966171168
  %v886 = vunpack.c.0.s8 %v885
  %v887 = vlaneseq
  %v888 = vshrl.u32 %v887, 7
  %v889 = vsub.s32 %v886, %v888
  %v890 = vrot.slane %v874, %v889
  %v892 = vunpack.c.l.s4 1966171168
  %v893 = vunpack.c.0.s8 %v892
  %v894 = vlaneseq
  %v895 = vshrl.u32 %v894, 7
  %v896 = vsub.s32 %v893, %v895
  %v897 = vrot.slane %v875, %v896
  %v899 = vunpack.c.l.s4 1966171168
  %v900 = vunpack.c.0.s8 %v899
  %v901 = vlaneseq
  %v902 = vshrl.u32 %v901, 7
  %v903 = vsub.s32 %v900, %v902
  %v904 = vrot.slane %v876, %v903
  %v905 = vcombine.high %v883, %v883
  %v906 = vcombine.high %v890, %v890
  %v907 = vcombine.high %v897, %v897
  %v908 = vcombine.high %v904, %v904
  %v909 = vcombine.high %v26, %v26
  %v911 = vunpack.c.l.s4 1966171168
  %v912 = vunpack.c.0.s8 %v911
  %v913 = vlaneseq
  %v914 = vshrl.u32 %v913, 7
  %v915 = vsub.s32 %v912, %v914
  %v916 = vrot.slane %v26, %v915
  %v918 = vunpack.c.l.s4 1966171168
  %v919 = vunpack.c.0.s8 %v918
  %v920 = vlaneseq
  %v921 = vshrl.u32 %v920, 7
  %v922 = vsub.s32 %v919, %v921
  %v923 = vrot.slane %v909, %v922
  %v924 = vcombine.high %v916, %v916
  %v925 = vcombine.high %v923, %v923
  %v927 = vunpack.c.l.s4 1966171168
  %v928 = vunpack.c.0.s8 %v927
  %v929 = vlaneseq
  %v930 = vshrl.u32 %v929, 7
  %v931 = vsub.s32 %v928, %v930
  %v932 = vrot.slane %v916, %v931
  %v934 = vunpack.c.l.s4 1966171168
  %v935 = vunpack.c.0.s8 %v934
  %v936 = vlaneseq
  %v937 = vshrl.u32 %v936, 7
  %v938 = vsub.s32 %v935, %v937
  %v939 = vrot.slane %v923, %v938
  %v941 = vunpack.c.l.s4 1966171168
  %v942 = vunpack.c.0.s8 %v941
  %v943 = vlaneseq
  %v944 = vshrl.u32 %v943, 7
  %v945 = vsub.s32 %v942, %v944
  %v946 = vrot.slane %v924, %v945
  %v948 = vunpack.c.l.s4 1966171168
  %v949 = vunpack.c.0.s8 %v948
  %v950 = vlaneseq
  %v951 = vshrl.u32 %v950, 7
  %v952 = vsub.s32 %v949, %v951
  %v953 = vrot.slane %v925, %v952
  %v954 = vcombine.high %v932, %v932
  %v955 = vcombine.high %v939, %v939
  %v956 = vcombine.high %v946, %v946
  %v957 = vcombine.high %v953, %v953
  %v958 = vcombine.high %v27, %v27
  %v960 = vunpack.c.l.s4 1966171168
  %v961 = vunpack.c.0.s8 %v960
  %v962 = vlaneseq
  %v963 = vshrl.u32 %v962, 7
  %v964 = vsub.s32 %v961, %v963
  %v965 = vrot.slane %v27, %v964
  %v967 = vunpack.c.l.s4 1966171168
  %v968 = vunpack.c.0.s8 %v967
  %v969 = vlaneseq
  %v970 = vshrl.u32 %v969, 7
  %v971 = vsub.s32 %v968, %v970
  %v972 = vrot.slane %v958, %v971
  %v973 = vcombine.high %v965, %v965
  %v974 = vcombine.high %v972, %v972
  %v976 = vunpack.c.l.s4 1966171168
  %v977 = vunpack.c.0.s8 %v976
  %v978 = vlaneseq
  %v979 = vshrl.u32 %v978, 7
  %v980 = vsub.s32 %v977, %v979
  %v981 = vrot.slane %v965, %v980
  %v983 = vunpack.c.l.s4 1966171168
  %v984 = vunpack.c.0.s8 %v983
  %v985 = vlaneseq
  %v986 = vshrl.u32 %v985, 7
  %v987 = vsub.s32 %v984, %v986
  %v988 = vrot.slane %v972, %v987
  %v990 = vunpack.c.l.s4 1966171168
  %v991 = vunpack.c.0.s8 %v990
  %v992 = vlaneseq
  %v993 = vshrl.u32 %v992, 7
  %v994 = vsub.s32 %v991, %v993
  %v995 = vrot.slane %v973, %v994
  %v997 = vunpack.c.l.s4 1966171168
  %v998 = vunpack.c.0.s8 %v997
  %v999 = vlaneseq
  %v1000 = vshrl.u32 %v999, 7
  %v1001 = vsub.s32 %v998, %v1000
  %v1002 = vrot.slane %v974, %v1001
  %v1003 = vcombine.high %v981, %v981
  %v1004 = vcombine.high %v988, %v988
  %v1005 = vcombine.high %v995, %v995
  %v1006 = vcombine.high %v1002, %v1002
  %v1007 = vcombine.high %v28, %v28
  %v1009 = vunpack.c.l.s4 1966171168
  %v1010 = vunpack.c.0.s8 %v1009
  %v1011 = vlaneseq
  %v1012 = vshrl.u32 %v1011, 7
  %v1013 = vsub.s32 %v1010, %v1012
  %v1014 = vrot.slane %v28, %v1013
  %v1016 = vunpack.c.l.s4 1966171168
  %v1017 = vunpack.c.0.s8 %v1016
  %v1018 = vlaneseq
  %v1019 = vshrl.u32 %v1018, 7
  %v1020 = vsub.s32 %v1017, %v1019
  %v1021 = vrot.slane %v1007, %v1020
  %v1022 = vcombine.high %v1014, %v1014
  %v1023 = vcombine.high %v1021, %v1021
  %v1025 = vunpack.c.l.s4 1966171168
  %v1026 = vunpack.c.0.s8 %v1025
  %v1027 = vlaneseq
  %v1028 = vshrl.u32 %v1027, 7
  %v1029 = vsub.s32 %v1026, %v1028
  %v1030 = vrot.slane %v1014, %v1029
  %v1032 = vunpack.c.l.s4 1966171168
  %v1033 = vunpack.c.0.s8 %v1032
  %v1034 = vlaneseq
  %v1035 = vshrl.u32 %v1034, 7
  %v1036 = vsub.s32 %v1033, %v1035
  %v1037 = vrot.slane %v1021, %v1036
  %v1039 = vunpack.c.l.s4 1966171168
  %v1040 = vunpack.c.0.s8 %v1039
  %v1041 = vlaneseq
  %v1042 = vshrl.u32 %v1041, 7
  %v1043 = vsub.s32 %v1040, %v1042
  %v1044 = vrot.slane %v1022, %v1043
  %v1046 = vunpack.c.l.s4 1966171168
  %v1047 = vunpack.c.0.s8 %v1046
  %v1048 = vlaneseq
  %v1049 = vshrl.u32 %v1048, 7
  %v1050 = vsub.s32 %v1047, %v1049
  %v1051 = vrot.slane %v1023, %v1050
  %v1052 = vcombine.high %v1030, %v1030
  %v1053 = vcombine.high %v1037, %v1037
  %v1054 = vcombine.high %v1044, %v1044
  %v1055 = vcombine.high %v1051, %v1051
  %v1056 = vcombine.high %v29, %v29
  %v1058 = vunpack.c.l.s4 1966171168
  %v1059 = vunpack.c.0.s8 %v1058
  %v1060 = vlaneseq
  %v1061 = vshrl.u32 %v1060, 7
  %v1062 = vsub.s32 %v1059, %v1061
  %v1063 = vrot.slane %v29, %v1062
  %v1065 = vunpack.c.l.s4 1966171168
  %v1066 = vunpack.c.0.s8 %v1065
  %v1067 = vlaneseq
  %v1068 = vshrl.u32 %v1067, 7
  %v1069 = vsub.s32 %v1066, %v1068
  %v1070 = vrot.slane %v1056, %v1069
  %v1071 = vcombine.high %v1063, %v1063
  %v1072 = vcombine.high %v1070, %v1070
  %v1074 = vunpack.c.l.s4 1966171168
  %v1075 = vunpack.c.0.s8 %v1074
  %v1076 = vlaneseq
  %v1077 = vshrl.u32 %v1076, 7
  %v1078 = vsub.s32 %v1075, %v1077
  %v1079 = vrot.slane %v1063, %v1078
  %v1081 = vunpack.c.l.s4 1966171168
  %v1082 = vunpack.c.0.s8 %v1081
  %v1083 = vlaneseq
  %v1084 = vshrl.u32 %v1083, 7
  %v1085 = vsub.s32 %v1082, %v1084
  %v1086 = vrot.slane %v1070, %v1085
  %v1088 = vunpack.c.l.s4 1966171168
  %v1089 = vunpack.c.0.s8 %v1088
  %v1090 = vlaneseq
  %v1091 = vshrl.u32 %v1090, 7
  %v1092 = vsub.s32 %v1089, %v1091
  %v1093 = vrot.slane %v1071, %v1092
  %v1095 = vunpack.c.l.s4 1966171168
  %v1096 = vunpack.c.0.s8 %v1095
  %v1097 = vlaneseq
  %v1098 = vshrl.u32 %v1097, 7
  %v1099 = vsub.s32 %v1096, %v1098
  %v1100 = vrot.slane %v1072, %v1099
  %v1101 = vcombine.high %v1079, %v1079
  %v1102 = vcombine.high %v1086, %v1086
  %v1103 = vcombine.high %v1093, %v1093
  %v1104 = vcombine.high %v1100, %v1100
  %v1921 = vunpack.c.l.b16 %v30
  %v1922 = vunpack.c.l.b16 %v31
  %v1923 = vunpack.c.l.b16 %v32
  %v1924 = vunpack.c.l.b16 %v33
  %v1925 = vunpack.c.l.b16 %v34
  %v1926 = vunpack.c.l.b16 %v35
  %v1927 = vunpack.c.l.b16 %v36
  %v1928 = vunpack.c.l.b16 %v37
  %v1929 = vunpack.c.l.b16 %v38
  %v1930 = vunpack.c.l.b16 %v39
  %v1931 = vunpack.c.l.b16 %v40
  %v1932 = vunpack.c.l.b16 %v41
  %v1933 = vunpack.c.l.b16 %v42
  %v1934 = vunpack.c.l.b16 %v43
  %v1935 = vunpack.c.l.b16 %v44
  %v1936 = vunpack.c.l.b16 %v45
  %v1937 = vunpack.c.l.b16 %v46
  %v1938 = vunpack.c.l.b16 %v47
  %v1939 = vunpack.c.l.b16 %v48
  %v1940 = vunpack.c.l.b16 %v49
  %v1941 = vunpack.c.l.b16 %v50
  %v1942 = vunpack.c.l.b16 %v51
  %v1943 = vunpack.c.l.b16 %v52
  %v1944 = vunpack.c.l.b16 %v53
  %v1945 = vunpack.c.l.b16 %v54
  %v1946 = vunpack.c.l.b16 %v55
  %v1947 = vunpack.c.l.b16 %v56
  %v1948 = vunpack.c.l.b16 %v57
  %v1949 = vunpack.c.l.b16 %v58
  %v1950 = vunpack.c.l.b16 %v59
  %v1951 = vunpack.c.l.b16 %v60
  %v1952 = vunpack.c.l.b16 %v61
  %v1953 = vunpack.c.l.b16 %v62
  %v1954 = vunpack.c.l.b16 %v63
  %v1955 = vunpack.c.l.b16 %v64
  %v1956 = vunpack.c.l.b16 %v65
  %v1957 = vunpack.c.l.b16 %v66
  %v1958 = vunpack.c.l.b16 %v67
  %v1959 = vunpack.c.l.b16 %v68
  %v1960 = vunpack.c.l.b16 %v69
  %v1961 = vunpack.c.l.b16 %v70
  %v1962 = vunpack.c.l.b16 %v71
  %v1963 = vunpack.c.l.b16 %v72
  %v1964 = vunpack.c.l.b16 %v73
  %v1965 = vunpack.c.l.b16 %v74
  %v1966 = vunpack.c.l.b16 %v75
  %v1967 = vunpack.c.l.b16 %v76
  %v1968 = vunpack.c.l.b16 %v77
  %v1969 = vunpack.c.l.b16 %v78
  %v1970 = vunpack.c.l.b16 %v79
  %v1971 = vunpack.c.l.b16 %v80
  %v1972 = vunpack.c.l.b16 %v81
  %v1973 = vunpack.c.l.b16 %v82
  %v1974 = vunpack.c.l.b16 %v83
  %v1975 = vunpack.c.l.b16 %v84
  %v1976 = vunpack.c.l.b16 %v85
  %v1977 = vunpack.c.l.b16 %v86
  %v1978 = vunpack.c.l.b16 %v87
  %v1979 = vunpack.c.l.b16 %v88
  %v1980 = vunpack.c.l.b16 %v89
  %v1981 = vunpack.c.l.b16 %v90
  %v1982 = vunpack.c.l.b16 %v91
  %v1983 = vunpack.c.l.b16 %v92
  %v1984 = vunpack.c.l.b16 %v93
  %v1985 = vunpack.c.l.b16 %v94
  %v1986 = vunpack.c.l.b16 %v95
  %v1987 = vunpack.c.l.b16 %v96
  %v1988 = vunpack.c.l.b16 %v97
  %v1989 = vunpack.c.l.b16 %v98
  %v1990 = vunpack.c.l.b16 %v99
  %v1991 = vunpack.c.l.b16 %v100
  %v1992 = vunpack.c.l.b16 %v101
  %v1993 = vunpack.c.l.b16 %v102
  %v1994 = vunpack.c.l.b16 %v103
  %v1995 = vunpack.c.l.b16 %v104
  %v1996 = vunpack.c.l.b16 %v105
  %v1997 = vunpack.c.l.b16 %v106
  %v1998 = vunpack.c.l.b16 %v107
  %v1999 = vunpack.c.l.b16 %v108
  %v2000 = vunpack.c.l.b16 %v109
  %v2001 = vunpack.c.l.b16 %v110
  %v2002 = vunpack.c.l.b16 %v111
  %v2003 = vunpack.c.l.b16 %v112
  %v2004 = vunpack.c.l.b16 %v113
  %v2005 = vunpack.c.l.b16 %v114
  %v2006 = vunpack.c.l.b16 %v115
  %v2007 = vunpack.c.l.b16 %v116
  %v2008 = vunpack.c.l.b16 %v117
  %v2009 = vunpack.c.l.b16 %v118
  %v2010 = vunpack.c.l.b16 %v119
  %v2011 = vunpack.c.l.b16 %v120
  %v2012 = vunpack.c.l.b16 %v121
  %v2013 = vunpack.c.l.b16 %v122
  %v2014 = vunpack.c.l.b16 %v123
  %v2015 = vunpack.c.l.b16 %v124
  %v2016 = vunpack.c.l.b16 %v125
  %v2017 = vunpack.c.l.b16 %v126
  %v2018 = vunpack.c.l.b16 %v127
  %v2019 = vunpack.c.l.b16 %v128
  %v2020 = vunpack.c.l.b16 %v129
  %v2021 = vunpack.c.l.b16 %v130
  %v2022 = vunpack.c.l.b16 %v131
  %v2023 = vunpack.c.l.b16 %v132
  %v2024 = vunpack.c.l.b16 %v133
  %v2025 = vunpack.c.l.b16 %v134
  %v2026 = vunpack.c.l.b16 %v135
  %v2027 = vunpack.c.l.b16 %v136
  %v2028 = vunpack.c.l.b16 %v137
  %v2029 = vunpack.c.l.b16 %v138
  %v2030 = vunpack.c.l.b16 %v139
  %v2031 = vunpack.c.l.b16 %v140
  %v2032 = vunpack.c.l.b16 %v141
  %v2033 = vunpack.c.l.b16 %v142
  %v2034 = vunpack.c.l.b16 %v143
  %v2035 = vunpack.c.l.b16 %v144
  %v2036 = vunpack.c.l.b16 %v145
  %v2037 = vunpack.c.l.b16 %v146
  %v2038 = vunpack.c.l.b16 %v147
  %v2039 = vunpack.c.l.b16 %v148
  %v2040 = vunpack.c.l.b16 %v149
  %v2041 = vunpack.c.l.b16 %v150
  %v2042 = vunpack.c.l.b16 %v151
  %v2043 = vunpack.c.l.b16 %v152
  %v2044 = vunpack.c.l.b16 %v153
  %v2045 = vunpack.c.l.b16 %v154
  %v2046 = vunpack.c.l.b16 %v155
  %v2047 = vunpack.c.l.b16 %v156
  %v2048 = vunpack.c.l.b16 %v157
  %v2049 = vunpack.c.l.b16 %v158
  %v2050 = vunpack.c.l.b16 %v159
  %v2051 = vunpack.c.l.b16 %v160
  %v2052 = vunpack.c.l.b16 %v161
  %v2053 = vunpack.c.l.b16 %v162
  %v2054 = vunpack.c.l.b16 %v163
  %v2055 = vunpack.c.l.b16 %v164
  %v2056 = vunpack.c.l.b16 %v165
  %v2057 = vunpack.c.l.b16 %v166
  %v2058 = vunpack.c.l.b16 %v167
  %v2059 = vunpack.c.l.b16 %v168
  %v2060 = vunpack.c.l.b16 %v169
  %v2061 = vunpack.c.l.b16 %v170
  %v2062 = vunpack.c.l.b16 %v171
  %v2063 = vunpack.c.l.b16 %v172
  %v2064 = vunpack.c.l.b16 %v173
  %v2065 = vunpack.c.l.b16 %v174
  %v2066 = vunpack.c.l.b16 %v175
  %v2067 = vunpack.c.l.b16 %v176
  %v2068 = vunpack.c.l.b16 %v177
  %v2069 = vunpack.c.l.b16 %v178
  %v2070 = vunpack.c.l.b16 %v179
  %v2071 = vunpack.c.l.b16 %v180
  %v2072 = vunpack.c.l.b16 %v181
  %v2073 = vunpack.c.l.b16 %v182
  %v2074 = vunpack.c.l.b16 %v183
  %v2075 = vunpack.c.l.b16 %v184
  %v2076 = vunpack.c.l.b16 %v185
  %v2077 = vunpack.c.l.b16 %v186
  %v2078 = vunpack.c.l.b16 %v187
  %v2079 = vunpack.c.l.b16 %v188
  %v2080 = vunpack.c.l.b16 %v189
  %v2081 = vunpack.c.l.b16 %v190
  %v2082 = vunpack.c.l.b16 %v191
  %v2083 = vunpack.c.l.b16 %v192
  %v2084 = vunpack.c.l.b16 %v193
  %v2085 = vunpack.c.l.b16 %v194
  %v2086 = vunpack.c.l.b16 %v195
  %v2087 = vunpack.c.l.b16 %v196
  %v2088 = vunpack.c.l.b16 %v197
  %v2089 = vunpack.c.l.b16 %v198
  %v2090 = vunpack.c.l.b16 %v199
  %v2091 = vunpack.c.l.b16 %v200
  %v2092 = vunpack.c.l.b16 %v201
  %v2093 = vunpack.c.l.b16 %v202
  %v2094 = vunpack.c.l.b16 %v203
  %v2095 = vunpack.c.l.b16 %v204
  %v2096 = vunpack.c.l.b16 %v205
  %v2097 = vunpack.c.l.b16 %v206
  %v2098 = vunpack.c.l.b16 %v207
  %v2099 = vunpack.c.l.b16 %v208
  %v2100 = vunpack.c.l.b16 %v209
  %v2101 = vunpack.c.l.b16 %v210
  %v2102 = vunpack.c.l.b16 %v211
  %v2103 = vunpack.c.l.b16 %v212
  %v2104 = vunpack.c.l.b16 %v213
  %v2105 = vunpack.c.l.b16 %v214
  %v2106 = vunpack.c.l.b16 %v215
  %v2107 = vunpack.c.l.b16 %v216
  %v2108 = vunpack.c.l.b16 %v217
  %v2109 = vunpack.c.l.b16 %v218
  %v2110 = vunpack.c.l.b16 %v219
  %v2111 = vunpack.c.l.b16 %v220
  %v2112 = vunpack.c.l.b16 %v221
  %v2113 = vunpack.c.l.b16 %v222
  %v2114 = vunpack.c.l.b16 %v223
  %v2115 = vunpack.c.l.b16 %v224
  %v2116 = vunpack.c.l.b16 %v225
  %v2117 = vunpack.c.l.b16 %v226
  %v2118 = vunpack.c.l.b16 %v227
  %v2119 = vunpack.c.l.b16 %v228
  %v2120 = vunpack.c.l.b16 %v229
  %v2121 = vunpack.c.l.b16 %v230
  %v2122 = vunpack.c.l.b16 %v231
  %v2123 = vunpack.c.l.b16 %v232
  %v2124 = vunpack.c.l.b16 %v233
  %v2125 = vunpack.c.l.b16 %v234
  %v2126 = vunpack.c.l.b16 %v235
  %v2127 = vunpack.c.l.b16 %v236
  %v2128 = vunpack.c.l.b16 %v237
  %v2129 = vunpack.c.l.b16 %v238
  %v2130 = vunpack.c.l.b16 %v239
  %v2131 = vunpack.c.l.b16 %v240
  %v2132 = vunpack.c.l.b16 %v241
  %v2133 = vunpack.c.l.b16 %v242
  %v2134 = vunpack.c.l.b16 %v243
  %v2135 = vunpack.c.l.b16 %v244
  %v2136 = vunpack.c.l.b16 %v245
  %v2137 = vunpack.c.l.b16 %v246
  %v2138 = vunpack.c.l.b16 %v247
  %v2139 = vunpack.c.l.b16 %v248
  %v2140 = vunpack.c.l.b16 %v249
  %v2141 = vunpack.c.l.b16 %v250
  %v2142 = vunpack.c.l.b16 %v251
  %v2143 = vunpack.c.l.b16 %v252
  %v2144 = vunpack.c.l.b16 %v253
  %v2145 = vunpack.c.l.b16 %v254
  %v2146 = vunpack.c.l.b16 %v255
  %v2147 = vunpack.c.l.b16 %v256
  %v2148 = vunpack.c.l.b16 %v257
  %v2149 = vunpack.c.l.b16 %v258
  %v2150 = vunpack.c.l.b16 %v259
  %v2151 = vunpack.c.l.b16 %v260
  %v2152 = vunpack.c.l.b16 %v261
  %v2153 = vunpack.c.l.b16 %v262
  %v2154 = vunpack.c.l.b16 %v263
  %v2155 = vunpack.c.l.b16 %v264
  %v2156 = vunpack.c.l.b16 %v265
  %v2157 = vunpack.c.l.b16 %v266
  %v2158 = vunpack.c.l.b16 %v267
  %v2159 = vunpack.c.l.b16 %v268
  %v2160 = vunpack.c.l.b16 %v269
  %v2161 = vunpack.c.l.b16 %v270
  %v2162 = vunpack.c.l.b16 %v271
  %v2163 = vunpack.c.l.b16 %v272
  %v2164 = vunpack.c.l.b16 %v273
  %v2165 = vunpack.c.l.b16 %v274
  %v2166 = vunpack.c.l.b16 %v275
  %v2167 = vunpack.c.l.b16 %v276
  %v2168 = vunpack.c.l.b16 %v277
  %v2169 = vunpack.c.l.b16 %v278
  %v2170 = vunpack.c.l.b16 %v279
  %v2171 = vunpack.c.l.b16 %v280
  %v2172 = vunpack.c.l.b16 %v281
  %v2173 = vunpack.c.l.b16 %v282
  %v2174 = vunpack.c.l.b16 %v283
  %v2175 = vunpack.c.l.b16 %v284
  %v2176 = vunpack.c.l.b16 %v285
  %v2177 = vunpack.c.l.b16 %v286
  %v2178 = vunpack.c.l.b16 %v287
  %v2179 = vunpack.c.l.b16 %v288
  %v2180 = vunpack.c.l.b16 %v289
  %v2181 = vunpack.c.l.b16 %v290
  %v2182 = vunpack.c.l.b16 %v291
  %v2183 = vunpack.c.l.b16 %v292
  %v2184 = vunpack.c.l.b16 %v293
  %v2185 = vunpack.c.l.b16 %v294
  %v2186 = vunpack.c.l.b16 %v295
  %v2187 = vunpack.c.l.b16 %v296
  %v2188 = vunpack.c.l.b16 %v297
  %v2189 = vunpack.c.l.b16 %v298
  %v2190 = vunpack.c.l.b16 %v299
  %v2191 = vunpack.c.l.b16 %v300
  %v2192 = vunpack.c.l.b16 %v301
  %v2193 = vunpack.c.l.b16 %v302
  %v2194 = vunpack.c.l.b16 %v303
  %v2195 = vunpack.c.l.b16 %v304
  %v2196 = vunpack.c.l.b16 %v305
  %v2197 = vunpack.c.l.b16 %v306
  %v2198 = vunpack.c.l.b16 %v307
  %v2199 = vunpack.c.l.b16 %v308
  %v2200 = vunpack.c.l.b16 %v309
  %v2201 = vunpack.c.l.b16 %v310
  %v2202 = vunpack.c.l.b16 %v311
  %v2203 = vunpack.c.l.b16 %v312
  %v2204 = vunpack.c.l.b16 %v313
  %v2205 = vunpack.c.l.b16 %v314
  %v2206 = vunpack.c.l.b16 %v315
  %v2207 = vunpack.c.l.b16 %v316
  %v2208 = vunpack.c.l.b16 %v317
  %v2209 = vunpack.c.l.b16 %v318
  %v2210 = vunpack.c.l.b16 %v319
  %v2211 = vunpack.c.l.b16 %v320
  %v2212 = vunpack.c.l.b16 %v321
  %v2213 = vunpack.c.l.b16 %v322
  %v2214 = vunpack.c.l.b16 %v323
  %v2215 = vunpack.c.l.b16 %v324
  %v2216 = vunpack.c.l.b16 %v325
  %v2217 = vunpack.c.l.b16 %v326
  %v2218 = vunpack.c.l.b16 %v327
  %v2219 = vunpack.c.l.b16 %v328
  %v2220 = vunpack.c.l.b16 %v329
  %v2221 = vunpack.c.l.b16 %v330
  %v2222 = vunpack.c.l.b16 %v331
  %v2223 = vunpack.c.l.b16 %v332
  %v2224 = vunpack.c.l.b16 %v333
  %v2225 = vunpack.c.l.b16 %v334
  %v2226 = vunpack.c.l.b16 %v335
  %v2227 = vunpack.c.l.b16 %v336
  %v2228 = vunpack.c.l.b16 %v337
  %v2229 = vunpack.c.l.b16 %v338
  %v2230 = vunpack.c.l.b16 %v339
  %v2231 = vunpack.c.l.b16 %v340
  %v2232 = vunpack.c.l.b16 %v341
  %v2233 = vunpack.c.l.b16 %v342
  %v2234 = vunpack.c.l.b16 %v343
  %v2235 = vunpack.c.l.b16 %v344
  %v2236 = vunpack.c.l.b16 %v345
  %v2237 = vunpack.c.l.b16 %v346
  %v2238 = vunpack.c.l.b16 %v347
  %v2239 = vunpack.c.l.b16 %v348
  %v2240 = vunpack.c.l.b16 %v349
  %v2241 = vunpack.c.l.b16 %v350
  %v2242 = vunpack.c.l.b16 %v351
  %v2243 = vunpack.c.l.b16 %v352
  %v2244 = vunpack.c.l.b16 %v353
  %v2245 = vunpack.c.l.b16 %v354
  %v2246 = vunpack.c.l.b16 %v355
  %v2247 = vunpack.c.l.b16 %v356
  %v2248 = vunpack.c.l.b16 %v357
  %v2249 = vunpack.c.l.b16 %v358
  %v2250 = vunpack.c.l.b16 %v359
  %v2251 = vunpack.c.l.b16 %v360
  %v2252 = vunpack.c.l.b16 %v361
  %v2253 = vunpack.c.l.b16 %v362
  %v2254 = vunpack.c.l.b16 %v363
  %v2255 = vunpack.c.l.b16 %v364
  %v2256 = vunpack.c.l.b16 %v365
  %v2257 = vunpack.c.l.b16 %v366
  %v2258 = vunpack.c.l.b16 %v367
  %v2259 = vunpack.c.l.b16 %v368
  %v2260 = vunpack.c.l.b16 %v369
  %v2261 = vunpack.c.l.b16 %v370
  %v2262 = vunpack.c.l.b16 %v371
  %v2263 = vunpack.c.l.b16 %v372
  %v2264 = vunpack.c.l.b16 %v373
  %v2265 = vunpack.c.l.b16 %v374
  %v2266 = vunpack.c.l.b16 %v375
  %v2267 = vunpack.c.l.b16 %v376
  %v2268 = vunpack.c.l.b16 %v377
  %v2269 = vunpack.c.l.b16 %v378
  %v2270 = vunpack.c.l.b16 %v379
  %v2271 = vunpack.c.l.b16 %v380
  %v2272 = vunpack.c.l.b16 %v381
  %v2273 = vunpack.c.l.b16 %v382
  %v2274 = vunpack.c.l.b16 %v383
  %v2275 = vunpack.c.l.b16 %v384
  %v2276 = vunpack.c.l.b16 %v385
  %v2277 = vunpack.c.l.b16 %v386
  %v2278 = vunpack.c.l.b16 %v387
  %v2279 = vunpack.c.l.b16 %v388
  %v2280 = vunpack.c.l.b16 %v389
  %v2281 = vunpack.c.l.b16 %v390
  %v2282 = vunpack.c.l.b16 %v391
  %v2283 = vunpack.c.l.b16 %v392
  %v2284 = vunpack.c.l.b16 %v393
  %v2285 = vunpack.c.l.b16 %v394
  %v2286 = vunpack.c.l.b16 %v395
  %v2287 = vunpack.c.l.b16 %v396
  %v2288 = vunpack.c.l.b16 %v397
  %v2289 = vunpack.c.l.b16 %v398
  %v2290 = vunpack.c.l.b16 %v399
  %v2291 = vunpack.c.l.b16 %v400
  %v2292 = vunpack.c.l.b16 %v401
  %v2293 = vunpack.c.l.b16 %v402
  %v2294 = vunpack.c.l.b16 %v403
  %v2295 = vunpack.c.l.b16 %v404
  %v2296 = vunpack.c.l.b16 %v405
  %v2297 = vunpack.c.l.b16 %v406
  %v2298 = vunpack.c.l.b16 %v407
  %v2299 = vunpack.c.l.b16 %v408
  %v2300 = vunpack.c.l.b16 %v409
  %v2301 = vunpack.c.l.b16 %v410
  %v2302 = vunpack.c.l.b16 %v411
  %v2303 = vunpack.c.l.b16 %v412
  %v2304 = vunpack.c.l.b16 %v413
  %v2305 = vunpack.c.l.b16 %v414
  %v2306 = vunpack.c.l.b16 %v415
  %v2307 = vunpack.c.l.b16 %v416
  %v2308 = vunpack.c.l.b16 %v417
  %v2309 = vunpack.c.l.b16 %v418
  %v2310 = vunpack.c.l.b16 %v419
  %v2311 = vunpack.c.l.b16 %v420
  %v2312 = vunpack.c.l.b16 %v421
  %v2313 = vunpack.c.l.b16 %v422
  %v2314 = vunpack.c.l.b16 %v423
  %v2315 = vunpack.c.l.b16 %v424
  %v2316 = vunpack.c.l.b16 %v425
  %v2317 = vunpack.c.l.b16 %v426
  %v2318 = vunpack.c.l.b16 %v427
  %v2319 = vunpack.c.l.b16 %v428
  %v2320 = vunpack.c.l.b16 %v429
  %v2321 = vunpack.c.l.b16 %v430
  %v2322 = vunpack.c.l.b16 %v431
  %v2323 = vunpack.c.l.b16 %v432
  %v2324 = vunpack.c.l.b16 %v433
  %v2325 = vunpack.c.l.b16 %v434
  %v2326 = vunpack.c.l.b16 %v435
  %v2327 = vunpack.c.l.b16 %v436
  %v2328 = vunpack.c.l.b16 %v437
  %v2329 = vunpack.c.l.b16 %v438
  %v2330 = vunpack.c.l.b16 %v439
  %v2331 = vunpack.c.l.b16 %v440
  %v2332 = vunpack.c.l.b16 %v441
  %v2333 = vunpack.c.l.b16 %v442
  %v2334 = vunpack.c.l.b16 %v443
  %v2335 = vunpack.c.l.b16 %v444
  %v2336 = vunpack.c.l.b16 %v445
  %v2337 = vunpack.c.l.b16 %v446
  %v2338 = vunpack.c.l.b16 %v447
  %v2339 = vunpack.c.l.b16 %v448
  %v2340 = vunpack.c.l.b16 %v449
  %v2341 = vunpack.c.l.b16 %v450
  %v2342 = vunpack.c.l.b16 %v451
  %v2343 = vunpack.c.l.b16 %v452
  %v2344 = vunpack.c.l.b16 %v453
  %v2345 = vunpack.c.l.b16 %v454
  %v2346 = vunpack.c.l.b16 %v455
  %v2347 = vunpack.c.l.b16 %v456
  %v2348 = vunpack.c.l.b16 %v457
  %v2349 = vunpack.c.l.b16 %v458
  %v2350 = vunpack.c.l.b16 %v459
  %v2351 = vunpack.c.l.b16 %v460
  %v2352 = vunpack.c.l.b16 %v461
  %v2353 = vunpack.c.l.b16 %v462
  %v2354 = vunpack.c.l.b16 %v463
  %v2355 = vunpack.c.l.b16 %v464
  %v2356 = vunpack.c.l.b16 %v465
  %v2357 = vunpack.c.l.b16 %v466
  %v2358 = vunpack.c.l.b16 %v467
  %v2359 = vunpack.c.l.b16 %v468
  %v2360 = vunpack.c.l.b16 %v469
  %v2361 = vunpack.c.l.b16 %v470
  %v2362 = vunpack.c.l.b16 %v471
  %v2363 = vunpack.c.l.b16 %v472
  %v2364 = vunpack.c.l.b16 %v473
  %v2365 = vunpack.c.l.b16 %v474
  %v2366 = vunpack.c.l.b16 %v475
  %v2367 = vunpack.c.l.b16 %v476
  %v2368 = vunpack.c.l.b16 %v477
  %v2369 = vunpack.c.l.b16 %v478
  %v2370 = vunpack.c.l.b16 %v479
  %v2371 = vunpack.c.l.b16 %v480
  %v2372 = vunpack.c.l.b16 %v481
  %v2373 = vunpack.c.l.b16 %v482
  %v2374 = vunpack.c.l.b16 %v483
  %v2375 = vunpack.c.l.b16 %v484
  %v2376 = vunpack.c.l.b16 %v485
  %v2377 = vunpack.c.l.b16 %v486
  %v2378 = vunpack.c.l.b16 %v487
  %v2379 = vunpack.c.l.b16 %v488
  %v2380 = vunpack.c.l.b16 %v489
  %v2381 = vunpack.c.l.b16 %v490
  %v2382 = vunpack.c.l.b16 %v491
  %v2383 = vunpack.c.l.b16 %v492
  %v2384 = vunpack.c.l.b16 %v493
  %v2385 = vunpack.c.l.b16 %v494
  %v2386 = vunpack.c.l.b16 %v495
  %v2387 = vunpack.c.l.b16 %v496
  %v2388 = vunpack.c.l.b16 %v497
  %v2389 = vunpack.c.l.b16 %v498
  %v2390 = vunpack.c.l.b16 %v499
  %v2391 = vunpack.c.l.b16 %v500
  %v2392 = vunpack.c.l.b16 %v501
  %v2393 = vunpack.c.l.b16 %v502
  %v2394 = vunpack.c.l.b16 %v503
  %v2395 = vunpack.c.l.b16 %v504
  %v2396 = vunpack.c.l.b16 %v505
  %v2397 = vunpack.c.l.b16 %v506
  %v2398 = vunpack.c.l.b16 %v507
  %v2399 = vunpack.c.l.b16 %v508
  %v2400 = vunpack.c.l.b16 %v509
  %v2401 = vunpack.c.l.b16 %v510
  %v2402 = vunpack.c.l.b16 %v511
  %v2403 = vunpack.c.l.b16 %v512
  %v2404 = vunpack.c.l.b16 %v513
  %v2405 = vunpack.c.l.b16 %v514
  %v2406 = vunpack.c.l.b16 %v515
  %v2407 = vunpack.c.l.b16 %v516
  %v2408 = vunpack.c.l.b16 %v517
  %v2409 = vunpack.c.l.b16 %v518
  %v2410 = vunpack.c.l.b16 %v519
  %v2411 = vunpack.c.l.b16 %v520
  %v2412 = vunpack.c.l.b16 %v521
  %v2413 = vunpack.c.l.b16 %v522
  %v2414 = vunpack.c.l.b16 %v523
  %v2415 = vunpack.c.l.b16 %v524
  %v2416 = vunpack.c.l.b16 %v525
  %v2417 = vunpack.c.l.b16 %v526
  %v2418 = vunpack.c.l.b16 %v527
  %v2419 = vunpack.c.l.b16 %v528
  %v2420 = vunpack.c.l.b16 %v529
  %v2421 = vunpack.c.l.b16 %v530
  %v2422 = vunpack.c.l.b16 %v531
  %v2423 = vunpack.c.l.b16 %v532
  %v2424 = vunpack.c.l.b16 %v533
  %v2425 = vunpack.c.l.b16 %v534
  %v2426 = vunpack.c.l.b16 %v535
  %v2427 = vunpack.c.l.b16 %v536
  %v2428 = vunpack.c.l.b16 %v537
  %v2429 = vunpack.c.l.b16 %v538
  %v2430 = vunpack.c.l.b16 %v539
  %v2431 = vunpack.c.l.b16 %v540
  %v2432 = vunpack.c.l.b16 %v541
  %v2433 = vunpack.c.l.b16 %v542
  %v2434 = vunpack.c.l.b16 %v543
  %v2435 = vunpack.c.l.b16 %v544
  %v2436 = vunpack.c.l.b16 %v545
  %v2437 = vunpack.c.l.b16 %v546
  %v2438 = vunpack.c.l.b16 %v547
  %v2439 = vunpack.c.l.b16 %v548
  %v2440 = vunpack.c.l.b16 %v549
  %v2441 = vunpack.c.l.b16 %v550
  %v2442 = vunpack.c.l.b16 %v551
  %v2443 = vunpack.c.l.b16 %v552
  %v2444 = vunpack.c.l.b16 %v553
  %v2445 = vunpack.c.l.b16 %v554
  %v2446 = vunpack.c.l.b16 %v555
  %v2447 = vunpack.c.l.b16 %v556
  %v2448 = vunpack.c.l.b16 %v557
  %v2449 = vunpack.c.l.b16 %v558
  %v2450 = vunpack.c.l.b16 %v559
  %v2451 = vunpack.c.l.b16 %v560
  %v2452 = vunpack.c.l.b16 %v561
  %v2453 = vunpack.c.l.b16 %v562
  %v2454 = vunpack.c.l.b16 %v563
  %v2455 = vunpack.c.l.b16 %v564
  %v2456 = vunpack.c.l.b16 %v565
  %v2457 = vunpack.c.l.b16 %v566
  %v2458 = vunpack.c.l.b16 %v567
  %v2459 = vunpack.c.l.b16 %v568
  %v2460 = vunpack.c.l.b16 %v569
  %v2461 = vunpack.c.l.b16 %v570
  %v2462 = vunpack.c.l.b16 %v571
  %v2463 = vunpack.c.l.b16 %v572
  %v2464 = vunpack.c.l.b16 %v573
  %v2465 = vunpack.c.l.b16 %v574
  %v2466 = vunpack.c.l.b16 %v575
  %v2467 = vunpack.c.l.b16 %v576
  %v2468 = vunpack.c.l.b16 %v577
  %v2469 = vunpack.c.l.b16 %v578
  %v2470 = vunpack.c.l.b16 %v579
  %v2471 = vunpack.c.l.b16 %v580
  %v2472 = vunpack.c.l.b16 %v581
  %v2473 = vunpack.c.l.b16 %v582
  %v2474 = vunpack.c.l.b16 %v583
  %v2475 = vunpack.c.l.b16 %v584
  %v2476 = vunpack.c.l.b16 %v585
  %v2477 = vunpack.c.l.b16 %v586
  %v2478 = vunpack.c.l.b16 %v587
  %v2479 = vunpack.c.l.b16 %v588
  %v2480 = vunpack.c.l.b16 %v589
  %v2481 = vunpack.c.l.b16 %v590
  %v2482 = vunpack.c.l.b16 %v591
  %v2483 = vunpack.c.l.b16 %v592
  %v2484 = vunpack.c.l.b16 %v593
  %v2485 = vunpack.c.l.b16 %v594
  %v2486 = vunpack.c.l.b16 %v595
  %v2487 = vunpack.c.l.b16 %v596
  %v2488 = vunpack.c.l.b16 %v597
  %v2489 = vunpack.c.l.b16 %v598
  %v2490 = vunpack.c.l.b16 %v599
  %v2491 = vunpack.c.l.b16 %v600
  %v2492 = vunpack.c.l.b16 %v601
  %v2493 = vunpack.c.l.b16 %v602
  %v2494 = vunpack.c.l.b16 %v603
  %v2495 = vunpack.c.l.b16 %v604
  %v2496 = vunpack.c.l.b16 %v605
  %v2497 = vunpack.c.l.b16 %v606
  %v2498 = vunpack.c.l.b16 %v607
  %v2499 = vunpack.c.l.b16 %v608
  %v2500 = vunpack.c.l.b16 %v609
  %v2501 = vunpack.c.l.b16 %v610
  %v2502 = vunpack.c.l.b16 %v611
  %v2503 = vunpack.c.l.b16 %v612
  %v2504 = vunpack.c.l.b16 %v613
  %v2505 = vunpack.c.l.b16 %v614
  %v2506 = vunpack.c.l.b16 %v615
  %v2507 = vunpack.c.l.b16 %v616
  %v2508 = vunpack.c.l.b16 %v617
  %v2509 = vunpack.c.l.b16 %v618
  %v2510 = vunpack.c.l.b16 %v619
  %v2511 = vunpack.c.l.b16 %v620
  %v2512 = vunpack.c.l.b16 %v621
  %v2513 = vunpack.c.l.b16 %v622
  %v2514 = vunpack.c.l.b16 %v623
  %v2515 = vunpack.c.l.b16 %v624
  %v2516 = vunpack.c.l.b16 %v625
  %v2517 = vunpack.c.l.b16 %v626
  %v2518 = vunpack.c.l.b16 %v627
  %v2519 = vunpack.c.l.b16 %v628
  %v2520 = vunpack.c.l.b16 %v629
  %v2521 = vunpack.c.l.b16 %v630
  %v2522 = vunpack.c.l.b16 %v631
  %v2523 = vunpack.c.l.b16 %v632
  %v2524 = vunpack.c.l.b16 %v633
  %v2525 = vunpack.c.l.b16 %v634
  %v2526 = vunpack.c.l.b16 %v635
  %v2527 = vunpack.c.l.b16 %v636
  %v2528 = vunpack.c.l.b16 %v637
  %v2529 = vunpack.c.l.b16 %v638
  %v2530 = vunpack.c.l.b16 %v639
  %v2531 = vunpack.c.l.b16 %v640
  %v2532 = vunpack.c.l.b16 %v641
  %v2533 = vunpack.c.l.b16 %v642
  %v2534 = vunpack.c.l.b16 %v643
  %v2535 = vunpack.c.l.b16 %v644
  %v2536 = vunpack.c.l.b16 %v645
  %v2537 = vunpack.c.l.b16 %v646
  %v2538 = vunpack.c.l.b16 %v647
  %v2539 = vunpack.c.l.b16 %v648
  %v2540 = vunpack.c.l.b16 %v649
  %v2541 = vunpack.c.l.b16 %v650
  %v2542 = vunpack.c.l.b16 %v651
  %v2543 = vunpack.c.l.b16 %v652
  %v2544 = vunpack.c.l.b16 %v653
  %v2545 = vunpack.c.l.b16 %v654
  %v2546 = vunpack.c.l.b16 %v655
  %v2547 = vunpack.c.l.b16 %v656
  %v2548 = vunpack.c.l.b16 %v657
  %v2549 = vunpack.c.l.b16 %v658
  %v2550 = vunpack.c.l.b16 %v659
  %v2551 = vunpack.c.l.b16 %v660
  %v2552 = vunpack.c.l.b16 %v661
  %v2553 = vunpack.c.l.b16 %v662
  %v2554 = vunpack.c.l.b16 %v663
  %v2555 = vunpack.c.l.b16 %v664
  %v2556 = vunpack.c.l.b16 %v665
  %v2557 = vunpack.c.l.b16 %v666
  %v2558 = vunpack.c.l.b16 %v667
  %v2559 = vunpack.c.l.b16 %v668
  %v2560 = vunpack.c.l.b16 %v669
  %v2561 = vunpack.c.l.b16 %v670
  %v2562 = vunpack.c.l.b16 %v671
  %v2563 = vunpack.c.l.b16 %v672
  %v2564 = vunpack.c.l.b16 %v673
  %v2565 = vunpack.c.l.b16 %v674
  %v2566 = vunpack.c.l.b16 %v675
  %v2567 = vunpack.c.l.b16 %v676
  %v2568 = vunpack.c.l.b16 %v677
  %v2569 = vunpack.c.l.b16 %v678
  %v2570 = vunpack.c.l.b16 %v679
  %v2571 = vunpack.c.l.b16 %v680
  %v2572 = vunpack.c.l.b16 %v681
  %v2573 = vunpack.c.l.b16 %v682
  %v2574 = vunpack.c.l.b16 %v683
  %v2575 = vunpack.c.l.b16 %v684
  %v2576 = vunpack.c.l.b16 %v685
  %v2577 = vunpack.c.l.b16 %v686
  %v2578 = vunpack.c.l.b16 %v687
  %v2579 = vunpack.c.l.b16 %v688
  %v2580 = vunpack.c.l.b16 %v689
  %v2581 = vunpack.c.l.b16 %v690
  %v2582 = vunpack.c.l.b16 %v691
  %v2583 = vunpack.c.l.b16 %v692
  %v2584 = vunpack.c.l.b16 %v693
  %v2585 = vunpack.c.l.b16 %v694
  %v2586 = vunpack.c.l.b16 %v695
  %v2587 = vunpack.c.l.b16 %v696
  %v2588 = vunpack.c.l.b16 %v697
  %v2589 = vunpack.c.l.b16 %v698
  %v2590 = vunpack.c.l.b16 %v699
  %v2591 = vunpack.c.l.b16 %v700
  %v2592 = vunpack.c.l.b16 %v701
  %v2593 = vunpack.c.l.b16 %v702
  %v2594 = vunpack.c.l.b16 %v703
  %v2595 = vunpack.c.l.b16 %v704
  %v2596 = vunpack.c.l.b16 %v705
  %v2597 = vunpack.c.l.b16 %v706
  %v2598 = vunpack.c.l.b16 %v707
  %v2599 = vunpack.c.l.b16 %v708
  %v2600 = vunpack.c.l.b16 %v709
  %v2601 = vunpack.c.l.b16 %v710
  %v2602 = vunpack.c.l.b16 %v711
  %v2603 = vunpack.c.l.b16 %v712
  %v2604 = vunpack.c.l.b16 %v713
  %v2605 = vunpack.c.l.b16 %v714
  %v2606 = vunpack.c.l.b16 %v715
  %v2607 = vunpack.c.l.b16 %v716
  %v2608 = vunpack.c.l.b16 %v717
  %v2609 = vunpack.c.l.b16 %v718
  %v2610 = vunpack.c.l.b16 %v719
  %v2611 = vunpack.c.l.b16 %v720
  %v2612 = vunpack.c.l.b16 %v721
  %v2613 = vunpack.c.l.b16 %v722
  %v2614 = vunpack.c.l.b16 %v723
  %v2615 = vunpack.c.l.b16 %v724
  %v2616 = vunpack.c.l.b16 %v725
  %v2617 = vunpack.c.l.b16 %v726
  %v2618 = vunpack.c.l.b16 %v727
  %v2619 = vunpack.c.l.b16 %v728
  %v2620 = vunpack.c.l.b16 %v729
  %v2621 = vunpack.c.l.b16 %v730
  %v2622 = vunpack.c.l.b16 %v731
  %v2623 = vunpack.c.l.b16 %v732
  %v2624 = vunpack.c.l.b16 %v733
  %v2625 = vunpack.c.l.b16 %v734
  %v2626 = vunpack.c.l.b16 %v735
  %v2627 = vunpack.c.l.b16 %v736
  %v2628 = vunpack.c.l.b16 %v737
  %v2629 = vunpack.c.l.b16 %v738
  %v2630 = vunpack.c.l.b16 %v739
  %v2631 = vunpack.c.l.b16 %v740
  %v2632 = vunpack.c.l.b16 %v741
  %v2633 = vunpack.c.l.b16 %v742
  %v2634 = vunpack.c.l.b16 %v743
  %v2635 = vunpack.c.l.b16 %v744
  %v2636 = vunpack.c.l.b16 %v745
  %v2637 = vunpack.c.l.b16 %v746
  %v2638 = vunpack.c.l.b16 %v747
  %v2639 = vunpack.c.l.b16 %v748
  %v2640 = vunpack.c.l.b16 %v749
  %v2641 = vunpack.c.l.b16 %v750
  %v2642 = vunpack.c.l.b16 %v751
  %v2643 = vunpack.c.l.b16 %v752
  %v2644 = vunpack.c.l.b16 %v753
  %v2645 = vunpack.c.l.b16 %v754
  %v2646 = vunpack.c.l.b16 %v755
  %v2647 = vunpack.c.l.b16 %v756
  %v2648 = vunpack.c.l.b16 %v757
  %v2649 = vunpack.c.l.b16 %v758
  %v2650 = vunpack.c.l.b16 %v759
  %v2651 = vunpack.c.l.b16 %v760
  %v2652 = vunpack.c.l.b16 %v761
  %v2653 = vunpack.c.l.b16 %v762
  %v2654 = vunpack.c.l.b16 %v763
  %v2655 = vunpack.c.l.b16 %v764
  %v2656 = vunpack.c.l.b16 %v765
  %v2657 = vunpack.c.l.b16 %v766
  %v2658 = vunpack.c.l.b16 %v767
  %v2659 = vunpack.c.l.b16 %v768
  %v2660 = vunpack.c.l.b16 %v769
  %v2661 = vunpack.c.l.b16 %v770
  %v2662 = vunpack.c.l.b16 %v771
  %v2663 = vunpack.c.l.b16 %v772
  %v2664 = vunpack.c.l.b16 %v773
  %v2665 = vunpack.c.l.b16 %v774
  %v2666 = vunpack.c.l.b16 %v775
  %v2667 = vunpack.c.l.b16 %v776
  %v2668 = vunpack.c.l.b16 %v777
  %v2669 = vunpack.c.l.b16 %v778
  %v2670 = vunpack.c.l.b16 %v779
  %v2671 = vunpack.c.l.b16 %v780
  %v2672 = vunpack.c.l.b16 %v781
  %v2673 = vunpack.c.l.b16 %v782
  %v2674 = vunpack.c.l.b16 %v783
  %v2675 = vunpack.c.l.b16 %v784
  %v2676 = vunpack.c.l.b16 %v785
  %v2677 = vunpack.c.l.b16 %v786
  %v2678 = vunpack.c.l.b16 %v787
  %v2679 = vunpack.c.l.b16 %v788
  %v2680 = vunpack.c.l.b16 %v789
  %v2681 = vunpack.c.l.b16 %v790
  %v2682 = vunpack.c.l.b16 %v791
  %v2683 = vunpack.c.l.b16 %v792
  %v2684 = vunpack.c.l.b16 %v793
  %v2685 = vunpack.c.l.b16 %v794
  %v2686 = vunpack.c.l.b16 %v795
  %v2687 = vunpack.c.l.b16 %v796
  %v2688 = vunpack.c.l.b16 %v797
  %v2689 = vpack.c.b16 %v1922, %v1921
  %v2690 = vpack.c.b16 %v1924, %v1923
  %v2691 = vpack.c.b16 %v1926, %v1925
  %v2692 = vpack.c.b16 %v1928, %v1927
  %v2693 = vpack.c.b16 %v1930, %v1929
  %v2694 = vpack.c.b16 %v1932, %v1931
  %v2695 = vpack.c.b16 %v1934, %v1933
  %v2696 = vpack.c.b16 %v1936, %v1935
  %v2697 = vpack.c.b16 %v1938, %v1937
  %v2698 = vpack.c.b16 %v1940, %v1939
  %v2699 = vpack.c.b16 %v1942, %v1941
  %v2700 = vpack.c.b16 %v1944, %v1943
  %v2701 = vpack.c.b16 %v1946, %v1945
  %v2702 = vpack.c.b16 %v1948, %v1947
  %v2703 = vpack.c.b16 %v1950, %v1949
  %v2704 = vpack.c.b16 %v1952, %v1951
  %v2705 = vpack.c.b16 %v1954, %v1953
  %v2706 = vpack.c.b16 %v1956, %v1955
  %v2707 = vpack.c.b16 %v1958, %v1957
  %v2708 = vpack.c.b16 %v1960, %v1959
  %v2709 = vpack.c.b16 %v1962, %v1961
  %v2710 = vpack.c.b16 %v1964, %v1963
  %v2711 = vpack.c.b16 %v1966, %v1965
  %v2712 = vpack.c.b16 %v1968, %v1967
  %v2713 = vpack.c.b16 %v1970, %v1969
  %v2714 = vpack.c.b16 %v1972, %v1971
  %v2715 = vpack.c.b16 %v1974, %v1973
  %v2716 = vpack.c.b16 %v1976, %v1975
  %v2717 = vpack.c.b16 %v1978, %v1977
  %v2718 = vpack.c.b16 %v1980, %v1979
  %v2719 = vpack.c.b16 %v1982, %v1981
  %v2720 = vpack.c.b16 %v1984, %v1983
  %v2721 = vpack.c.b16 %v1986, %v1985
  %v2722 = vpack.c.b16 %v1988, %v1987
  %v2723 = vpack.c.b16 %v1990, %v1989
  %v2724 = vpack.c.b16 %v1992, %v1991
  %v2725 = vpack.c.b16 %v1994, %v1993
  %v2726 = vpack.c.b16 %v1996, %v1995
  %v2727 = vpack.c.b16 %v1998, %v1997
  %v2728 = vpack.c.b16 %v2000, %v1999
  %v2729 = vpack.c.b16 %v2002, %v2001
  %v2730 = vpack.c.b16 %v2004, %v2003
  %v2731 = vpack.c.b16 %v2006, %v2005
  %v2732 = vpack.c.b16 %v2008, %v2007
  %v2733 = vpack.c.b16 %v2010, %v2009
  %v2734 = vpack.c.b16 %v2012, %v2011
  %v2735 = vpack.c.b16 %v2014, %v2013
  %v2736 = vpack.c.b16 %v2016, %v2015
  %v2737 = vpack.c.b16 %v2018, %v2017
  %v2738 = vpack.c.b16 %v2020, %v2019
  %v2739 = vpack.c.b16 %v2022, %v2021
  %v2740 = vpack.c.b16 %v2024, %v2023
  %v2741 = vpack.c.b16 %v2026, %v2025
  %v2742 = vpack.c.b16 %v2028, %v2027
  %v2743 = vpack.c.b16 %v2030, %v2029
  %v2744 = vpack.c.b16 %v2032, %v2031
  %v2745 = vpack.c.b16 %v2034, %v2033
  %v2746 = vpack.c.b16 %v2036, %v2035
  %v2747 = vpack.c.b16 %v2038, %v2037
  %v2748 = vpack.c.b16 %v2040, %v2039
  %v2749 = vpack.c.b16 %v2042, %v2041
  %v2750 = vpack.c.b16 %v2044, %v2043
  %v2751 = vpack.c.b16 %v2046, %v2045
  %v2752 = vpack.c.b16 %v2048, %v2047
  %v2753 = vpack.c.b16 %v2050, %v2049
  %v2754 = vpack.c.b16 %v2052, %v2051
  %v2755 = vpack.c.b16 %v2054, %v2053
  %v2756 = vpack.c.b16 %v2056, %v2055
  %v2757 = vpack.c.b16 %v2058, %v2057
  %v2758 = vpack.c.b16 %v2060, %v2059
  %v2759 = vpack.c.b16 %v2062, %v2061
  %v2760 = vpack.c.b16 %v2064, %v2063
  %v2761 = vpack.c.b16 %v2066, %v2065
  %v2762 = vpack.c.b16 %v2068, %v2067
  %v2763 = vpack.c.b16 %v2070, %v2069
  %v2764 = vpack.c.b16 %v2072, %v2071
  %v2765 = vpack.c.b16 %v2074, %v2073
  %v2766 = vpack.c.b16 %v2076, %v2075
  %v2767 = vpack.c.b16 %v2078, %v2077
  %v2768 = vpack.c.b16 %v2080, %v2079
  %v2769 = vpack.c.b16 %v2082, %v2081
  %v2770 = vpack.c.b16 %v2084, %v2083
  %v2771 = vpack.c.b16 %v2086, %v2085
  %v2772 = vpack.c.b16 %v2088, %v2087
  %v2773 = vpack.c.b16 %v2090, %v2089
  %v2774 = vpack.c.b16 %v2092, %v2091
  %v2775 = vpack.c.b16 %v2094, %v2093
  %v2776 = vpack.c.b16 %v2096, %v2095
  %v2777 = vpack.c.b16 %v2098, %v2097
  %v2778 = vpack.c.b16 %v2100, %v2099
  %v2779 = vpack.c.b16 %v2102, %v2101
  %v2780 = vpack.c.b16 %v2104, %v2103
  %v2781 = vpack.c.b16 %v2106, %v2105
  %v2782 = vpack.c.b16 %v2108, %v2107
  %v2783 = vpack.c.b16 %v2110, %v2109
  %v2784 = vpack.c.b16 %v2112, %v2111
  %v2785 = vpack.c.b16 %v2114, %v2113
  %v2786 = vpack.c.b16 %v2116, %v2115
  %v2787 = vpack.c.b16 %v2118, %v2117
  %v2788 = vpack.c.b16 %v2120, %v2119
  %v2789 = vpack.c.b16 %v2122, %v2121
  %v2790 = vpack.c.b16 %v2124, %v2123
  %v2791 = vpack.c.b16 %v2126, %v2125
  %v2792 = vpack.c.b16 %v2128, %v2127
  %v2793 = vpack.c.b16 %v2130, %v2129
  %v2794 = vpack.c.b16 %v2132, %v2131
  %v2795 = vpack.c.b16 %v2134, %v2133
  %v2796 = vpack.c.b16 %v2136, %v2135
  %v2797 = vpack.c.b16 %v2138, %v2137
  %v2798 = vpack.c.b16 %v2140, %v2139
  %v2799 = vpack.c.b16 %v2142, %v2141
  %v2800 = vpack.c.b16 %v2144, %v2143
  %v2801 = vpack.c.b16 %v2146, %v2145
  %v2802 = vpack.c.b16 %v2148, %v2147
  %v2803 = vpack.c.b16 %v2150, %v2149
  %v2804 = vpack.c.b16 %v2152, %v2151
  %v2805 = vpack.c.b16 %v2154, %v2153
  %v2806 = vpack.c.b16 %v2156, %v2155
  %v2807 = vpack.c.b16 %v2158, %v2157
  %v2808 = vpack.c.b16 %v2160, %v2159
  %v2809 = vpack.c.b16 %v2162, %v2161
  %v2810 = vpack.c.b16 %v2164, %v2163
  %v2811 = vpack.c.b16 %v2166, %v2165
  %v2812 = vpack.c.b16 %v2168, %v2167
  %v2813 = vpack.c.b16 %v2170, %v2169
  %v2814 = vpack.c.b16 %v2172, %v2171
  %v2815 = vpack.c.b16 %v2174, %v2173
  %v2816 = vpack.c.b16 %v2176, %v2175
  %v2817 = vpack.c.b16 %v2178, %v2177
  %v2818 = vpack.c.b16 %v2180, %v2179
  %v2819 = vpack.c.b16 %v2182, %v2181
  %v2820 = vpack.c.b16 %v2184, %v2183
  %v2821 = vpack.c.b16 %v2186, %v2185
  %v2822 = vpack.c.b16 %v2188, %v2187
  %v2823 = vpack.c.b16 %v2190, %v2189
  %v2824 = vpack.c.b16 %v2192, %v2191
  %v2825 = vpack.c.b16 %v2194, %v2193
  %v2826 = vpack.c.b16 %v2196, %v2195
  %v2827 = vpack.c.b16 %v2198, %v2197
  %v2828 = vpack.c.b16 %v2200, %v2199
  %v2829 = vpack.c.b16 %v2202, %v2201
  %v2830 = vpack.c.b16 %v2204, %v2203
  %v2831 = vpack.c.b16 %v2206, %v2205
  %v2832 = vpack.c.b16 %v2208, %v2207
  %v2833 = vpack.c.b16 %v2210, %v2209
  %v2834 = vpack.c.b16 %v2212, %v2211
  %v2835 = vpack.c.b16 %v2214, %v2213
  %v2836 = vpack.c.b16 %v2216, %v2215
  %v2837 = vpack.c.b16 %v2218, %v2217
  %v2838 = vpack.c.b16 %v2220, %v2219
  %v2839 = vpack.c.b16 %v2222, %v2221
  %v2840 = vpack.c.b16 %v2224, %v2223
  %v2841 = vpack.c.b16 %v2226, %v2225
  %v2842 = vpack.c.b16 %v2228, %v2227
  %v2843 = vpack.c.b16 %v2230, %v2229
  %v2844 = vpack.c.b16 %v2232, %v2231
  %v2845 = vpack.c.b16 %v2234, %v2233
  %v2846 = vpack.c.b16 %v2236, %v2235
  %v2847 = vpack.c.b16 %v2238, %v2237
  %v2848 = vpack.c.b16 %v2240, %v2239
  %v2849 = vpack.c.b16 %v2242, %v2241
  %v2850 = vpack.c.b16 %v2244, %v2243
  %v2851 = vpack.c.b16 %v2246, %v2245
  %v2852 = vpack.c.b16 %v2248, %v2247
  %v2853 = vpack.c.b16 %v2250, %v2249
  %v2854 = vpack.c.b16 %v2252, %v2251
  %v2855 = vpack.c.b16 %v2254, %v2253
  %v2856 = vpack.c.b16 %v2256, %v2255
  %v2857 = vpack.c.b16 %v2258, %v2257
  %v2858 = vpack.c.b16 %v2260, %v2259
  %v2859 = vpack.c.b16 %v2262, %v2261
  %v2860 = vpack.c.b16 %v2264, %v2263
  %v2861 = vpack.c.b16 %v2266, %v2265
  %v2862 = vpack.c.b16 %v2268, %v2267
  %v2863 = vpack.c.b16 %v2270, %v2269
  %v2864 = vpack.c.b16 %v2272, %v2271
  %v2865 = vpack.c.b16 %v2274, %v2273
  %v2866 = vpack.c.b16 %v2276, %v2275
  %v2867 = vpack.c.b16 %v2278, %v2277
  %v2868 = vpack.c.b16 %v2280, %v2279
  %v2869 = vpack.c.b16 %v2282, %v2281
  %v2870 = vpack.c.b16 %v2284, %v2283
  %v2871 = vpack.c.b16 %v2286, %v2285
  %v2872 = vpack.c.b16 %v2288, %v2287
  %v2873 = vpack.c.b16 %v2290, %v2289
  %v2874 = vpack.c.b16 %v2292, %v2291
  %v2875 = vpack.c.b16 %v2294, %v2293
  %v2876 = vpack.c.b16 %v2296, %v2295
  %v2877 = vpack.c.b16 %v2298, %v2297
  %v2878 = vpack.c.b16 %v2300, %v2299
  %v2879 = vpack.c.b16 %v2302, %v2301
  %v2880 = vpack.c.b16 %v2304, %v2303
  %v2881 = vpack.c.b16 %v2306, %v2305
  %v2882 = vpack.c.b16 %v2308, %v2307
  %v2883 = vpack.c.b16 %v2310, %v2309
  %v2884 = vpack.c.b16 %v2312, %v2311
  %v2885 = vpack.c.b16 %v2314, %v2313
  %v2886 = vpack.c.b16 %v2316, %v2315
  %v2887 = vpack.c.b16 %v2318, %v2317
  %v2888 = vpack.c.b16 %v2320, %v2319
  %v2889 = vpack.c.b16 %v2322, %v2321
  %v2890 = vpack.c.b16 %v2324, %v2323
  %v2891 = vpack.c.b16 %v2326, %v2325
  %v2892 = vpack.c.b16 %v2328, %v2327
  %v2893 = vpack.c.b16 %v2330, %v2329
  %v2894 = vpack.c.b16 %v2332, %v2331
  %v2895 = vpack.c.b16 %v2334, %v2333
  %v2896 = vpack.c.b16 %v2336, %v2335
  %v2897 = vpack.c.b16 %v2338, %v2337
  %v2898 = vpack.c.b16 %v2340, %v2339
  %v2899 = vpack.c.b16 %v2342, %v2341
  %v2900 = vpack.c.b16 %v2344, %v2343
  %v2901 = vpack.c.b16 %v2346, %v2345
  %v2902 = vpack.c.b16 %v2348, %v2347
  %v2903 = vpack.c.b16 %v2350, %v2349
  %v2904 = vpack.c.b16 %v2352, %v2351
  %v2905 = vpack.c.b16 %v2354, %v2353
  %v2906 = vpack.c.b16 %v2356, %v2355
  %v2907 = vpack.c.b16 %v2358, %v2357
  %v2908 = vpack.c.b16 %v2360, %v2359
  %v2909 = vpack.c.b16 %v2362, %v2361
  %v2910 = vpack.c.b16 %v2364, %v2363
  %v2911 = vpack.c.b16 %v2366, %v2365
  %v2912 = vpack.c.b16 %v2368, %v2367
  %v2913 = vpack.c.b16 %v2370, %v2369
  %v2914 = vpack.c.b16 %v2372, %v2371
  %v2915 = vpack.c.b16 %v2374, %v2373
  %v2916 = vpack.c.b16 %v2376, %v2375
  %v2917 = vpack.c.b16 %v2378, %v2377
  %v2918 = vpack.c.b16 %v2380, %v2379
  %v2919 = vpack.c.b16 %v2382, %v2381
  %v2920 = vpack.c.b16 %v2384, %v2383
  %v2921 = vpack.c.b16 %v2386, %v2385
  %v2922 = vpack.c.b16 %v2388, %v2387
  %v2923 = vpack.c.b16 %v2390, %v2389
  %v2924 = vpack.c.b16 %v2392, %v2391
  %v2925 = vpack.c.b16 %v2394, %v2393
  %v2926 = vpack.c.b16 %v2396, %v2395
  %v2927 = vpack.c.b16 %v2398, %v2397
  %v2928 = vpack.c.b16 %v2400, %v2399
  %v2929 = vpack.c.b16 %v2402, %v2401
  %v2930 = vpack.c.b16 %v2404, %v2403
  %v2931 = vpack.c.b16 %v2406, %v2405
  %v2932 = vpack.c.b16 %v2408, %v2407
  %v2933 = vpack.c.b16 %v2410, %v2409
  %v2934 = vpack.c.b16 %v2412, %v2411
  %v2935 = vpack.c.b16 %v2414, %v2413
  %v2936 = vpack.c.b16 %v2416, %v2415
  %v2937 = vpack.c.b16 %v2418, %v2417
  %v2938 = vpack.c.b16 %v2420, %v2419
  %v2939 = vpack.c.b16 %v2422, %v2421
  %v2940 = vpack.c.b16 %v2424, %v2423
  %v2941 = vpack.c.b16 %v2426, %v2425
  %v2942 = vpack.c.b16 %v2428, %v2427
  %v2943 = vpack.c.b16 %v2430, %v2429
  %v2944 = vpack.c.b16 %v2432, %v2431
  %v2945 = vpack.c.b16 %v2434, %v2433
  %v2946 = vpack.c.b16 %v2436, %v2435
  %v2947 = vpack.c.b16 %v2438, %v2437
  %v2948 = vpack.c.b16 %v2440, %v2439
  %v2949 = vpack.c.b16 %v2442, %v2441
  %v2950 = vpack.c.b16 %v2444, %v2443
  %v2951 = vpack.c.b16 %v2446, %v2445
  %v2952 = vpack.c.b16 %v2448, %v2447
  %v2953 = vpack.c.b16 %v2450, %v2449
  %v2954 = vpack.c.b16 %v2452, %v2451
  %v2955 = vpack.c.b16 %v2454, %v2453
  %v2956 = vpack.c.b16 %v2456, %v2455
  %v2957 = vpack.c.b16 %v2458, %v2457
  %v2958 = vpack.c.b16 %v2460, %v2459
  %v2959 = vpack.c.b16 %v2462, %v2461
  %v2960 = vpack.c.b16 %v2464, %v2463
  %v2961 = vpack.c.b16 %v2466, %v2465
  %v2962 = vpack.c.b16 %v2468, %v2467
  %v2963 = vpack.c.b16 %v2470, %v2469
  %v2964 = vpack.c.b16 %v2472, %v2471
  %v2965 = vpack.c.b16 %v2474, %v2473
  %v2966 = vpack.c.b16 %v2476, %v2475
  %v2967 = vpack.c.b16 %v2478, %v2477
  %v2968 = vpack.c.b16 %v2480, %v2479
  %v2969 = vpack.c.b16 %v2482, %v2481
  %v2970 = vpack.c.b16 %v2484, %v2483
  %v2971 = vpack.c.b16 %v2486, %v2485
  %v2972 = vpack.c.b16 %v2488, %v2487
  %v2973 = vpack.c.b16 %v2490, %v2489
  %v2974 = vpack.c.b16 %v2492, %v2491
  %v2975 = vpack.c.b16 %v2494, %v2493
  %v2976 = vpack.c.b16 %v2496, %v2495
  %v2977 = vpack.c.b16 %v2498, %v2497
  %v2978 = vpack.c.b16 %v2500, %v2499
  %v2979 = vpack.c.b16 %v2502, %v2501
  %v2980 = vpack.c.b16 %v2504, %v2503
  %v2981 = vpack.c.b16 %v2506, %v2505
  %v2982 = vpack.c.b16 %v2508, %v2507
  %v2983 = vpack.c.b16 %v2510, %v2509
  %v2984 = vpack.c.b16 %v2512, %v2511
  %v2985 = vpack.c.b16 %v2514, %v2513
  %v2986 = vpack.c.b16 %v2516, %v2515
  %v2987 = vpack.c.b16 %v2518, %v2517
  %v2988 = vpack.c.b16 %v2520, %v2519
  %v2989 = vpack.c.b16 %v2522, %v2521
  %v2990 = vpack.c.b16 %v2524, %v2523
  %v2991 = vpack.c.b16 %v2526, %v2525
  %v2992 = vpack.c.b16 %v2528, %v2527
  %v2993 = vpack.c.b16 %v2530, %v2529
  %v2994 = vpack.c.b16 %v2532, %v2531
  %v2995 = vpack.c.b16 %v2534, %v2533
  %v2996 = vpack.c.b16 %v2536, %v2535
  %v2997 = vpack.c.b16 %v2538, %v2537
  %v2998 = vpack.c.b16 %v2540, %v2539
  %v2999 = vpack.c.b16 %v2542, %v2541
  %v3000 = vpack.c.b16 %v2544, %v2543
  %v3001 = vpack.c.b16 %v2546, %v2545
  %v3002 = vpack.c.b16 %v2548, %v2547
  %v3003 = vpack.c.b16 %v2550, %v2549
  %v3004 = vpack.c.b16 %v2552, %v2551
  %v3005 = vpack.c.b16 %v2554, %v2553
  %v3006 = vpack.c.b16 %v2556, %v2555
  %v3007 = vpack.c.b16 %v2558, %v2557
  %v3008 = vpack.c.b16 %v2560, %v2559
  %v3009 = vpack.c.b16 %v2562, %v2561
  %v3010 = vpack.c.b16 %v2564, %v2563
  %v3011 = vpack.c.b16 %v2566, %v2565
  %v3012 = vpack.c.b16 %v2568, %v2567
  %v3013 = vpack.c.b16 %v2570, %v2569
  %v3014 = vpack.c.b16 %v2572, %v2571
  %v3015 = vpack.c.b16 %v2574, %v2573
  %v3016 = vpack.c.b16 %v2576, %v2575
  %v3017 = vpack.c.b16 %v2578, %v2577
  %v3018 = vpack.c.b16 %v2580, %v2579
  %v3019 = vpack.c.b16 %v2582, %v2581
  %v3020 = vpack.c.b16 %v2584, %v2583
  %v3021 = vpack.c.b16 %v2586, %v2585
  %v3022 = vpack.c.b16 %v2588, %v2587
  %v3023 = vpack.c.b16 %v2590, %v2589
  %v3024 = vpack.c.b16 %v2592, %v2591
  %v3025 = vpack.c.b16 %v2594, %v2593
  %v3026 = vpack.c.b16 %v2596, %v2595
  %v3027 = vpack.c.b16 %v2598, %v2597
  %v3028 = vpack.c.b16 %v2600, %v2599
  %v3029 = vpack.c.b16 %v2602, %v2601
  %v3030 = vpack.c.b16 %v2604, %v2603
  %v3031 = vpack.c.b16 %v2606, %v2605
  %v3032 = vpack.c.b16 %v2608, %v2607
  %v3033 = vpack.c.b16 %v2610, %v2609
  %v3034 = vpack.c.b16 %v2612, %v2611
  %v3035 = vpack.c.b16 %v2614, %v2613
  %v3036 = vpack.c.b16 %v2616, %v2615
  %v3037 = vpack.c.b16 %v2618, %v2617
  %v3038 = vpack.c.b16 %v2620, %v2619
  %v3039 = vpack.c.b16 %v2622, %v2621
  %v3040 = vpack.c.b16 %v2624, %v2623
  %v3041 = vpack.c.b16 %v2626, %v2625
  %v3042 = vpack.c.b16 %v2628, %v2627
  %v3043 = vpack.c.b16 %v2630, %v2629
  %v3044 = vpack.c.b16 %v2632, %v2631
  %v3045 = vpack.c.b16 %v2634, %v2633
  %v3046 = vpack.c.b16 %v2636, %v2635
  %v3047 = vpack.c.b16 %v2638, %v2637
  %v3048 = vpack.c.b16 %v2640, %v2639
  %v3049 = vpack.c.b16 %v2642, %v2641
  %v3050 = vpack.c.b16 %v2644, %v2643
  %v3051 = vpack.c.b16 %v2646, %v2645
  %v3052 = vpack.c.b16 %v2648, %v2647
  %v3053 = vpack.c.b16 %v2650, %v2649
  %v3054 = vpack.c.b16 %v2652, %v2651
  %v3055 = vpack.c.b16 %v2654, %v2653
  %v3056 = vpack.c.b16 %v2656, %v2655
  %v3057 = vpack.c.b16 %v2658, %v2657
  %v3058 = vpack.c.b16 %v2660, %v2659
  %v3059 = vpack.c.b16 %v2662, %v2661
  %v3060 = vpack.c.b16 %v2664, %v2663
  %v3061 = vpack.c.b16 %v2666, %v2665
  %v3062 = vpack.c.b16 %v2668, %v2667
  %v3063 = vpack.c.b16 %v2670, %v2669
  %v3064 = vpack.c.b16 %v2672, %v2671
  %v3065 = vpack.c.b16 %v2674, %v2673
  %v3066 = vpack.c.b16 %v2676, %v2675
  %v3067 = vpack.c.b16 %v2678, %v2677
  %v3068 = vpack.c.b16 %v2680, %v2679
  %v3069 = vpack.c.b16 %v2682, %v2681
  %v3070 = vpack.c.b16 %v2684, %v2683
  %v3071 = vpack.c.b16 %v2686, %v2685
  %v3072 = vpack.c.b16 %v2688, %v2687
  %3457 = vmatprep.subr.bf16.mxu0 0
  %3458 = vmatpush1.bf16.msra.mxu0 %v2689
  %3459 = vmatprep.subr.bf16.mxu0 0
  %3460 = vmatpush1.bf16.msra.mxu0 %v2690
  %3461 = vmatprep.subr.bf16.mxu0 0
  %3462 = vmatpush1.bf16.msra.mxu0 %v2691
  %3463 = vmatprep.subr.bf16.mxu0 0
  %3464 = vmatpush1.bf16.msra.mxu0 %v2692
  %3465 = vmatprep.subr.bf16.mxu0 0
  %3466 = vmatpush1.bf16.msra.mxu0 %v2693
  %3467 = vmatprep.subr.bf16.mxu0 0
  %3468 = vmatpush1.bf16.msra.mxu0 %v2694
  %3469 = vmatprep.subr.bf16.mxu0 0
  %3470 = vmatpush1.bf16.msra.mxu0 %v2695
  %3471 = vmatprep.subr.bf16.mxu0 0
  %3472 = vmatpush1.bf16.msra.mxu0 %v2696
  %3473 = vmatprep.subr.bf16.mxu0 0
  %3474 = vmatpush1.bf16.msra.mxu0 %v2697
  %3475 = vmatprep.subr.bf16.mxu0 0
  %3476 = vmatpush1.bf16.msra.mxu0 %v2698
  %3477 = vmatprep.subr.bf16.mxu0 0
  %3478 = vmatpush1.bf16.msra.mxu0 %v2699
  %3479 = vmatprep.subr.bf16.mxu0 0
  %3480 = vmatpush1.bf16.msra.mxu0 %v2700
  %3481 = vmatprep.subr.bf16.mxu0 0
  %3482 = vmatpush1.bf16.msra.mxu0 %v2701
  %3483 = vmatprep.subr.bf16.mxu0 0
  %3484 = vmatpush1.bf16.msra.mxu0 %v2702
  %3485 = vmatprep.subr.bf16.mxu0 0
  %3486 = vmatpush1.bf16.msra.mxu0 %v2703
  %3487 = vmatprep.subr.bf16.mxu0 0
  %3488 = vmatpush1.bf16.msra.mxu0 %v2704
  %3489 = vmatprep.mubr.bf16.mxu0 %v848
  %3490 = vmatmul.mubr.bf16.gmra.mrb[0].mxu0 %v834
  %v3491 = vpop.f32.mrb[0].mxu0
  %v3492 = vadd.f32 %v803, %v3491
  %v3493 = vpop.f32.mrb[0].mxu0
  %v3494 = vpop.f32.mrb[0].mxu0
  %v3495 = vpop.f32.mrb[0].mxu0
  %3496 = vdwg.mxu0
  %3497 = vmatprep.subr.bf16.mxu0 0
  %3498 = vmatpush1.bf16.msra.mxu0 %v2705
  %3499 = vmatprep.subr.bf16.mxu0 0
  %3500 = vmatpush1.bf16.msra.mxu0 %v2706
  %3501 = vmatprep.subr.bf16.mxu0 0
  %3502 = vmatpush1.bf16.msra.mxu0 %v2707
  %3503 = vmatprep.subr.bf16.mxu0 0
  %3504 = vmatpush1.bf16.msra.mxu0 %v2708
  %3505 = vmatprep.subr.bf16.mxu0 0
  %3506 = vmatpush1.bf16.msra.mxu0 %v2709
  %3507 = vmatprep.subr.bf16.mxu0 0
  %3508 = vmatpush1.bf16.msra.mxu0 %v2710
  %3509 = vmatprep.subr.bf16.mxu0 0
  %3510 = vmatpush1.bf16.msra.mxu0 %v2711
  %3511 = vmatprep.subr.bf16.mxu0 0
  %3512 = vmatpush1.bf16.msra.mxu0 %v2712
  %3513 = vmatprep.subr.bf16.mxu0 0
  %3514 = vmatpush1.bf16.msra.mxu0 %v2713
  %3515 = vmatprep.subr.bf16.mxu0 0
  %3516 = vmatpush1.bf16.msra.mxu0 %v2714
  %3517 = vmatprep.subr.bf16.mxu0 0
  %3518 = vmatpush1.bf16.msra.mxu0 %v2715
  %3519 = vmatprep.subr.bf16.mxu0 0
  %3520 = vmatpush1.bf16.msra.mxu0 %v2716
  %3521 = vmatprep.subr.bf16.mxu0 0
  %3522 = vmatpush1.bf16.msra.mxu0 %v2717
  %3523 = vmatprep.subr.bf16.mxu0 0
  %3524 = vmatpush1.bf16.msra.mxu0 %v2718
  %3525 = vmatprep.subr.bf16.mxu0 0
  %3526 = vmatpush1.bf16.msra.mxu0 %v2719
  %3527 = vmatprep.subr.bf16.mxu0 0
  %3528 = vmatpush1.bf16.msra.mxu0 %v2720
  %3529 = vmatprep.mubr.bf16.mxu0 %v858
  %3530 = vmatmul.mubr.bf16.gmra.mrb[0].mxu0 %v856
  %v3531 = vpop.f32.mrb[0].mxu0
  %v3532 = vadd.f32 %v3492, %v3531
  %v3533 = vpop.f32.mrb[0].mxu0
  %v3534 = vpop.f32.mrb[0].mxu0
  %v3535 = vpop.f32.mrb[0].mxu0
  %3536 = vdwg.mxu0
  %3537 = vmatprep.subr.bf16.mxu0 0
  %3538 = vmatpush1.bf16.msra.mxu0 %v2721
  %3539 = vmatprep.subr.bf16.mxu0 0
  %3540 = vmatpush1.bf16.msra.mxu0 %v2722
  %3541 = vmatprep.subr.bf16.mxu0 0
  %3542 = vmatpush1.bf16.msra.mxu0 %v2723
  %3543 = vmatprep.subr.bf16.mxu0 0
  %3544 = vmatpush1.bf16.msra.mxu0 %v2724
  %3545 = vmatprep.subr.bf16.mxu0 0
  %3546 = vmatpush1.bf16.msra.mxu0 %v2725
  %3547 = vmatprep.subr.bf16.mxu0 0
  %3548 = vmatpush1.bf16.msra.mxu0 %v2726
  %3549 = vmatprep.subr.bf16.mxu0 0
  %3550 = vmatpush1.bf16.msra.mxu0 %v2727
  %3551 = vmatprep.subr.bf16.mxu0 0
  %3552 = vmatpush1.bf16.msra.mxu0 %v2728
  %3553 = vmatprep.subr.bf16.mxu0 0
  %3554 = vmatpush1.bf16.msra.mxu0 %v2729
  %3555 = vmatprep.subr.bf16.mxu0 0
  %3556 = vmatpush1.bf16.msra.mxu0 %v2730
  %3557 = vmatprep.subr.bf16.mxu0 0
  %3558 = vmatpush1.bf16.msra.mxu0 %v2731
  %3559 = vmatprep.subr.bf16.mxu0 0
  %3560 = vmatpush1.bf16.msra.mxu0 %v2732
  %3561 = vmatprep.subr.bf16.mxu0 0
  %3562 = vmatpush1.bf16.msra.mxu0 %v2733
  %3563 = vmatprep.subr.bf16.mxu0 0
  %3564 = vmatpush1.bf16.msra.mxu0 %v2734
  %3565 = vmatprep.subr.bf16.mxu0 0
  %3566 = vmatpush1.bf16.msra.mxu0 %v2735
  %3567 = vmatprep.subr.bf16.mxu0 0
  %3568 = vmatpush1.bf16.msra.mxu0 %v2736
  %3569 = vmatprep.mubr.bf16.mxu0 %v855
  %3570 = vmatmul.mubr.bf16.gmra.mrb[0].mxu0 %v841
  %v3571 = vpop.f32.mrb[0].mxu0
  %v3572 = vadd.f32 %v3532, %v3571
  %v3573 = vpop.f32.mrb[0].mxu0
  %v3574 = vpop.f32.mrb[0].mxu0
  %v3575 = vpop.f32.mrb[0].mxu0
  %3576 = vdwg.mxu0
  %3577 = vmatprep.subr.bf16.mxu0 0
  %3578 = vmatpush1.bf16.msra.mxu0 %v2737
  %3579 = vmatprep.subr.bf16.mxu0 0
  %3580 = vmatpush1.bf16.msra.mxu0 %v2738
  %3581 = vmatprep.subr.bf16.mxu0 0
  %3582 = vmatpush1.bf16.msra.mxu0 %v2739
  %3583 = vmatprep.subr.bf16.mxu0 0
  %3584 = vmatpush1.bf16.msra.mxu0 %v2740
  %3585 = vmatprep.subr.bf16.mxu0 0
  %3586 = vmatpush1.bf16.msra.mxu0 %v2741
  %3587 = vmatprep.subr.bf16.mxu0 0
  %3588 = vmatpush1.bf16.msra.mxu0 %v2742
  %3589 = vmatprep.subr.bf16.mxu0 0
  %3590 = vmatpush1.bf16.msra.mxu0 %v2743
  %3591 = vmatprep.subr.bf16.mxu0 0
  %3592 = vmatpush1.bf16.msra.mxu0 %v2744
  %3593 = vmatprep.subr.bf16.mxu0 0
  %3594 = vmatpush1.bf16.msra.mxu0 %v2745
  %3595 = vmatprep.subr.bf16.mxu0 0
  %3596 = vmatpush1.bf16.msra.mxu0 %v2746
  %3597 = vmatprep.subr.bf16.mxu0 0
  %3598 = vmatpush1.bf16.msra.mxu0 %v2747
  %3599 = vmatprep.subr.bf16.mxu0 0
  %3600 = vmatpush1.bf16.msra.mxu0 %v2748
  %3601 = vmatprep.subr.bf16.mxu0 0
  %3602 = vmatpush1.bf16.msra.mxu0 %v2749
  %3603 = vmatprep.subr.bf16.mxu0 0
  %3604 = vmatpush1.bf16.msra.mxu0 %v2750
  %3605 = vmatprep.subr.bf16.mxu0 0
  %3606 = vmatpush1.bf16.msra.mxu0 %v2751
  %3607 = vmatprep.subr.bf16.mxu0 0
  %3608 = vmatpush1.bf16.msra.mxu0 %v2752
  %3609 = vmatprep.mubr.bf16.mxu0 %v859
  %3610 = vmatmul.mubr.bf16.gmra.mrb[0].mxu0 %v857
  %v3611 = vpop.f32.mrb[0].mxu0
  %v3612 = vadd.f32 %v3572, %v3611
  %v3613 = vpop.f32.mrb[0].mxu0
  %v3614 = vpop.f32.mrb[0].mxu0
  %v3615 = vpop.f32.mrb[0].mxu0
  %3616 = vdwg.mxu0
  %3617 = vmatprep.subr.bf16.mxu0 0
  %3618 = vmatpush1.bf16.msra.mxu0 %v2753
  %3619 = vmatprep.subr.bf16.mxu0 0
  %3620 = vmatpush1.bf16.msra.mxu0 %v2754
  %3621 = vmatprep.subr.bf16.mxu0 0
  %3622 = vmatpush1.bf16.msra.mxu0 %v2755
  %3623 = vmatprep.subr.bf16.mxu0 0
  %3624 = vmatpush1.bf16.msra.mxu0 %v2756
  %3625 = vmatprep.subr.bf16.mxu0 0
  %3626 = vmatpush1.bf16.msra.mxu0 %v2757
  %3627 = vmatprep.subr.bf16.mxu0 0
  %3628 = vmatpush1.bf16.msra.mxu0 %v2758
  %3629 = vmatprep.subr.bf16.mxu0 0
  %3630 = vmatpush1.bf16.msra.mxu0 %v2759
  %3631 = vmatprep.subr.bf16.mxu0 0
  %3632 = vmatpush1.bf16.msra.mxu0 %v2760
  %3633 = vmatprep.subr.bf16.mxu0 0
  %3634 = vmatpush1.bf16.msra.mxu0 %v2761
  %3635 = vmatprep.subr.bf16.mxu0 0
  %3636 = vmatpush1.bf16.msra.mxu0 %v2762
  %3637 = vmatprep.subr.bf16.mxu0 0
  %3638 = vmatpush1.bf16.msra.mxu0 %v2763
  %3639 = vmatprep.subr.bf16.mxu0 0
  %3640 = vmatpush1.bf16.msra.mxu0 %v2764
  %3641 = vmatprep.subr.bf16.mxu0 0
  %3642 = vmatpush1.bf16.msra.mxu0 %v2765
  %3643 = vmatprep.subr.bf16.mxu0 0
  %3644 = vmatpush1.bf16.msra.mxu0 %v2766
  %3645 = vmatprep.subr.bf16.mxu0 0
  %3646 = vmatpush1.bf16.msra.mxu0 %v2767
  %3647 = vmatprep.subr.bf16.mxu0 0
  %3648 = vmatpush1.bf16.msra.mxu0 %v2768
  %3649 = vmatprep.mubr.bf16.mxu0 %v897
  %3650 = vmatmul.mubr.bf16.gmra.mrb[0].mxu0 %v883
  %v3651 = vpop.f32.mrb[0].mxu0
  %v3652 = vadd.f32 %v3612, %v3651
  %v3653 = vpop.f32.mrb[0].mxu0
  %v3654 = vpop.f32.mrb[0].mxu0
  %v3655 = vpop.f32.mrb[0].mxu0
  %3656 = vdwg.mxu0
  %3657 = vmatprep.subr.bf16.mxu0 0
  %3658 = vmatpush1.bf16.msra.mxu0 %v2769
  %3659 = vmatprep.subr.bf16.mxu0 0
  %3660 = vmatpush1.bf16.msra.mxu0 %v2770
  %3661 = vmatprep.subr.bf16.mxu0 0
  %3662 = vmatpush1.bf16.msra.mxu0 %v2771
  %3663 = vmatprep.subr.bf16.mxu0 0
  %3664 = vmatpush1.bf16.msra.mxu0 %v2772
  %3665 = vmatprep.subr.bf16.mxu0 0
  %3666 = vmatpush1.bf16.msra.mxu0 %v2773
  %3667 = vmatprep.subr.bf16.mxu0 0
  %3668 = vmatpush1.bf16.msra.mxu0 %v2774
  %3669 = vmatprep.subr.bf16.mxu0 0
  %3670 = vmatpush1.bf16.msra.mxu0 %v2775
  %3671 = vmatprep.subr.bf16.mxu0 0
  %3672 = vmatpush1.bf16.msra.mxu0 %v2776
  %3673 = vmatprep.subr.bf16.mxu0 0
  %3674 = vmatpush1.bf16.msra.mxu0 %v2777
  %3675 = vmatprep.subr.bf16.mxu0 0
  %3676 = vmatpush1.bf16.msra.mxu0 %v2778
  %3677 = vmatprep.subr.bf16.mxu0 0
  %3678 = vmatpush1.bf16.msra.mxu0 %v2779
  %3679 = vmatprep.subr.bf16.mxu0 0
  %3680 = vmatpush1.bf16.msra.mxu0 %v2780
  %3681 = vmatprep.subr.bf16.mxu0 0
  %3682 = vmatpush1.bf16.msra.mxu0 %v2781
  %3683 = vmatprep.subr.bf16.mxu0 0
  %3684 = vmatpush1.bf16.msra.mxu0 %v2782
  %3685 = vmatprep.subr.bf16.mxu0 0
  %3686 = vmatpush1.bf16.msra.mxu0 %v2783
  %3687 = vmatprep.subr.bf16.mxu0 0
  %3688 = vmatpush1.bf16.msra.mxu0 %v2784
  %3689 = vmatprep.mubr.bf16.mxu0 %v907
  %3690 = vmatmul.mubr.bf16.gmra.mrb[0].mxu0 %v905
  %v3691 = vpop.f32.mrb[0].mxu0
  %v3692 = vadd.f32 %v3652, %v3691
  %v3693 = vpop.f32.mrb[0].mxu0
  %v3694 = vpop.f32.mrb[0].mxu0
  %v3695 = vpop.f32.mrb[0].mxu0
  %3696 = vdwg.mxu0
  %3697 = vmatprep.subr.bf16.mxu0 0
  %3698 = vmatpush1.bf16.msra.mxu0 %v2785
  %3699 = vmatprep.subr.bf16.mxu0 0
  %3700 = vmatpush1.bf16.msra.mxu0 %v2786
  %3701 = vmatprep.subr.bf16.mxu0 0
  %3702 = vmatpush1.bf16.msra.mxu0 %v2787
  %3703 = vmatprep.subr.bf16.mxu0 0
  %3704 = vmatpush1.bf16.msra.mxu0 %v2788
  %3705 = vmatprep.subr.bf16.mxu0 0
  %3706 = vmatpush1.bf16.msra.mxu0 %v2789
  %3707 = vmatprep.subr.bf16.mxu0 0
  %3708 = vmatpush1.bf16.msra.mxu0 %v2790
  %3709 = vmatprep.subr.bf16.mxu0 0
  %3710 = vmatpush1.bf16.msra.mxu0 %v2791
  %3711 = vmatprep.subr.bf16.mxu0 0
  %3712 = vmatpush1.bf16.msra.mxu0 %v2792
  %3713 = vmatprep.subr.bf16.mxu0 0
  %3714 = vmatpush1.bf16.msra.mxu0 %v2793
  %3715 = vmatprep.subr.bf16.mxu0 0
  %3716 = vmatpush1.bf16.msra.mxu0 %v2794
  %3717 = vmatprep.subr.bf16.mxu0 0
  %3718 = vmatpush1.bf16.msra.mxu0 %v2795
  %3719 = vmatprep.subr.bf16.mxu0 0
  %3720 = vmatpush1.bf16.msra.mxu0 %v2796
  %3721 = vmatprep.subr.bf16.mxu0 0
  %3722 = vmatpush1.bf16.msra.mxu0 %v2797
  %3723 = vmatprep.subr.bf16.mxu0 0
  %3724 = vmatpush1.bf16.msra.mxu0 %v2798
  %3725 = vmatprep.subr.bf16.mxu0 0
  %3726 = vmatpush1.bf16.msra.mxu0 %v2799
  %3727 = vmatprep.subr.bf16.mxu0 0
  %3728 = vmatpush1.bf16.msra.mxu0 %v2800
  %3729 = vmatprep.mubr.bf16.mxu0 %v904
  %3730 = vmatmul.mubr.bf16.gmra.mrb[0].mxu0 %v890
  %v3731 = vpop.f32.mrb[0].mxu0
  %v3732 = vadd.f32 %v3692, %v3731
  %v3733 = vpop.f32.mrb[0].mxu0
  %v3734 = vpop.f32.mrb[0].mxu0
  %v3735 = vpop.f32.mrb[0].mxu0
  %3736 = vdwg.mxu0
  %3737 = vmatprep.subr.bf16.mxu0 0
  %3738 = vmatpush1.bf16.msra.mxu0 %v2801
  %3739 = vmatprep.subr.bf16.mxu0 0
  %3740 = vmatpush1.bf16.msra.mxu0 %v2802
  %3741 = vmatprep.subr.bf16.mxu0 0
  %3742 = vmatpush1.bf16.msra.mxu0 %v2803
  %3743 = vmatprep.subr.bf16.mxu0 0
  %3744 = vmatpush1.bf16.msra.mxu0 %v2804
  %3745 = vmatprep.subr.bf16.mxu0 0
  %3746 = vmatpush1.bf16.msra.mxu0 %v2805
  %3747 = vmatprep.subr.bf16.mxu0 0
  %3748 = vmatpush1.bf16.msra.mxu0 %v2806
  %3749 = vmatprep.subr.bf16.mxu0 0
  %3750 = vmatpush1.bf16.msra.mxu0 %v2807
  %3751 = vmatprep.subr.bf16.mxu0 0
  %3752 = vmatpush1.bf16.msra.mxu0 %v2808
  %3753 = vmatprep.subr.bf16.mxu0 0
  %3754 = vmatpush1.bf16.msra.mxu0 %v2809
  %3755 = vmatprep.subr.bf16.mxu0 0
  %3756 = vmatpush1.bf16.msra.mxu0 %v2810
  %3757 = vmatprep.subr.bf16.mxu0 0
  %3758 = vmatpush1.bf16.msra.mxu0 %v2811
  %3759 = vmatprep.subr.bf16.mxu0 0
  %3760 = vmatpush1.bf16.msra.mxu0 %v2812
  %3761 = vmatprep.subr.bf16.mxu0 0
  %3762 = vmatpush1.bf16.msra.mxu0 %v2813
  %3763 = vmatprep.subr.bf16.mxu0 0
  %3764 = vmatpush1.bf16.msra.mxu0 %v2814
  %3765 = vmatprep.subr.bf16.mxu0 0
  %3766 = vmatpush1.bf16.msra.mxu0 %v2815
  %3767 = vmatprep.subr.bf16.mxu0 0
  %3768 = vmatpush1.bf16.msra.mxu0 %v2816
  %3769 = vmatprep.mubr.bf16.mxu0 %v908
  %3770 = vmatmul.mubr.bf16.gmra.mrb[0].mxu0 %v906
  %v3771 = vpop.f32.mrb[0].mxu0
  %v3772 = vadd.f32 %v3732, %v3771
  %v3773 = vpop.f32.mrb[0].mxu0
  %v3774 = vpop.f32.mrb[0].mxu0
  %v3775 = vpop.f32.mrb[0].mxu0
  %3776 = vdwg.mxu0
  %3777 = vmatprep.subr.bf16.mxu0 0
  %3778 = vmatpush1.bf16.msra.mxu0 %v2817
  %3779 = vmatprep.subr.bf16.mxu0 0
  %3780 = vmatpush1.bf16.msra.mxu0 %v2818
  %3781 = vmatprep.subr.bf16.mxu0 0
  %3782 = vmatpush1.bf16.msra.mxu0 %v2819
  %3783 = vmatprep.subr.bf16.mxu0 0
  %3784 = vmatpush1.bf16.msra.mxu0 %v2820
  %3785 = vmatprep.subr.bf16.mxu0 0
  %3786 = vmatpush1.bf16.msra.mxu0 %v2821
  %3787 = vmatprep.subr.bf16.mxu0 0
  %3788 = vmatpush1.bf16.msra.mxu0 %v2822
  %3789 = vmatprep.subr.bf16.mxu0 0
  %3790 = vmatpush1.bf16.msra.mxu0 %v2823
  %3791 = vmatprep.subr.bf16.mxu0 0
  %3792 = vmatpush1.bf16.msra.mxu0 %v2824
  %3793 = vmatprep.subr.bf16.mxu0 0
  %3794 = vmatpush1.bf16.msra.mxu0 %v2825
  %3795 = vmatprep.subr.bf16.mxu0 0
  %3796 = vmatpush1.bf16.msra.mxu0 %v2826
  %3797 = vmatprep.subr.bf16.mxu0 0
  %3798 = vmatpush1.bf16.msra.mxu0 %v2827
  %3799 = vmatprep.subr.bf16.mxu0 0
  %3800 = vmatpush1.bf16.msra.mxu0 %v2828
  %3801 = vmatprep.subr.bf16.mxu0 0
  %3802 = vmatpush1.bf16.msra.mxu0 %v2829
  %3803 = vmatprep.subr.bf16.mxu0 0
  %3804 = vmatpush1.bf16.msra.mxu0 %v2830
  %3805 = vmatprep.subr.bf16.mxu0 0
  %3806 = vmatpush1.bf16.msra.mxu0 %v2831
  %3807 = vmatprep.subr.bf16.mxu0 0
  %3808 = vmatpush1.bf16.msra.mxu0 %v2832
  %3809 = vmatprep.mubr.bf16.mxu0 %v946
  %3810 = vmatmul.mubr.bf16.gmra.mrb[0].mxu0 %v932
  %v3811 = vpop.f32.mrb[0].mxu0
  %v3812 = vadd.f32 %v3772, %v3811
  %v3813 = vpop.f32.mrb[0].mxu0
  %v3814 = vpop.f32.mrb[0].mxu0
  %v3815 = vpop.f32.mrb[0].mxu0
  %3816 = vdwg.mxu0
  %3817 = vmatprep.subr.bf16.mxu0 0
  %3818 = vmatpush1.bf16.msra.mxu0 %v2833
  %3819 = vmatprep.subr.bf16.mxu0 0
  %3820 = vmatpush1.bf16.msra.mxu0 %v2834
  %3821 = vmatprep.subr.bf16.mxu0 0
  %3822 = vmatpush1.bf16.msra.mxu0 %v2835
  %3823 = vmatprep.subr.bf16.mxu0 0
  %3824 = vmatpush1.bf16.msra.mxu0 %v2836
  %3825 = vmatprep.subr.bf16.mxu0 0
  %3826 = vmatpush1.bf16.msra.mxu0 %v2837
  %3827 = vmatprep.subr.bf16.mxu0 0
  %3828 = vmatpush1.bf16.msra.mxu0 %v2838
  %3829 = vmatprep.subr.bf16.mxu0 0
  %3830 = vmatpush1.bf16.msra.mxu0 %v2839
  %3831 = vmatprep.subr.bf16.mxu0 0
  %3832 = vmatpush1.bf16.msra.mxu0 %v2840
  %3833 = vmatprep.subr.bf16.mxu0 0
  %3834 = vmatpush1.bf16.msra.mxu0 %v2841
  %3835 = vmatprep.subr.bf16.mxu0 0
  %3836 = vmatpush1.bf16.msra.mxu0 %v2842
  %3837 = vmatprep.subr.bf16.mxu0 0
  %3838 = vmatpush1.bf16.msra.mxu0 %v2843
  %3839 = vmatprep.subr.bf16.mxu0 0
  %3840 = vmatpush1.bf16.msra.mxu0 %v2844
  %3841 = vmatprep.subr.bf16.mxu0 0
  %3842 = vmatpush1.bf16.msra.mxu0 %v2845
  %3843 = vmatprep.subr.bf16.mxu0 0
  %3844 = vmatpush1.bf16.msra.mxu0 %v2846
  %3845 = vmatprep.subr.bf16.mxu0 0
  %3846 = vmatpush1.bf16.msra.mxu0 %v2847
  %3847 = vmatprep.subr.bf16.mxu0 0
  %3848 = vmatpush1.bf16.msra.mxu0 %v2848
  %3849 = vmatprep.mubr.bf16.mxu0 %v956
  %3850 = vmatmul.mubr.bf16.gmra.mrb[0].mxu0 %v954
  %v3851 = vpop.f32.mrb[0].mxu0
  %v3852 = vadd.f32 %v3812, %v3851
  %v3853 = vpop.f32.mrb[0].mxu0
  %v3854 = vpop.f32.mrb[0].mxu0
  %v3855 = vpop.f32.mrb[0].mxu0
  %3856 = vdwg.mxu0
  %3857 = vmatprep.subr.bf16.mxu0 0
  %3858 = vmatpush1.bf16.msra.mxu0 %v2849
  %3859 = vmatprep.subr.bf16.mxu0 0
  %3860 = vmatpush1.bf16.msra.mxu0 %v2850
  %3861 = vmatprep.subr.bf16.mxu0 0
  %3862 = vmatpush1.bf16.msra.mxu0 %v2851
  %3863 = vmatprep.subr.bf16.mxu0 0
  %3864 = vmatpush1.bf16.msra.mxu0 %v2852
  %3865 = vmatprep.subr.bf16.mxu0 0
  %3866 = vmatpush1.bf16.msra.mxu0 %v2853
  %3867 = vmatprep.subr.bf16.mxu0 0
  %3868 = vmatpush1.bf16.msra.mxu0 %v2854
  %3869 = vmatprep.subr.bf16.mxu0 0
  %3870 = vmatpush1.bf16.msra.mxu0 %v2855
  %3871 = vmatprep.subr.bf16.mxu0 0
  %3872 = vmatpush1.bf16.msra.mxu0 %v2856
  %3873 = vmatprep.subr.bf16.mxu0 0
  %3874 = vmatpush1.bf16.msra.mxu0 %v2857
  %3875 = vmatprep.subr.bf16.mxu0 0
  %3876 = vmatpush1.bf16.msra.mxu0 %v2858
  %3877 = vmatprep.subr.bf16.mxu0 0
  %3878 = vmatpush1.bf16.msra.mxu0 %v2859
  %3879 = vmatprep.subr.bf16.mxu0 0
  %3880 = vmatpush1.bf16.msra.mxu0 %v2860
  %3881 = vmatprep.subr.bf16.mxu0 0
  %3882 = vmatpush1.bf16.msra.mxu0 %v2861
  %3883 = vmatprep.subr.bf16.mxu0 0
  %3884 = vmatpush1.bf16.msra.mxu0 %v2862
  %3885 = vmatprep.subr.bf16.mxu0 0
  %3886 = vmatpush1.bf16.msra.mxu0 %v2863
  %3887 = vmatprep.subr.bf16.mxu0 0
  %3888 = vmatpush1.bf16.msra.mxu0 %v2864
  %3889 = vmatprep.mubr.bf16.mxu0 %v953
  %3890 = vmatmul.mubr.bf16.gmra.mrb[0].mxu0 %v939
  %v3891 = vpop.f32.mrb[0].mxu0
  %v3892 = vadd.f32 %v3852, %v3891
  %v3893 = vpop.f32.mrb[0].mxu0
  %v3894 = vpop.f32.mrb[0].mxu0
  %v3895 = vpop.f32.mrb[0].mxu0
  %3896 = vdwg.mxu0
  %3897 = vmatprep.subr.bf16.mxu0 0
  %3898 = vmatpush1.bf16.msra.mxu0 %v2865
  %3899 = vmatprep.subr.bf16.mxu0 0
  %3900 = vmatpush1.bf16.msra.mxu0 %v2866
  %3901 = vmatprep.subr.bf16.mxu0 0
  %3902 = vmatpush1.bf16.msra.mxu0 %v2867
  %3903 = vmatprep.subr.bf16.mxu0 0
  %3904 = vmatpush1.bf16.msra.mxu0 %v2868
  %3905 = vmatprep.subr.bf16.mxu0 0
  %3906 = vmatpush1.bf16.msra.mxu0 %v2869
  %3907 = vmatprep.subr.bf16.mxu0 0
  %3908 = vmatpush1.bf16.msra.mxu0 %v2870
  %3909 = vmatprep.subr.bf16.mxu0 0
  %3910 = vmatpush1.bf16.msra.mxu0 %v2871
  %3911 = vmatprep.subr.bf16.mxu0 0
  %3912 = vmatpush1.bf16.msra.mxu0 %v2872
  %3913 = vmatprep.subr.bf16.mxu0 0
  %3914 = vmatpush1.bf16.msra.mxu0 %v2873
  %3915 = vmatprep.subr.bf16.mxu0 0
  %3916 = vmatpush1.bf16.msra.mxu0 %v2874
  %3917 = vmatprep.subr.bf16.mxu0 0
  %3918 = vmatpush1.bf16.msra.mxu0 %v2875
  %3919 = vmatprep.subr.bf16.mxu0 0
  %3920 = vmatpush1.bf16.msra.mxu0 %v2876
  %3921 = vmatprep.subr.bf16.mxu0 0
  %3922 = vmatpush1.bf16.msra.mxu0 %v2877
  %3923 = vmatprep.subr.bf16.mxu0 0
  %3924 = vmatpush1.bf16.msra.mxu0 %v2878
  %3925 = vmatprep.subr.bf16.mxu0 0
  %3926 = vmatpush1.bf16.msra.mxu0 %v2879
  %3927 = vmatprep.subr.bf16.mxu0 0
  %3928 = vmatpush1.bf16.msra.mxu0 %v2880
  %3929 = vmatprep.mubr.bf16.mxu0 %v957
  %3930 = vmatmul.mubr.bf16.gmra.mrb[0].mxu0 %v955
  %v3931 = vpop.f32.mrb[0].mxu0
  %v3932 = vadd.f32 %v3892, %v3931
  %v3933 = vpop.f32.mrb[0].mxu0
  %v3934 = vpop.f32.mrb[0].mxu0
  %v3935 = vpop.f32.mrb[0].mxu0
  %3936 = vdwg.mxu0
  %3937 = vmatprep.subr.bf16.mxu0 0
  %3938 = vmatpush1.bf16.msra.mxu0 %v2881
  %3939 = vmatprep.subr.bf16.mxu0 0
  %3940 = vmatpush1.bf16.msra.mxu0 %v2882
  %3941 = vmatprep.subr.bf16.mxu0 0
  %3942 = vmatpush1.bf16.msra.mxu0 %v2883
  %3943 = vmatprep.subr.bf16.mxu0 0
  %3944 = vmatpush1.bf16.msra.mxu0 %v2884
  %3945 = vmatprep.subr.bf16.mxu0 0
  %3946 = vmatpush1.bf16.msra.mxu0 %v2885
  %3947 = vmatprep.subr.bf16.mxu0 0
  %3948 = vmatpush1.bf16.msra.mxu0 %v2886
  %3949 = vmatprep.subr.bf16.mxu0 0
  %3950 = vmatpush1.bf16.msra.mxu0 %v2887
  %3951 = vmatprep.subr.bf16.mxu0 0
  %3952 = vmatpush1.bf16.msra.mxu0 %v2888
  %3953 = vmatprep.subr.bf16.mxu0 0
  %3954 = vmatpush1.bf16.msra.mxu0 %v2889
  %3955 = vmatprep.subr.bf16.mxu0 0
  %3956 = vmatpush1.bf16.msra.mxu0 %v2890
  %3957 = vmatprep.subr.bf16.mxu0 0
  %3958 = vmatpush1.bf16.msra.mxu0 %v2891
  %3959 = vmatprep.subr.bf16.mxu0 0
  %3960 = vmatpush1.bf16.msra.mxu0 %v2892
  %3961 = vmatprep.subr.bf16.mxu0 0
  %3962 = vmatpush1.bf16.msra.mxu0 %v2893
  %3963 = vmatprep.subr.bf16.mxu0 0
  %3964 = vmatpush1.bf16.msra.mxu0 %v2894
  %3965 = vmatprep.subr.bf16.mxu0 0
  %3966 = vmatpush1.bf16.msra.mxu0 %v2895
  %3967 = vmatprep.subr.bf16.mxu0 0
  %3968 = vmatpush1.bf16.msra.mxu0 %v2896
  %3969 = vmatprep.mubr.bf16.mxu0 %v995
  %3970 = vmatmul.mubr.bf16.gmra.mrb[0].mxu0 %v981
  %v3971 = vpop.f32.mrb[0].mxu0
  %v3972 = vadd.f32 %v3932, %v3971
  %v3973 = vpop.f32.mrb[0].mxu0
  %v3974 = vpop.f32.mrb[0].mxu0
  %v3975 = vpop.f32.mrb[0].mxu0
  %3976 = vdwg.mxu0
  %3977 = vmatprep.subr.bf16.mxu0 0
  %3978 = vmatpush1.bf16.msra.mxu0 %v2897
  %3979 = vmatprep.subr.bf16.mxu0 0
  %3980 = vmatpush1.bf16.msra.mxu0 %v2898
  %3981 = vmatprep.subr.bf16.mxu0 0
  %3982 = vmatpush1.bf16.msra.mxu0 %v2899
  %3983 = vmatprep.subr.bf16.mxu0 0
  %3984 = vmatpush1.bf16.msra.mxu0 %v2900
  %3985 = vmatprep.subr.bf16.mxu0 0
  %3986 = vmatpush1.bf16.msra.mxu0 %v2901
  %3987 = vmatprep.subr.bf16.mxu0 0
  %3988 = vmatpush1.bf16.msra.mxu0 %v2902
  %3989 = vmatprep.subr.bf16.mxu0 0
  %3990 = vmatpush1.bf16.msra.mxu0 %v2903
  %3991 = vmatprep.subr.bf16.mxu0 0
  %3992 = vmatpush1.bf16.msra.mxu0 %v2904
  %3993 = vmatprep.subr.bf16.mxu0 0
  %3994 = vmatpush1.bf16.msra.mxu0 %v2905
  %3995 = vmatprep.subr.bf16.mxu0 0
  %3996 = vmatpush1.bf16.msra.mxu0 %v2906
  %3997 = vmatprep.subr.bf16.mxu0 0
  %3998 = vmatpush1.bf16.msra.mxu0 %v2907
  %3999 = vmatprep.subr.bf16.mxu0 0
  %4000 = vmatpush1.bf16.msra.mxu0 %v2908
  %4001 = vmatprep.subr.bf16.mxu0 0
  %4002 = vmatpush1.bf16.msra.mxu0 %v2909
  %4003 = vmatprep.subr.bf16.mxu0 0
  %4004 = vmatpush1.bf16.msra.mxu0 %v2910
  %4005 = vmatprep.subr.bf16.mxu0 0
  %4006 = vmatpush1.bf16.msra.mxu0 %v2911
  %4007 = vmatprep.subr.bf16.mxu0 0
  %4008 = vmatpush1.bf16.msra.mxu0 %v2912
  %4009 = vmatprep.mubr.bf16.mxu0 %v1005
  %4010 = vmatmul.mubr.bf16.gmra.mrb[0].mxu0 %v1003
  %v4011 = vpop.f32.mrb[0].mxu0
  %v4012 = vadd.f32 %v3972, %v4011
  %v4013 = vpop.f32.mrb[0].mxu0
  %v4014 = vpop.f32.mrb[0].mxu0
  %v4015 = vpop.f32.mrb[0].mxu0
  %4016 = vdwg.mxu0
  %4017 = vmatprep.subr.bf16.mxu0 0
  %4018 = vmatpush1.bf16.msra.mxu0 %v2913
  %4019 = vmatprep.subr.bf16.mxu0 0
  %4020 = vmatpush1.bf16.msra.mxu0 %v2914
  %4021 = vmatprep.subr.bf16.mxu0 0
  %4022 = vmatpush1.bf16.msra.mxu0 %v2915
  %4023 = vmatprep.subr.bf16.mxu0 0
  %4024 = vmatpush1.bf16.msra.mxu0 %v2916
  %4025 = vmatprep.subr.bf16.mxu0 0
  %4026 = vmatpush1.bf16.msra.mxu0 %v2917
  %4027 = vmatprep.subr.bf16.mxu0 0
  %4028 = vmatpush1.bf16.msra.mxu0 %v2918
  %4029 = vmatprep.subr.bf16.mxu0 0
  %4030 = vmatpush1.bf16.msra.mxu0 %v2919
  %4031 = vmatprep.subr.bf16.mxu0 0
  %4032 = vmatpush1.bf16.msra.mxu0 %v2920
  %4033 = vmatprep.subr.bf16.mxu0 0
  %4034 = vmatpush1.bf16.msra.mxu0 %v2921
  %4035 = vmatprep.subr.bf16.mxu0 0
  %4036 = vmatpush1.bf16.msra.mxu0 %v2922
  %4037 = vmatprep.subr.bf16.mxu0 0
  %4038 = vmatpush1.bf16.msra.mxu0 %v2923
  %4039 = vmatprep.subr.bf16.mxu0 0
  %4040 = vmatpush1.bf16.msra.mxu0 %v2924
  %4041 = vmatprep.subr.bf16.mxu0 0
  %4042 = vmatpush1.bf16.msra.mxu0 %v2925
  %4043 = vmatprep.subr.bf16.mxu0 0
  %4044 = vmatpush1.bf16.msra.mxu0 %v2926
  %4045 = vmatprep.subr.bf16.mxu0 0
  %4046 = vmatpush1.bf16.msra.mxu0 %v2927
  %4047 = vmatprep.subr.bf16.mxu0 0
  %4048 = vmatpush1.bf16.msra.mxu0 %v2928
  %4049 = vmatprep.mubr.bf16.mxu0 %v1002
  %4050 = vmatmul.mubr.bf16.gmra.mrb[0].mxu0 %v988
  %v4051 = vpop.f32.mrb[0].mxu0
  %v4052 = vadd.f32 %v4012, %v4051
  %v4053 = vpop.f32.mrb[0].mxu0
  %v4054 = vpop.f32.mrb[0].mxu0
  %v4055 = vpop.f32.mrb[0].mxu0
  %4056 = vdwg.mxu0
  %4057 = vmatprep.subr.bf16.mxu0 0
  %4058 = vmatpush1.bf16.msra.mxu0 %v2929
  %4059 = vmatprep.subr.bf16.mxu0 0
  %4060 = vmatpush1.bf16.msra.mxu0 %v2930
  %4061 = vmatprep.subr.bf16.mxu0 0
  %4062 = vmatpush1.bf16.msra.mxu0 %v2931
  %4063 = vmatprep.subr.bf16.mxu0 0
  %4064 = vmatpush1.bf16.msra.mxu0 %v2932
  %4065 = vmatprep.subr.bf16.mxu0 0
  %4066 = vmatpush1.bf16.msra.mxu0 %v2933
  %4067 = vmatprep.subr.bf16.mxu0 0
  %4068 = vmatpush1.bf16.msra.mxu0 %v2934
  %4069 = vmatprep.subr.bf16.mxu0 0
  %4070 = vmatpush1.bf16.msra.mxu0 %v2935
  %4071 = vmatprep.subr.bf16.mxu0 0
  %4072 = vmatpush1.bf16.msra.mxu0 %v2936
  %4073 = vmatprep.subr.bf16.mxu0 0
  %4074 = vmatpush1.bf16.msra.mxu0 %v2937
  %4075 = vmatprep.subr.bf16.mxu0 0
  %4076 = vmatpush1.bf16.msra.mxu0 %v2938
  %4077 = vmatprep.subr.bf16.mxu0 0
  %4078 = vmatpush1.bf16.msra.mxu0 %v2939
  %4079 = vmatprep.subr.bf16.mxu0 0
  %4080 = vmatpush1.bf16.msra.mxu0 %v2940
  %4081 = vmatprep.subr.bf16.mxu0 0
  %4082 = vmatpush1.bf16.msra.mxu0 %v2941
  %4083 = vmatprep.subr.bf16.mxu0 0
  %4084 = vmatpush1.bf16.msra.mxu0 %v2942
  %4085 = vmatprep.subr.bf16.mxu0 0
  %4086 = vmatpush1.bf16.msra.mxu0 %v2943
  %4087 = vmatprep.subr.bf16.mxu0 0
  %4088 = vmatpush1.bf16.msra.mxu0 %v2944
  %4089 = vmatprep.mubr.bf16.mxu0 %v1006
  %4090 = vmatmul.mubr.bf16.gmra.mrb[0].mxu0 %v1004
  %v4091 = vpop.f32.mrb[0].mxu0
  %v4092 = vadd.f32 %v4052, %v4091
  %v4093 = vpop.f32.mrb[0].mxu0
  %v4094 = vpop.f32.mrb[0].mxu0
  %v4095 = vpop.f32.mrb[0].mxu0
  %4096 = vdwg.mxu0
  %4097 = vmatprep.subr.bf16.mxu0 0
  %4098 = vmatpush1.bf16.msra.mxu0 %v2945
  %4099 = vmatprep.subr.bf16.mxu0 0
  %4100 = vmatpush1.bf16.msra.mxu0 %v2946
  %4101 = vmatprep.subr.bf16.mxu0 0
  %4102 = vmatpush1.bf16.msra.mxu0 %v2947
  %4103 = vmatprep.subr.bf16.mxu0 0
  %4104 = vmatpush1.bf16.msra.mxu0 %v2948
  %4105 = vmatprep.subr.bf16.mxu0 0
  %4106 = vmatpush1.bf16.msra.mxu0 %v2949
  %4107 = vmatprep.subr.bf16.mxu0 0
  %4108 = vmatpush1.bf16.msra.mxu0 %v2950
  %4109 = vmatprep.subr.bf16.mxu0 0
  %4110 = vmatpush1.bf16.msra.mxu0 %v2951
  %4111 = vmatprep.subr.bf16.mxu0 0
  %4112 = vmatpush1.bf16.msra.mxu0 %v2952
  %4113 = vmatprep.subr.bf16.mxu0 0
  %4114 = vmatpush1.bf16.msra.mxu0 %v2953
  %4115 = vmatprep.subr.bf16.mxu0 0
  %4116 = vmatpush1.bf16.msra.mxu0 %v2954
  %4117 = vmatprep.subr.bf16.mxu0 0
  %4118 = vmatpush1.bf16.msra.mxu0 %v2955
  %4119 = vmatprep.subr.bf16.mxu0 0
  %4120 = vmatpush1.bf16.msra.mxu0 %v2956
  %4121 = vmatprep.subr.bf16.mxu0 0
  %4122 = vmatpush1.bf16.msra.mxu0 %v2957
  %4123 = vmatprep.subr.bf16.mxu0 0
  %4124 = vmatpush1.bf16.msra.mxu0 %v2958
  %4125 = vmatprep.subr.bf16.mxu0 0
  %4126 = vmatpush1.bf16.msra.mxu0 %v2959
  %4127 = vmatprep.subr.bf16.mxu0 0
  %4128 = vmatpush1.bf16.msra.mxu0 %v2960
  %4129 = vmatprep.mubr.bf16.mxu0 %v1044
  %4130 = vmatmul.mubr.bf16.gmra.mrb[0].mxu0 %v1030
  %v4131 = vpop.f32.mrb[0].mxu0
  %v4132 = vadd.f32 %v4092, %v4131
  %v4133 = vpop.f32.mrb[0].mxu0
  %v4134 = vpop.f32.mrb[0].mxu0
  %v4135 = vpop.f32.mrb[0].mxu0
  %4136 = vdwg.mxu0
  %4137 = vmatprep.subr.bf16.mxu0 0
  %4138 = vmatpush1.bf16.msra.mxu0 %v2961
  %4139 = vmatprep.subr.bf16.mxu0 0
  %4140 = vmatpush1.bf16.msra.mxu0 %v2962
  %4141 = vmatprep.subr.bf16.mxu0 0
  %4142 = vmatpush1.bf16.msra.mxu0 %v2963
  %4143 = vmatprep.subr.bf16.mxu0 0
  %4144 = vmatpush1.bf16.msra.mxu0 %v2964
  %4145 = vmatprep.subr.bf16.mxu0 0
  %4146 = vmatpush1.bf16.msra.mxu0 %v2965
  %4147 = vmatprep.subr.bf16.mxu0 0
  %4148 = vmatpush1.bf16.msra.mxu0 %v2966
  %4149 = vmatprep.subr.bf16.mxu0 0
  %4150 = vmatpush1.bf16.msra.mxu0 %v2967
  %4151 = vmatprep.subr.bf16.mxu0 0
  %4152 = vmatpush1.bf16.msra.mxu0 %v2968
  %4153 = vmatprep.subr.bf16.mxu0 0
  %4154 = vmatpush1.bf16.msra.mxu0 %v2969
  %4155 = vmatprep.subr.bf16.mxu0 0
  %4156 = vmatpush1.bf16.msra.mxu0 %v2970
  %4157 = vmatprep.subr.bf16.mxu0 0
  %4158 = vmatpush1.bf16.msra.mxu0 %v2971
  %4159 = vmatprep.subr.bf16.mxu0 0
  %4160 = vmatpush1.bf16.msra.mxu0 %v2972
  %4161 = vmatprep.subr.bf16.mxu0 0
  %4162 = vmatpush1.bf16.msra.mxu0 %v2973
  %4163 = vmatprep.subr.bf16.mxu0 0
  %4164 = vmatpush1.bf16.msra.mxu0 %v2974
  %4165 = vmatprep.subr.bf16.mxu0 0
  %4166 = vmatpush1.bf16.msra.mxu0 %v2975
  %4167 = vmatprep.subr.bf16.mxu0 0
  %4168 = vmatpush1.bf16.msra.mxu0 %v2976
  %4169 = vmatprep.mubr.bf16.mxu0 %v1054
  %4170 = vmatmul.mubr.bf16.gmra.mrb[0].mxu0 %v1052
  %v4171 = vpop.f32.mrb[0].mxu0
  %v4172 = vadd.f32 %v4132, %v4171
  %v4173 = vpop.f32.mrb[0].mxu0
  %v4174 = vpop.f32.mrb[0].mxu0
  %v4175 = vpop.f32.mrb[0].mxu0
  %4176 = vdwg.mxu0
  %4177 = vmatprep.subr.bf16.mxu0 0
  %4178 = vmatpush1.bf16.msra.mxu0 %v2977
  %4179 = vmatprep.subr.bf16.mxu0 0
  %4180 = vmatpush1.bf16.msra.mxu0 %v2978
  %4181 = vmatprep.subr.bf16.mxu0 0
  %4182 = vmatpush1.bf16.msra.mxu0 %v2979
  %4183 = vmatprep.subr.bf16.mxu0 0
  %4184 = vmatpush1.bf16.msra.mxu0 %v2980
  %4185 = vmatprep.subr.bf16.mxu0 0
  %4186 = vmatpush1.bf16.msra.mxu0 %v2981
  %4187 = vmatprep.subr.bf16.mxu0 0
  %4188 = vmatpush1.bf16.msra.mxu0 %v2982
  %4189 = vmatprep.subr.bf16.mxu0 0
  %4190 = vmatpush1.bf16.msra.mxu0 %v2983
  %4191 = vmatprep.subr.bf16.mxu0 0
  %4192 = vmatpush1.bf16.msra.mxu0 %v2984
  %4193 = vmatprep.subr.bf16.mxu0 0
  %4194 = vmatpush1.bf16.msra.mxu0 %v2985
  %4195 = vmatprep.subr.bf16.mxu0 0
  %4196 = vmatpush1.bf16.msra.mxu0 %v2986
  %4197 = vmatprep.subr.bf16.mxu0 0
  %4198 = vmatpush1.bf16.msra.mxu0 %v2987
  %4199 = vmatprep.subr.bf16.mxu0 0
  %4200 = vmatpush1.bf16.msra.mxu0 %v2988
  %4201 = vmatprep.subr.bf16.mxu0 0
  %4202 = vmatpush1.bf16.msra.mxu0 %v2989
  %4203 = vmatprep.subr.bf16.mxu0 0
  %4204 = vmatpush1.bf16.msra.mxu0 %v2990
  %4205 = vmatprep.subr.bf16.mxu0 0
  %4206 = vmatpush1.bf16.msra.mxu0 %v2991
  %4207 = vmatprep.subr.bf16.mxu0 0
  %4208 = vmatpush1.bf16.msra.mxu0 %v2992
  %4209 = vmatprep.mubr.bf16.mxu0 %v1051
  %4210 = vmatmul.mubr.bf16.gmra.mrb[0].mxu0 %v1037
  %v4211 = vpop.f32.mrb[0].mxu0
  %v4212 = vadd.f32 %v4172, %v4211
  %v4213 = vpop.f32.mrb[0].mxu0
  %v4214 = vpop.f32.mrb[0].mxu0
  %v4215 = vpop.f32.mrb[0].mxu0
  %4216 = vdwg.mxu0
  %4217 = vmatprep.subr.bf16.mxu0 0
  %4218 = vmatpush1.bf16.msra.mxu0 %v2993
  %4219 = vmatprep.subr.bf16.mxu0 0
  %4220 = vmatpush1.bf16.msra.mxu0 %v2994
  %4221 = vmatprep.subr.bf16.mxu0 0
  %4222 = vmatpush1.bf16.msra.mxu0 %v2995
  %4223 = vmatprep.subr.bf16.mxu0 0
  %4224 = vmatpush1.bf16.msra.mxu0 %v2996
  %4225 = vmatprep.subr.bf16.mxu0 0
  %4226 = vmatpush1.bf16.msra.mxu0 %v2997
  %4227 = vmatprep.subr.bf16.mxu0 0
  %4228 = vmatpush1.bf16.msra.mxu0 %v2998
  %4229 = vmatprep.subr.bf16.mxu0 0
  %4230 = vmatpush1.bf16.msra.mxu0 %v2999
  %4231 = vmatprep.subr.bf16.mxu0 0
  %4232 = vmatpush1.bf16.msra.mxu0 %v3000
  %4233 = vmatprep.subr.bf16.mxu0 0
  %4234 = vmatpush1.bf16.msra.mxu0 %v3001
  %4235 = vmatprep.subr.bf16.mxu0 0
  %4236 = vmatpush1.bf16.msra.mxu0 %v3002
  %4237 = vmatprep.subr.bf16.mxu0 0
  %4238 = vmatpush1.bf16.msra.mxu0 %v3003
  %4239 = vmatprep.subr.bf16.mxu0 0
  %4240 = vmatpush1.bf16.msra.mxu0 %v3004
  %4241 = vmatprep.subr.bf16.mxu0 0
  %4242 = vmatpush1.bf16.msra.mxu0 %v3005
  %4243 = vmatprep.subr.bf16.mxu0 0
  %4244 = vmatpush1.bf16.msra.mxu0 %v3006
  %4245 = vmatprep.subr.bf16.mxu0 0
  %4246 = vmatpush1.bf16.msra.mxu0 %v3007
  %4247 = vmatprep.subr.bf16.mxu0 0
  %4248 = vmatpush1.bf16.msra.mxu0 %v3008
  %4249 = vmatprep.mubr.bf16.mxu0 %v1055
  %4250 = vmatmul.mubr.bf16.gmra.mrb[0].mxu0 %v1053
  %v4251 = vpop.f32.mrb[0].mxu0
  %v4252 = vadd.f32 %v4212, %v4251
  %v4253 = vpop.f32.mrb[0].mxu0
  %v4254 = vpop.f32.mrb[0].mxu0
  %v4255 = vpop.f32.mrb[0].mxu0
  %4256 = vdwg.mxu0
  %4257 = vmatprep.subr.bf16.mxu0 0
  %4258 = vmatpush1.bf16.msra.mxu0 %v3009
  %4259 = vmatprep.subr.bf16.mxu0 0
  %4260 = vmatpush1.bf16.msra.mxu0 %v3010
  %4261 = vmatprep.subr.bf16.mxu0 0
  %4262 = vmatpush1.bf16.msra.mxu0 %v3011
  %4263 = vmatprep.subr.bf16.mxu0 0
  %4264 = vmatpush1.bf16.msra.mxu0 %v3012
  %4265 = vmatprep.subr.bf16.mxu0 0
  %4266 = vmatpush1.bf16.msra.mxu0 %v3013
  %4267 = vmatprep.subr.bf16.mxu0 0
  %4268 = vmatpush1.bf16.msra.mxu0 %v3014
  %4269 = vmatprep.subr.bf16.mxu0 0
  %4270 = vmatpush1.bf16.msra.mxu0 %v3015
  %4271 = vmatprep.subr.bf16.mxu0 0
  %4272 = vmatpush1.bf16.msra.mxu0 %v3016
  %4273 = vmatprep.subr.bf16.mxu0 0
  %4274 = vmatpush1.bf16.msra.mxu0 %v3017
  %4275 = vmatprep.subr.bf16.mxu0 0
  %4276 = vmatpush1.bf16.msra.mxu0 %v3018
  %4277 = vmatprep.subr.bf16.mxu0 0
  %4278 = vmatpush1.bf16.msra.mxu0 %v3019
  %4279 = vmatprep.subr.bf16.mxu0 0
  %4280 = vmatpush1.bf16.msra.mxu0 %v3020
  %4281 = vmatprep.subr.bf16.mxu0 0
  %4282 = vmatpush1.bf16.msra.mxu0 %v3021
  %4283 = vmatprep.subr.bf16.mxu0 0
  %4284 = vmatpush1.bf16.msra.mxu0 %v3022
  %4285 = vmatprep.subr.bf16.mxu0 0
  %4286 = vmatpush1.bf16.msra.mxu0 %v3023
  %4287 = vmatprep.subr.bf16.mxu0 0
  %4288 = vmatpush1.bf16.msra.mxu0 %v3024
  %4289 = vmatprep.mubr.bf16.mxu0 %v1093
  %4290 = vmatmul.mubr.bf16.gmra.mrb[0].mxu0 %v1079
  %v4291 = vpop.f32.mrb[0].mxu0
  %v4292 = vadd.f32 %v4252, %v4291
  %v4293 = vpop.f32.mrb[0].mxu0
  %v4294 = vpop.f32.mrb[0].mxu0
  %v4295 = vpop.f32.mrb[0].mxu0
  %4296 = vdwg.mxu0
  %4297 = vmatprep.subr.bf16.mxu0 0
  %4298 = vmatpush1.bf16.msra.mxu0 %v3025
  %4299 = vmatprep.subr.bf16.mxu0 0
  %4300 = vmatpush1.bf16.msra.mxu0 %v3026
  %4301 = vmatprep.subr.bf16.mxu0 0
  %4302 = vmatpush1.bf16.msra.mxu0 %v3027
  %4303 = vmatprep.subr.bf16.mxu0 0
  %4304 = vmatpush1.bf16.msra.mxu0 %v3028
  %4305 = vmatprep.subr.bf16.mxu0 0
  %4306 = vmatpush1.bf16.msra.mxu0 %v3029
  %4307 = vmatprep.subr.bf16.mxu0 0
  %4308 = vmatpush1.bf16.msra.mxu0 %v3030
  %4309 = vmatprep.subr.bf16.mxu0 0
  %4310 = vmatpush1.bf16.msra.mxu0 %v3031
  %4311 = vmatprep.subr.bf16.mxu0 0
  %4312 = vmatpush1.bf16.msra.mxu0 %v3032
  %4313 = vmatprep.subr.bf16.mxu0 0
  %4314 = vmatpush1.bf16.msra.mxu0 %v3033
  %4315 = vmatprep.subr.bf16.mxu0 0
  %4316 = vmatpush1.bf16.msra.mxu0 %v3034
  %4317 = vmatprep.subr.bf16.mxu0 0
  %4318 = vmatpush1.bf16.msra.mxu0 %v3035
  %4319 = vmatprep.subr.bf16.mxu0 0
  %4320 = vmatpush1.bf16.msra.mxu0 %v3036
  %4321 = vmatprep.subr.bf16.mxu0 0
  %4322 = vmatpush1.bf16.msra.mxu0 %v3037
  %4323 = vmatprep.subr.bf16.mxu0 0
  %4324 = vmatpush1.bf16.msra.mxu0 %v3038
  %4325 = vmatprep.subr.bf16.mxu0 0
  %4326 = vmatpush1.bf16.msra.mxu0 %v3039
  %4327 = vmatprep.subr.bf16.mxu0 0
  %4328 = vmatpush1.bf16.msra.mxu0 %v3040
  %4329 = vmatprep.mubr.bf16.mxu0 %v1103
  %4330 = vmatmul.mubr.bf16.gmra.mrb[0].mxu0 %v1101
  %v4331 = vpop.f32.mrb[0].mxu0
  %v4332 = vadd.f32 %v4292, %v4331
  %v4333 = vpop.f32.mrb[0].mxu0
  %v4334 = vpop.f32.mrb[0].mxu0
  %v4335 = vpop.f32.mrb[0].mxu0
  %4336 = vdwg.mxu0
  %4337 = vmatprep.subr.bf16.mxu0 0
  %4338 = vmatpush1.bf16.msra.mxu0 %v3041
  %4339 = vmatprep.subr.bf16.mxu0 0
  %4340 = vmatpush1.bf16.msra.mxu0 %v3042
  %4341 = vmatprep.subr.bf16.mxu0 0
  %4342 = vmatpush1.bf16.msra.mxu0 %v3043
  %4343 = vmatprep.subr.bf16.mxu0 0
  %4344 = vmatpush1.bf16.msra.mxu0 %v3044
  %4345 = vmatprep.subr.bf16.mxu0 0
  %4346 = vmatpush1.bf16.msra.mxu0 %v3045
  %4347 = vmatprep.subr.bf16.mxu0 0
  %4348 = vmatpush1.bf16.msra.mxu0 %v3046
  %4349 = vmatprep.subr.bf16.mxu0 0
  %4350 = vmatpush1.bf16.msra.mxu0 %v3047
  %4351 = vmatprep.subr.bf16.mxu0 0
  %4352 = vmatpush1.bf16.msra.mxu0 %v3048
  %4353 = vmatprep.subr.bf16.mxu0 0
  %4354 = vmatpush1.bf16.msra.mxu0 %v3049
  %4355 = vmatprep.subr.bf16.mxu0 0
  %4356 = vmatpush1.bf16.msra.mxu0 %v3050
  %4357 = vmatprep.subr.bf16.mxu0 0
  %4358 = vmatpush1.bf16.msra.mxu0 %v3051
  %4359 = vmatprep.subr.bf16.mxu0 0
  %4360 = vmatpush1.bf16.msra.mxu0 %v3052
  %4361 = vmatprep.subr.bf16.mxu0 0
  %4362 = vmatpush1.bf16.msra.mxu0 %v3053
  %4363 = vmatprep.subr.bf16.mxu0 0
  %4364 = vmatpush1.bf16.msra.mxu0 %v3054
  %4365 = vmatprep.subr.bf16.mxu0 0
  %4366 = vmatpush1.bf16.msra.mxu0 %v3055
  %4367 = vmatprep.subr.bf16.mxu0 0
  %4368 = vmatpush1.bf16.msra.mxu0 %v3056
  %4369 = vmatprep.mubr.bf16.mxu0 %v1100
  %4370 = vmatmul.mubr.bf16.gmra.mrb[0].mxu0 %v1086
  %v4371 = vpop.f32.mrb[0].mxu0
  %v4372 = vadd.f32 %v4332, %v4371
  %v4373 = vpop.f32.mrb[0].mxu0
  %v4374 = vpop.f32.mrb[0].mxu0
  %v4375 = vpop.f32.mrb[0].mxu0
  %4376 = vdwg.mxu0
  %4377 = vmatprep.subr.bf16.mxu0 0
  %4378 = vmatpush1.bf16.msra.mxu0 %v3057
  %4379 = vmatprep.subr.bf16.mxu0 0
  %4380 = vmatpush1.bf16.msra.mxu0 %v3058
  %4381 = vmatprep.subr.bf16.mxu0 0
  %4382 = vmatpush1.bf16.msra.mxu0 %v3059
  %4383 = vmatprep.subr.bf16.mxu0 0
  %4384 = vmatpush1.bf16.msra.mxu0 %v3060
  %4385 = vmatprep.subr.bf16.mxu0 0
  %4386 = vmatpush1.bf16.msra.mxu0 %v3061
  %4387 = vmatprep.subr.bf16.mxu0 0
  %4388 = vmatpush1.bf16.msra.mxu0 %v3062
  %4389 = vmatprep.subr.bf16.mxu0 0
  %4390 = vmatpush1.bf16.msra.mxu0 %v3063
  %4391 = vmatprep.subr.bf16.mxu0 0
  %4392 = vmatpush1.bf16.msra.mxu0 %v3064
  %4393 = vmatprep.subr.bf16.mxu0 0
  %4394 = vmatpush1.bf16.msra.mxu0 %v3065
  %4395 = vmatprep.subr.bf16.mxu0 0
  %4396 = vmatpush1.bf16.msra.mxu0 %v3066
  %4397 = vmatprep.subr.bf16.mxu0 0
  %4398 = vmatpush1.bf16.msra.mxu0 %v3067
  %4399 = vmatprep.subr.bf16.mxu0 0
  %4400 = vmatpush1.bf16.msra.mxu0 %v3068
  %4401 = vmatprep.subr.bf16.mxu0 0
  %4402 = vmatpush1.bf16.msra.mxu0 %v3069
  %4403 = vmatprep.subr.bf16.mxu0 0
  %4404 = vmatpush1.bf16.msra.mxu0 %v3070
  %4405 = vmatprep.subr.bf16.mxu0 0
  %4406 = vmatpush1.bf16.msra.mxu0 %v3071
  %4407 = vmatprep.subr.bf16.mxu0 0
  %4408 = vmatpush1.bf16.msra.mxu0 %v3072
  %4409 = vmatprep.mubr.bf16.mxu0 %v1104
  %4410 = vmatmul.mubr.bf16.gmra.mrb[0].mxu0 %v1102
  %v4411 = vpop.f32.mrb[0].mxu0
  %v4412 = vadd.f32 %v4372, %v4411
  %v4413 = vpop.f32.mrb[0].mxu0
  %v4414 = vpop.f32.mrb[0].mxu0
  %v4415 = vpop.f32.mrb[0].mxu0
  %4416 = vdwg.mxu0
  %v4417 = vld [vmem:[%s3] sm:$0xff]
  %v4418 = vld [vmem:[%s3 + $0x8] sm:$0xff]
  %v4419 = vld [vmem:[%s3 + $0x10] sm:$0xff]
  %v4420 = vld [vmem:[%s3 + $0x18] sm:$0xff]
  %v4421 = vld [vmem:[%s3 + $0x20] sm:$0xff]
  %v4422 = vld [vmem:[%s3 + $0x28] sm:$0xff]
  %v4423 = vld [vmem:[%s3 + $0x30] sm:$0xff]
  %v4424 = vld [vmem:[%s3 + $0x38] sm:$0xff]
  %s4425 = scalar_lea.vmem %s3, 64
  %v4426 = vld [vmem:[%s4425] sm:$0xff]
  %v4427 = vld [vmem:[%s4425 + $0x8] sm:$0xff]
  %v4428 = vld [vmem:[%s4425 + $0x10] sm:$0xff]
  %v4429 = vld [vmem:[%s4425 + $0x18] sm:$0xff]
  %v4430 = vld [vmem:[%s4425 + $0x20] sm:$0xff]
  %v4431 = vld [vmem:[%s4425 + $0x28] sm:$0xff]
  %v4432 = vld [vmem:[%s4425 + $0x30] sm:$0xff]
  %v4433 = vld [vmem:[%s4425 + $0x38] sm:$0xff]
  %v4434 = vlaneseq
  %v4435 = vshrl.u32 %v4434, 7
  %v4436 = vsub.s32 1, %v4435
  %v4437 = vrot.slane %v4412, %v4436
  %v4438 = vmul.f32 %v4426, %v4437
  %v4439 = vmul.f32 %v4427, %v4437
  %v4440 = vmul.f32 %v4428, %v4437
  %v4441 = vmul.f32 %v4429, %v4437
  %v4442 = vmul.f32 %v4430, %v4437
  %v4443 = vmul.f32 %v4431, %v4437
  %v4444 = vmul.f32 %v4432, %v4437
  %v4445 = vmul.f32 %v4433, %v4437
  %vm4446 = vcmask 523264
  %v4447 = vsel %vm4446, %v4438, 0.0
  %4448 = vadd.xlane.f32.xlu0 %v4447
  %v4449 = vpop.xlane.xlu0 %4448
  %v4450 = vsel %vm4446, %v4439, 0.0
  %4451 = vadd.xlane.f32.xlu0 %v4450
  %v4452 = vpop.xlane.xlu0 %4451
  %v4453 = vsel %vm4446, %v4440, 0.0
  %4454 = vadd.xlane.f32.xlu0 %v4453
  %v4455 = vpop.xlane.xlu0 %4454
  %v4456 = vsel %vm4446, %v4441, 0.0
  %4457 = vadd.xlane.f32.xlu0 %v4456
  %v4458 = vpop.xlane.xlu0 %4457
  %v4459 = vsel %vm4446, %v4442, 0.0
  %4460 = vadd.xlane.f32.xlu0 %v4459
  %v4461 = vpop.xlane.xlu0 %4460
  %v4462 = vsel %vm4446, %v4443, 0.0
  %4463 = vadd.xlane.f32.xlu0 %v4462
  %v4464 = vpop.xlane.xlu0 %4463
  %v4465 = vsel %vm4446, %v4444, 0.0
  %4466 = vadd.xlane.f32.xlu0 %v4465
  %v4467 = vpop.xlane.xlu0 %4466
  %v4468 = vsel %vm4446, %v4445, 0.0
  %4469 = vadd.xlane.f32.xlu0 %v4468
  %v4470 = vpop.xlane.xlu0 %4469
  %v4471 = vlaneseq
  %v4472 = vshrl.u32 %v4471, 7
  %v4473 = vsub.s32 0, %v4472
  %v4474 = vrot.slane %v4412, %v4473
  %v4475 = vmul.f32 %v4417, %v4474
  %v4476 = vmul.f32 %v4418, %v4474
  %v4477 = vmul.f32 %v4419, %v4474
  %v4478 = vmul.f32 %v4420, %v4474
  %v4479 = vmul.f32 %v4421, %v4474
  %v4480 = vmul.f32 %v4422, %v4474
  %v4481 = vmul.f32 %v4423, %v4474
  %v4482 = vmul.f32 %v4424, %v4474
  %v4483 = vsel %vm4446, %v4475, 0.0
  %4484 = vadd.xlane.f32.xlu0 %v4483
  %v4485 = vpop.xlane.xlu0 %4484
  %v4486 = vadd.f32 %v4485, %v4449
  %v4487 = vsel %vm4446, %v4476, 0.0
  %4488 = vadd.xlane.f32.xlu0 %v4487
  %v4489 = vpop.xlane.xlu0 %4488
  %v4490 = vadd.f32 %v4489, %v4452
  %v4491 = vsel %vm4446, %v4477, 0.0
  %4492 = vadd.xlane.f32.xlu0 %v4491
  %v4493 = vpop.xlane.xlu0 %4492
  %v4494 = vadd.f32 %v4493, %v4455
  %v4495 = vsel %vm4446, %v4478, 0.0
  %4496 = vadd.xlane.f32.xlu0 %v4495
  %v4497 = vpop.xlane.xlu0 %4496
  %v4498 = vadd.f32 %v4497, %v4458
  %v4499 = vsel %vm4446, %v4479, 0.0
  %4500 = vadd.xlane.f32.xlu0 %v4499
  %v4501 = vpop.xlane.xlu0 %4500
  %v4502 = vadd.f32 %v4501, %v4461
  %v4503 = vsel %vm4446, %v4480, 0.0
  %4504 = vadd.xlane.f32.xlu0 %v4503
  %v4505 = vpop.xlane.xlu0 %4504
  %v4506 = vadd.f32 %v4505, %v4464
  %v4507 = vsel %vm4446, %v4481, 0.0
  %4508 = vadd.xlane.f32.xlu0 %v4507
  %v4509 = vpop.xlane.xlu0 %4508
  %v4510 = vadd.f32 %v4509, %v4467
  %v4511 = vsel %vm4446, %v4482, 0.0
  %4512 = vadd.xlane.f32.xlu0 %v4511
  %v4513 = vpop.xlane.xlu0 %4512
  %v4514 = vadd.f32 %v4513, %v4470
  %v4515 = vld [vmem:[%s5] sm:$0xff]
  %v4516 = vld [vmem:[%s5 + $0x8] sm:$0xff]
  %v4517 = vld [vmem:[%s5 + $0x10] sm:$0xff]
  %v4518 = vld [vmem:[%s5 + $0x18] sm:$0xff]
  %v4519 = vld [vmem:[%s5 + $0x20] sm:$0xff]
  %v4520 = vld [vmem:[%s5 + $0x28] sm:$0xff]
  %v4521 = vld [vmem:[%s5 + $0x30] sm:$0xff]
  %v4522 = vld [vmem:[%s5 + $0x38] sm:$0xff]
  %v4523 = vadd.f32 %v4486, %v4515
  %v4524 = vadd.f32 %v4490, %v4516
  %v4525 = vadd.f32 %v4494, %v4517
  %v4526 = vadd.f32 %v4498, %v4518
  %v4527 = vadd.f32 %v4502, %v4519
  %v4528 = vadd.f32 %v4506, %v4520
  %v4529 = vadd.f32 %v4510, %v4521
  %v4530 = vadd.f32 %v4514, %v4522
  %v4531 = vld [vmem:[%s0] sm:$0xff]
  %v4532 = vld [vmem:[%s0 + $0x8] sm:$0xff]
  %v4533 = vld [vmem:[%s0 + $0x10] sm:$0xff]
  %v4534 = vld [vmem:[%s0 + $0x18] sm:$0xff]
  %v4535 = vld [vmem:[%s0 + $0x20] sm:$0xff]
  %v4536 = vld [vmem:[%s0 + $0x28] sm:$0xff]
  %v4537 = vld [vmem:[%s0 + $0x30] sm:$0xff]
  %v4538 = vld [vmem:[%s0 + $0x38] sm:$0xff]
  %v4539 = vld [vmem:[%s0 + $0x40] sm:$0xff]
  %v4540 = vld [vmem:[%s0 + $0x48] sm:$0xff]
  %v4541 = vld [vmem:[%s0 + $0x50] sm:$0xff]
  %v4542 = vld [vmem:[%s0 + $0x58] sm:$0xff]
  %v4543 = vld [vmem:[%s0 + $0x60] sm:$0xff]
  %v4544 = vld [vmem:[%s0 + $0x68] sm:$0xff]
  %v4545 = vld [vmem:[%s0 + $0x70] sm:$0xff]
  %v4546 = vld [vmem:[%s0 + $0x78] sm:$0xff]
  %4548 = vset.pattern.permute.xlu0 0
  %4549 = vperm.xlu0 %4548, %v4523
  %v4550 = vpop.permute.xlu0 %4549
  %4553 = vset.pattern.permute.xlu0 0
  %4554 = vperm.xlu0 %4553, %v4524
  %v4555 = vpop.permute.xlu0 %4554
  %4558 = vset.pattern.permute.xlu0 0
  %4559 = vperm.xlu0 %4558, %v4525
  %v4560 = vpop.permute.xlu0 %4559
  %4563 = vset.pattern.permute.xlu0 0
  %4564 = vperm.xlu0 %4563, %v4526
  %v4565 = vpop.permute.xlu0 %4564
  %4568 = vset.pattern.permute.xlu0 0
  %4569 = vperm.xlu0 %4568, %v4527
  %v4570 = vpop.permute.xlu0 %4569
  %4573 = vset.pattern.permute.xlu0 0
  %4574 = vperm.xlu0 %4573, %v4528
  %v4575 = vpop.permute.xlu0 %4574
  %4578 = vset.pattern.permute.xlu0 0
  %4579 = vperm.xlu0 %4578, %v4529
  %v4580 = vpop.permute.xlu0 %4579
  %4583 = vset.pattern.permute.xlu0 0
  %4584 = vperm.xlu0 %4583, %v4530
  %v4585 = vpop.permute.xlu0 %4584
  %v4587 = vadd.f32 %v4531, %v4550
  %v4588 = vadd.f32 %v4532, %v4550
  %v4589 = vadd.f32 %v4533, %v4555
  %v4590 = vadd.f32 %v4534, %v4555
  %v4591 = vadd.f32 %v4535, %v4560
  %v4592 = vadd.f32 %v4536, %v4560
  %v4593 = vadd.f32 %v4537, %v4565
  %v4594 = vadd.f32 %v4538, %v4565
  %v4595 = vadd.f32 %v4539, %v4570
  %v4596 = vadd.f32 %v4540, %v4570
  %v4597 = vadd.f32 %v4541, %v4575
  %v4598 = vadd.f32 %v4542, %v4575
  %v4599 = vadd.f32 %v4543, %v4580
  %v4600 = vadd.f32 %v4544, %v4580
  %v4601 = vadd.f32 %v4545, %v4585
  %v4602 = vadd.f32 %v4546, %v4585
  %4603 = vst [vmem:[%s6] sm:$0xff] %v4587
  %4604 = vst.msk [vmem:[%s6 + $0x8] sm:$0xff] %vm4446, %v4588
  %4605 = vst [vmem:[%s6 + $0x10] sm:$0xff] %v4589
  %4606 = vst.msk [vmem:[%s6 + $0x18] sm:$0xff] %vm4446, %v4590
  %4607 = vst [vmem:[%s6 + $0x20] sm:$0xff] %v4591
  %4608 = vst.msk [vmem:[%s6 + $0x28] sm:$0xff] %vm4446, %v4592
  %4609 = vst [vmem:[%s6 + $0x30] sm:$0xff] %v4593
  %4610 = vst.msk [vmem:[%s6 + $0x38] sm:$0xff] %vm4446, %v4594
  %4611 = vst [vmem:[%s6 + $0x40] sm:$0xff] %v4595
  %4612 = vst.msk [vmem:[%s6 + $0x48] sm:$0xff] %vm4446, %v4596
  %4613 = vst [vmem:[%s6 + $0x50] sm:$0xff] %v4597
  %4614 = vst.msk [vmem:[%s6 + $0x58] sm:$0xff] %vm4446, %v4598
  %4615 = vst [vmem:[%s6 + $0x60] sm:$0xff] %v4599
  %4616 = vst.msk [vmem:[%s6 + $0x68] sm:$0xff] %vm4446, %v4600
  %4617 = vst [vmem:[%s6 + $0x70] sm:$0xff] %v4601
  %4618 = vst.msk [vmem:[%s6 + $0x78] sm:$0xff] %vm4446, %v4602
  // Predicated region
  $region26: #{model_forward.1} parent=0 // pred_check
    _
  $region27: #{model_forward.1} parent=0 // pred_check_branch
    %4620 = sbr.rel (0) target = $region29
  $region28: #{model_forward.1} parent=0 // pred_region
    _
  $region29: #{model_forward.1} parent=0 // pred_fallthru
    _
  // Predicated region
  $region30: #{model_forward.1} parent=0 // pred_check
    _
  $region31: #{model_forward.1} parent=0 // pred_check_branch
    %4622 = sbr.rel (0) target = $region33
  $region32: #{model_forward.1} parent=0 // pred_region
    _
  $region33: #{model_forward.1} parent=0 // pred_fallthru
    _

</llo_original>
